<compile_context>
chip_gen: v5e
topology: v5e:2x2
jax: 0.10.0
libtpu: 0.0.40
codegen_flags: <defaults>
</compile_context>

<pallas_src>
import functools

import jax
import jax.numpy as jnp
from jax import lax
from jax.experimental import pallas as pl
from jax.experimental.pallas import tpu as pltpu


# ------------------------------------------------------------------ kernels

def _conv_relu_pool_kernel(x_ref, w_ref, b_ref, o_ref, *,
                           H, W, Cin, Cout, Ho, Wo, pad_out):
    """Fused 3x3 SAME conv + bias + ReLU + 2x2 maxpool for ONE image.

    x_ref : (1, H+2, W+2, Cin)  spatially zero-padded NHWC input
    w_ref : (9*Cin, Cout)       kernel-position-major weight matrix
    b_ref : (1, Cout)
    o_ref : (1, Ho+2, Wo+2, Cout) if pad_out (borders written as zeros)
            (1, Ho,   Wo,   Cout) otherwise
    """
    if pad_out:
        o_ref[...] = jnp.zeros(o_ref.shape, o_ref.dtype)

    # 0/1 selection matrices that pick even / odd columns (W-direction pool).
    wo_ids = lax.broadcasted_iota(jnp.int32, (Wo, W), 0)
    w_ids = lax.broadcasted_iota(jnp.int32, (Wo, W), 1)
    sel_even = (w_ids == 2 * wo_ids).astype(jnp.float32)
    sel_odd = (w_ids == 2 * wo_ids + 1).astype(jnp.float32)

    def conv_row(h):
        # One conv output row (W, Cout), bias + ReLU applied.
        acc = jnp.zeros((W, Cout), jnp.float32)
        for dh in range(3):
            for dw in range(3):
                patch = x_ref[0, h + dh, pl.ds(dw, W), :]            # (W, Cin)
                wk = w_ref[pl.ds((dh * 3 + dw) * Cin, Cin), :]       # (Cin, Cout)
                acc = acc + jnp.dot(patch, wk,
                                    preferred_element_type=jnp.float32)
        return jnp.maximum(acc + b_ref[...], 0.0)

    def body(ho, carry):
        # H-direction pool: max of the two conv rows feeding pooled row `ho`.
        rmax = jnp.maximum(conv_row(2 * ho), conv_row(2 * ho + 1))    # (W, Cout)
        # W-direction pool via selection matmuls.
        pooled = jnp.maximum(
            jnp.dot(sel_even, rmax, preferred_element_type=jnp.float32),
            jnp.dot(sel_odd, rmax, preferred_element_type=jnp.float32))
        if pad_out:
            o_ref[0, 1 + ho, pl.ds(1, Wo), :] = pooled.astype(o_ref.dtype)
        else:
            o_ref[0, ho, :, :] = pooled.astype(o_ref.dtype)
        return carry

    lax.fori_loop(0, Ho, body, 0)


def _dense_head_kernel(x_ref, w1_ref, b1_ref, w2_ref, b2_ref, o_ref):
    """Fused fc1 + bias + ReLU + fc2 + bias."""
    h = jnp.dot(x_ref[...], w1_ref[...], preferred_element_type=jnp.float32)
    h = jnp.maximum(h + b1_ref[...], 0.0)
    out = jnp.dot(h, w2_ref[...], preferred_element_type=jnp.float32) + b2_ref[...]
    o_ref[...] = out.astype(o_ref.dtype)


# ------------------------------------------------------------- pallas wrappers

def conv3x3_relu_pool(x_padded, w, b, *, pad_out):
    """x_padded: (N, H+2, W+2, Cin) NHWC (zero-padded).  w: (3,3,Cin,Cout)."""
    n, hp, wp, cin = x_padded.shape
    H, W = hp - 2, wp - 2
    cout = w.shape[-1]
    Ho, Wo = H // 2, W // 2                      # floor mode, like MaxPool2d(2)
    if pad_out:
        out_shape = (n, Ho + 2, Wo + 2, cout)
    else:
        out_shape = (n, Ho, Wo, cout)
    wmat = w.reshape(9 * cin, cout)              # kernel-position-major rows

    kernel = functools.partial(_conv_relu_pool_kernel, H=H, W=W, Cin=cin,
                               Cout=cout, Ho=Ho, Wo=Wo, pad_out=pad_out)
    return pl.pallas_call(
        kernel,
        out_shape=jax.ShapeDtypeStruct(out_shape, x_padded.dtype),
        grid=(n,),
        in_specs=[
            pl.BlockSpec((1, hp, wp, cin), lambda i: (i, 0, 0, 0)),
            pl.BlockSpec((9 * cin, cout), lambda i: (0, 0)),
            pl.BlockSpec((1, cout), lambda i: (0, 0)),
        ],
        out_specs=pl.BlockSpec((1,) + out_shape[1:], lambda i: (i, 0, 0, 0)),
        compiler_params=pltpu.CompilerParams(
            dimension_semantics=("parallel",)),
    )(x_padded, wmat, b.reshape(1, cout))


def dense_head(x, w1, b1, w2, b2, *, tm=512):
    """(M,K) -> ReLU(x@w1+b1) @ w2 + b2, fused in one pallas_call."""
    M, K = x.shape
    N1 = w1.shape[1]
    N2 = w2.shape[1]
    bm = M if M <= tm else tm
    return pl.pallas_call(
        _dense_head_kernel,
        out_shape=jax.ShapeDtypeStruct((M, N2), x.dtype),
        grid=(pl.cdiv(M, bm),),
        in_specs=[
            pl.BlockSpec((bm, K), lambda i: (i, 0)),
            pl.BlockSpec((K, N1), lambda i: (0, 0)),
            pl.BlockSpec((1, N1), lambda i: (0, 0)),
            pl.BlockSpec((N1, N2), lambda i: (0, 0)),
            pl.BlockSpec((1, N2), lambda i: (0, 0)),
        ],
        out_specs=pl.BlockSpec((bm, N2), lambda i: (i, 0)),
        compiler_params=pltpu.CompilerParams(
            dimension_semantics=("parallel",)),
    )(x, w1, b1.reshape(1, N1), w2, b2.reshape(1, N2))


# ------------------------------------------------------------------- network

def init_params(key, num_classes):
    ks = jax.random.split(key, 10)
    s = 0.05
    return {
        "w1": s * jax.random.normal(ks[0], (3, 3, 3, 32), jnp.float32),
        "b1": s * jax.random.normal(ks[1], (32,), jnp.float32),
        "w2": s * jax.random.normal(ks[2], (3, 3, 32, 64), jnp.float32),
        "b2": s * jax.random.normal(ks[3], (64,), jnp.float32),
        "w3": s * jax.random.normal(ks[4], (3, 3, 64, 64), jnp.float32),
        "b3": s * jax.random.normal(ks[5], (64,), jnp.float32),
        # fc1 rows follow PyTorch's NCHW-flatten convention (c*9 + h*3 + w).
        "w4": s * jax.random.normal(ks[6], (64 * 3 * 3, 128), jnp.float32),
        "b4": s * jax.random.normal(ks[7], (128,), jnp.float32),
        "w5": s * jax.random.normal(ks[8], (128, num_classes), jnp.float32),
        "b5": s * jax.random.normal(ks[9], (num_classes,), jnp.float32),
    }


def net_forward(x_nchw, params):
    # x_nchw: (N, 3, 28, 28) float32 (PyTorch layout at the boundary).
    n = x_nchw.shape[0]
    x = jnp.transpose(x_nchw, (0, 2, 3, 1))                       # NHWC
    # Spatial SAME padding + pad channels 3 -> 8 (aligned contraction dim).
    x = jnp.pad(x, ((0, 0), (1, 1), (1, 1), (0, 5)))
    w1p = jnp.pad(params["w1"], ((0, 0), (0, 0), (0, 5), (0, 0)))

    a1 = conv3x3_relu_pool(x, w1p, params["b1"], pad_out=True)    # (N,16,16,32)
    a2 = conv3x3_relu_pool(a1, params["w2"], params["b2"], pad_out=True)   # (N,9,9,64)
    a3 = conv3x3_relu_pool(a2, params["w3"], params["b3"], pad_out=False)  # (N,3,3,64)

    # HWC flatten of the NHWC activation; compensate by permuting fc1's rows
    # from PyTorch's NCHW-flatten order to HWC-flatten order (math identical).
    res = a3.reshape(n, 3 * 3 * 64)
    w4 = params["w4"].reshape(64, 3, 3, 128).transpose(1, 2, 0, 3).reshape(576, 128)

    # Pad fc2 to a lane-dense 128-wide output slab; slice to num_classes after.
    c = params["w5"].shape[1]
    cpad = max(0, 128 - c)
    w5 = jnp.pad(params["w5"], ((0, 0), (0, cpad)))
    b5 = jnp.pad(params["b5"], ((0, cpad),))

    out = dense_head(res, w4, params["b4"], w5, b5)
    return out[:, :c]


if __name__ == "__main__":
    num_classes = 10
    key = jax.random.PRNGKey(0)
    kx, kp = jax.random.split(key)
    # Spatial size 28 is implied by the 64*3*3 flatten: 28 -> 14 -> 7 -> 3.
    x = jax.random.normal(kx, (2, 3, 28, 28), jnp.float32)
    params = init_params(kp, num_classes)

    out = jax.jit(net_forward)(x, params)
    jax.block_until_ready(out)
    assert out.shape == (2, num_classes)
    assert out.dtype == jnp.float32
    print("KERNEL_OK")
</pallas_src>

<mosaic_0001>
module attributes {stable_mosaic.version = 11 : i64} {
  func.func @_conv_relu_pool_kernel(%arg0: i32, %arg1: memref<1x30x30x8xf32, #tpu.memory_space<vmem>>, %arg2: memref<72x32xf32, #tpu.memory_space<vmem>>, %arg3: memref<1x32xf32, #tpu.memory_space<vmem>>, %arg4: memref<1x16x16x32xf32, #tpu.memory_space<vmem>>) attributes {dimension_semantics = [#tpu.dimension_semantics<parallel>], iteration_bounds = array<i64: 2>, scalar_prefetch = 0 : i64, scratch_operands = 0 : i64, tpu.core_type = #tpu.core_type<tc>, window_params = [{transform_indices = @transform_0, window_bounds = array<i64: 1, 30, 30, 8>}, {pipeline_mode = #tpu.pipeline_mode<synchronous>, transform_indices = @transform_1, window_bounds = array<i64: 72, 32>}, {pipeline_mode = #tpu.pipeline_mode<synchronous>, transform_indices = @transform_2, window_bounds = array<i64: 1, 32>}, {transform_indices = @transform_3, window_bounds = array<i64: 1, 16, 16, 32>}]} {
    %cst = arith.constant 0.000000e+00 : f32
    %0 = vector.broadcast %cst : f32 to vector<1x16x16x32xf32>
    %c0 = arith.constant 0 : index
    %c0_0 = arith.constant 0 : index
    %c0_1 = arith.constant 0 : index
    %c0_2 = arith.constant 0 : index
    %1 = vector.load %arg4[%c0, %c0_0, %c0_1, %c0_2] : memref<1x16x16x32xf32, #tpu.memory_space<vmem>>, vector<1x16x16x32xf32>
    tpu.vector_store %arg4[%c0, %c0_0, %c0_1, %c0_2], %0 {strides = array<i32>} : memref<1x16x16x32xf32, #tpu.memory_space<vmem>>, vector<1x16x16x32xf32>,
    %2 = tpu.iota {dimensions = array<i32: 0>} : vector<14x28xi32>
    %3 = tpu.iota {dimensions = array<i32: 1>} : vector<14x28xi32>
    %c2_i32 = arith.constant 2 : i32
    %4 = vector.broadcast %c2_i32 : i32 to vector<14x28xi32>
    %5 = arith.muli %4, %2 : vector<14x28xi32>
    %6 = arith.cmpi eq, %3, %5 : vector<14x28xi32>
    %7 = arith.extui %6 : vector<14x28xi1> to vector<14x28xi32>
    %8 = arith.sitofp %7 : vector<14x28xi32> to vector<14x28xf32>
    %c2_i32_3 = arith.constant 2 : i32
    %9 = vector.broadcast %c2_i32_3 : i32 to vector<14x28xi32>
    %10 = arith.muli %9, %2 : vector<14x28xi32>
    %c1_i32 = arith.constant 1 : i32
    %11 = vector.broadcast %c1_i32 : i32 to vector<14x28xi32>
    %12 = arith.addi %10, %11 : vector<14x28xi32>
    %13 = arith.cmpi eq, %3, %12 : vector<14x28xi32>
    %14 = arith.extui %13 : vector<14x28xi1> to vector<14x28xi32>
    %15 = arith.sitofp %14 : vector<14x28xi32> to vector<14x28xf32>
    %c0_i32 = arith.constant 0 : i32
    %c14_i32 = arith.constant 14 : i32
    %16 = arith.addi %c0_i32, %c14_i32 : i32
    %c1_i32_4 = arith.constant 1 : i32
    scf.for %arg5 = %c0_i32 to %16 step %c1_i32_4  : i32 {
      %c2_i32_6 = arith.constant 2 : i32
      %17 = arith.muli %c2_i32_6, %arg5 : i32
      %cst_7 = arith.constant 0.000000e+00 : f32
      %18 = vector.broadcast %cst_7 : f32 to vector<28x32xf32>
      %c0_i32_8 = arith.constant 0 : i32
      %19 = arith.addi %17, %c0_i32_8 : i32
      %c0_9 = arith.constant 0 : index
      %20 = arith.index_cast %19 : i32 to index
      %c0_10 = arith.constant 0 : index
      %c0_11 = arith.constant 0 : index
      %21 = vector.load %arg1[%c0_9, %20, %c0_10, %c0_11] : memref<1x30x30x8xf32, #tpu.memory_space<vmem>>, vector<1x1x28x8xf32>
      %22 = vector.shape_cast %21 : vector<1x1x28x8xf32> to vector<28x8xf32>
      %c0_12 = arith.constant 0 : index
      %c0_13 = arith.constant 0 : index
      %23 = vector.load %arg2[%c0_12, %c0_13] : memref<72x32xf32, #tpu.memory_space<vmem>>, vector<8x32xf32>
      %cst_14 = arith.constant dense<0.000000e+00> : vector<28x32xf32>
      %24 = tpu.matmul %22, %23, %cst_14 {dimension_numbers = #tpu.dot_dimension_numbers<[1], [0], [0], [1], [0, 0, 1, 1], [], []>} : vector<28x8xf32>, vector<8x32xf32>, vector<28x32xf32> -> vector<28x32xf32>
      %25 = arith.addf %18, %24 : vector<28x32xf32>
      %c0_i32_15 = arith.constant 0 : i32
      %26 = arith.addi %17, %c0_i32_15 : i32
      %c0_16 = arith.constant 0 : index
      %27 = arith.index_cast %26 : i32 to index
      %c1 = arith.constant 1 : index
      %c0_17 = arith.constant 0 : index
      %28 = vector.load %arg1[%c0_16, %27, %c1, %c0_17] : memref<1x30x30x8xf32, #tpu.memory_space<vmem>>, vector<1x1x28x8xf32>
      %29 = vector.shape_cast %28 : vector<1x1x28x8xf32> to vector<28x8xf32>
      %c8 = arith.constant 8 : index
      %c0_18 = arith.constant 0 : index
      %30 = vector.load %arg2[%c8, %c0_18] : memref<72x32xf32, #tpu.memory_space<vmem>>, vector<8x32xf32>
      %cst_19 = arith.constant dense<0.000000e+00> : vector<28x32xf32>
      %31 = tpu.matmul %29, %30, %cst_19 {dimension_numbers = #tpu.dot_dimension_numbers<[1], [0], [0], [1], [0, 0, 1, 1], [], []>} : vector<28x8xf32>, vector<8x32xf32>, vector<28x32xf32> -> vector<28x32xf32>
      %32 = arith.addf %25, %31 : vector<28x32xf32>
      %c0_i32_20 = arith.constant 0 : i32
      %33 = arith.addi %17, %c0_i32_20 : i32
      %c0_21 = arith.constant 0 : index
      %34 = arith.index_cast %33 : i32 to index
      %c2 = arith.constant 2 : index
      %c0_22 = arith.constant 0 : index
      %35 = vector.load %arg1[%c0_21, %34, %c2, %c0_22] : memref<1x30x30x8xf32, #tpu.memory_space<vmem>>, vector<1x1x28x8xf32>
      %36 = vector.shape_cast %35 : vector<1x1x28x8xf32> to vector<28x8xf32>
      %c16 = arith.constant 16 : index
      %c0_23 = arith.constant 0 : index
      %37 = vector.load %arg2[%c16, %c0_23] : memref<72x32xf32, #tpu.memory_space<vmem>>, vector<8x32xf32>
      %cst_24 = arith.constant dense<0.000000e+00> : vector<28x32xf32>
      %38 = tpu.matmul %36, %37, %cst_24 {dimension_numbers = #tpu.dot_dimension_numbers<[1], [0], [0], [1], [0, 0, 1, 1], [], []>} : vector<28x8xf32>, vector<8x32xf32>, vector<28x32xf32> -> vector<28x32xf32>
      %39 = arith.addf %32, %38 : vector<28x32xf32>
      %c1_i32_25 = arith.constant 1 : i32
      %40 = arith.addi %17, %c1_i32_25 : i32
      %c0_26 = arith.constant 0 : index
      %41 = arith.index_cast %40 : i32 to index
      %c0_27 = arith.constant 0 : index
      %c0_28 = arith.constant 0 : index
      %42 = vector.load %arg1[%c0_26, %41, %c0_27, %c0_28] : memref<1x30x30x8xf32, #tpu.memory_space<vmem>>, vector<1x1x28x8xf32>
      %43 = vector.shape_cast %42 : vector<1x1x28x8xf32> to vector<28x8xf32>
      %c24 = arith.constant 24 : index
      %c0_29 = arith.constant 0 : index
      %44 = vector.load %arg2[%c24, %c0_29] : memref<72x32xf32, #tpu.memory_space<vmem>>, vector<8x32xf32>
      %cst_30 = arith.constant dense<0.000000e+00> : vector<28x32xf32>
      %45 = tpu.matmul %43, %44, %cst_30 {dimension_numbers = #tpu.dot_dimension_numbers<[1], [0], [0], [1], [0, 0, 1, 1], [], []>} : vector<28x8xf32>, vector<8x32xf32>, vector<28x32xf32> -> vector<28x32xf32>
      %46 = arith.addf %39, %45 : vector<28x32xf32>
      %c1_i32_31 = arith.constant 1 : i32
      %47 = arith.addi %17, %c1_i32_31 : i32
      %c0_32 = arith.constant 0 : index
      %48 = arith.index_cast %47 : i32 to index
      %c1_33 = arith.constant 1 : index
      %c0_34 = arith.constant 0 : index
      %49 = vector.load %arg1[%c0_32, %48, %c1_33, %c0_34] : memref<1x30x30x8xf32, #tpu.memory_space<vmem>>, vector<1x1x28x8xf32>
      %50 = vector.shape_cast %49 : vector<1x1x28x8xf32> to vector<28x8xf32>
      %c32 = arith.constant 32 : index
      %c0_35 = arith.constant 0 : index
      %51 = vector.load %arg2[%c32, %c0_35] : memref<72x32xf32, #tpu.memory_space<vmem>>, vector<8x32xf32>
      %cst_36 = arith.constant dense<0.000000e+00> : vector<28x32xf32>
      %52 = tpu.matmul %50, %51, %cst_36 {dimension_numbers = #tpu.dot_dimension_numbers<[1], [0], [0], [1], [0, 0, 1, 1], [], []>} : vector<28x8xf32>, vector<8x32xf32>, vector<28x32xf32> -> vector<28x32xf32>
      %53 = arith.addf %46, %52 : vector<28x32xf32>
      %c1_i32_37 = arith.constant 1 : i32
      %54 = arith.addi %17, %c1_i32_37 : i32
      %c0_38 = arith.constant 0 : index
      %55 = arith.index_cast %54 : i32 to index
      %c2_39 = arith.constant 2 : index
      %c0_40 = arith.constant 0 : index
      %56 = vector.load %arg1[%c0_38, %55, %c2_39, %c0_40] : memref<1x30x30x8xf32, #tpu.memory_space<vmem>>, vector<1x1x28x8xf32>
      %57 = vector.shape_cast %56 : vector<1x1x28x8xf32> to vector<28x8xf32>
      %c40 = arith.constant 40 : index
      %c0_41 = arith.constant 0 : index
      %58 = vector.load %arg2[%c40, %c0_41] : memref<72x32xf32, #tpu.memory_space<vmem>>, vector<8x32xf32>
      %cst_42 = arith.constant dense<0.000000e+00> : vector<28x32xf32>
      %59 = tpu.matmul %57, %58, %cst_42 {dimension_numbers = #tpu.dot_dimension_numbers<[1], [0], [0], [1], [0, 0, 1, 1], [], []>} : vector<28x8xf32>, vector<8x32xf32>, vector<28x32xf32> -> vector<28x32xf32>
      %60 = arith.addf %53, %59 : vector<28x32xf32>
      %c2_i32_43 = arith.constant 2 : i32
      %61 = arith.addi %17, %c2_i32_43 : i32
      %c0_44 = arith.constant 0 : index
      %62 = arith.index_cast %61 : i32 to index
      %c0_45 = arith.constant 0 : index
      %c0_46 = arith.constant 0 : index
      %63 = vector.load %arg1[%c0_44, %62, %c0_45, %c0_46] : memref<1x30x30x8xf32, #tpu.memory_space<vmem>>, vector<1x1x28x8xf32>
      %64 = vector.shape_cast %63 : vector<1x1x28x8xf32> to vector<28x8xf32>
      %c48 = arith.constant 48 : index
      %c0_47 = arith.constant 0 : index
      %65 = vector.load %arg2[%c48, %c0_47] : memref<72x32xf32, #tpu.memory_space<vmem>>, vector<8x32xf32>
      %cst_48 = arith.constant dense<0.000000e+00> : vector<28x32xf32>
      %66 = tpu.matmul %64, %65, %cst_48 {dimension_numbers = #tpu.dot_dimension_numbers<[1], [0], [0], [1], [0, 0, 1, 1], [], []>} : vector<28x8xf32>, vector<8x32xf32>, vector<28x32xf32> -> vector<28x32xf32>
      %67 = arith.addf %60, %66 : vector<28x32xf32>
      %c2_i32_49 = arith.constant 2 : i32
      %68 = arith.addi %17, %c2_i32_49 : i32
      %c0_50 = arith.constant 0 : index
      %69 = arith.index_cast %68 : i32 to index
      %c1_51 = arith.constant 1 : index
      %c0_52 = arith.constant 0 : index
      %70 = vector.load %arg1[%c0_50, %69, %c1_51, %c0_52] : memref<1x30x30x8xf32, #tpu.memory_space<vmem>>, vector<1x1x28x8xf32>
      %71 = vector.shape_cast %70 : vector<1x1x28x8xf32> to vector<28x8xf32>
      %c56 = arith.constant 56 : index
      %c0_53 = arith.constant 0 : index
      %72 = vector.load %arg2[%c56, %c0_53] : memref<72x32xf32, #tpu.memory_space<vmem>>, vector<8x32xf32>
      %cst_54 = arith.constant dense<0.000000e+00> : vector<28x32xf32>
      %73 = tpu.matmul %71, %72, %cst_54 {dimension_numbers = #tpu.dot_dimension_numbers<[1], [0], [0], [1], [0, 0, 1, 1], [], []>} : vector<28x8xf32>, vector<8x32xf32>, vector<28x32xf32> -> vector<28x32xf32>
      %74 = arith.addf %67, %73 : vector<28x32xf32>
      %c2_i32_55 = arith.constant 2 : i32
      %75 = arith.addi %17, %c2_i32_55 : i32
      %c0_56 = arith.constant 0 : index
      %76 = arith.index_cast %75 : i32 to index
      %c2_57 = arith.constant 2 : index
      %c0_58 = arith.constant 0 : index
      %77 = vector.load %arg1[%c0_56, %76, %c2_57, %c0_58] : memref<1x30x30x8xf32, #tpu.memory_space<vmem>>, vector<1x1x28x8xf32>
      %78 = vector.shape_cast %77 : vector<1x1x28x8xf32> to vector<28x8xf32>
      %c64 = arith.constant 64 : index
      %c0_59 = arith.constant 0 : index
      %79 = vector.load %arg2[%c64, %c0_59] : memref<72x32xf32, #tpu.memory_space<vmem>>, vector<8x32xf32>
      %cst_60 = arith.constant dense<0.000000e+00> : vector<28x32xf32>
      %80 = tpu.matmul %78, %79, %cst_60 {dimension_numbers = #tpu.dot_dimension_numbers<[1], [0], [0], [1], [0, 0, 1, 1], [], []>} : vector<28x8xf32>, vector<8x32xf32>, vector<28x32xf32> -> vector<28x32xf32>
      %81 = arith.addf %74, %80 : vector<28x32xf32>
      %c0_61 = arith.constant 0 : index
      %c0_62 = arith.constant 0 : index
      %82 = vector.load %arg3[%c0_61, %c0_62] : memref<1x32xf32, #tpu.memory_space<vmem>>, vector<1x32xf32>
      %83 = vector.broadcast %82 : vector<1x32xf32> to vector<28x32xf32>
      %84 = arith.addf %81, %83 : vector<28x32xf32>
      %cst_63 = arith.constant 0.000000e+00 : f32
      %85 = vector.broadcast %cst_63 : f32 to vector<28x32xf32>
      %86 = arith.maximumf %84, %85 : vector<28x32xf32>
      %c2_i32_64 = arith.constant 2 : i32
      %87 = arith.muli %c2_i32_64, %arg5 : i32
      %c1_i32_65 = arith.constant 1 : i32
      %88 = arith.addi %87, %c1_i32_65 : i32
      %cst_66 = arith.constant 0.000000e+00 : f32
      %89 = vector.broadcast %cst_66 : f32 to vector<28x32xf32>
      %c0_i32_67 = arith.constant 0 : i32
      %90 = arith.addi %88, %c0_i32_67 : i32
      %c0_68 = arith.constant 0 : index
      %91 = arith.index_cast %90 : i32 to index
      %c0_69 = arith.constant 0 : index
      %c0_70 = arith.constant 0 : index
      %92 = vector.load %arg1[%c0_68, %91, %c0_69, %c0_70] : memref<1x30x30x8xf32, #tpu.memory_space<vmem>>, vector<1x1x28x8xf32>
      %93 = vector.shape_cast %92 : vector<1x1x28x8xf32> to vector<28x8xf32>
      %c0_71 = arith.constant 0 : index
      %c0_72 = arith.constant 0 : index
      %94 = vector.load %arg2[%c0_71, %c0_72] : memref<72x32xf32, #tpu.memory_space<vmem>>, vector<8x32xf32>
      %cst_73 = arith.constant dense<0.000000e+00> : vector<28x32xf32>
      %95 = tpu.matmul %93, %94, %cst_73 {dimension_numbers = #tpu.dot_dimension_numbers<[1], [0], [0], [1], [0, 0, 1, 1], [], []>} : vector<28x8xf32>, vector<8x32xf32>, vector<28x32xf32> -> vector<28x32xf32>
      %96 = arith.addf %89, %95 : vector<28x32xf32>
      %c0_i32_74 = arith.constant 0 : i32
      %97 = arith.addi %88, %c0_i32_74 : i32
      %c0_75 = arith.constant 0 : index
      %98 = arith.index_cast %97 : i32 to index
      %c1_76 = arith.constant 1 : index
      %c0_77 = arith.constant 0 : index
      %99 = vector.load %arg1[%c0_75, %98, %c1_76, %c0_77] : memref<1x30x30x8xf32, #tpu.memory_space<vmem>>, vector<1x1x28x8xf32>
      %100 = vector.shape_cast %99 : vector<1x1x28x8xf32> to vector<28x8xf32>
      %c8_78 = arith.constant 8 : index
      %c0_79 = arith.constant 0 : index
      %101 = vector.load %arg2[%c8_78, %c0_79] : memref<72x32xf32, #tpu.memory_space<vmem>>, vector<8x32xf32>
      %cst_80 = arith.constant dense<0.000000e+00> : vector<28x32xf32>
      %102 = tpu.matmul %100, %101, %cst_80 {dimension_numbers = #tpu.dot_dimension_numbers<[1], [0], [0], [1], [0, 0, 1, 1], [], []>} : vector<28x8xf32>, vector<8x32xf32>, vector<28x32xf32> -> vector<28x32xf32>
      %103 = arith.addf %96, %102 : vector<28x32xf32>
      %c0_i32_81 = arith.constant 0 : i32
      %104 = arith.addi %88, %c0_i32_81 : i32
      %c0_82 = arith.constant 0 : index
      %105 = arith.index_cast %104 : i32 to index
      %c2_83 = arith.constant 2 : index
      %c0_84 = arith.constant 0 : index
      %106 = vector.load %arg1[%c0_82, %105, %c2_83, %c0_84] : memref<1x30x30x8xf32, #tpu.memory_space<vmem>>, vector<1x1x28x8xf32>
      %107 = vector.shape_cast %106 : vector<1x1x28x8xf32> to vector<28x8xf32>
      %c16_85 = arith.constant 16 : index
      %c0_86 = arith.constant 0 : index
      %108 = vector.load %arg2[%c16_85, %c0_86] : memref<72x32xf32, #tpu.memory_space<vmem>>, vector<8x32xf32>
      %cst_87 = arith.constant dense<0.000000e+00> : vector<28x32xf32>
      %109 = tpu.matmul %107, %108, %cst_87 {dimension_numbers = #tpu.dot_dimension_numbers<[1], [0], [0], [1], [0, 0, 1, 1], [], []>} : vector<28x8xf32>, vector<8x32xf32>, vector<28x32xf32> -> vector<28x32xf32>
      %110 = arith.addf %103, %109 : vector<28x32xf32>
      %c1_i32_88 = arith.constant 1 : i32
      %111 = arith.addi %88, %c1_i32_88 : i32
      %c0_89 = arith.constant 0 : index
      %112 = arith.index_cast %111 : i32 to index
      %c0_90 = arith.constant 0 : index
      %c0_91 = arith.constant 0 : index
      %113 = vector.load %arg1[%c0_89, %112, %c0_90, %c0_91] : memref<1x30x30x8xf32, #tpu.memory_space<vmem>>, vector<1x1x28x8xf32>
      %114 = vector.shape_cast %113 : vector<1x1x28x8xf32> to vector<28x8xf32>
      %c24_92 = arith.constant 24 : index
      %c0_93 = arith.constant 0 : index
      %115 = vector.load %arg2[%c24_92, %c0_93] : memref<72x32xf32, #tpu.memory_space<vmem>>, vector<8x32xf32>
      %cst_94 = arith.constant dense<0.000000e+00> : vector<28x32xf32>
      %116 = tpu.matmul %114, %115, %cst_94 {dimension_numbers = #tpu.dot_dimension_numbers<[1], [0], [0], [1], [0, 0, 1, 1], [], []>} : vector<28x8xf32>, vector<8x32xf32>, vector<28x32xf32> -> vector<28x32xf32>
      %117 = arith.addf %110, %116 : vector<28x32xf32>
      %c1_i32_95 = arith.constant 1 : i32
      %118 = arith.addi %88, %c1_i32_95 : i32
      %c0_96 = arith.constant 0 : index
      %119 = arith.index_cast %118 : i32 to index
      %c1_97 = arith.constant 1 : index
      %c0_98 = arith.constant 0 : index
      %120 = vector.load %arg1[%c0_96, %119, %c1_97, %c0_98] : memref<1x30x30x8xf32, #tpu.memory_space<vmem>>, vector<1x1x28x8xf32>
      %121 = vector.shape_cast %120 : vector<1x1x28x8xf32> to vector<28x8xf32>
      %c32_99 = arith.constant 32 : index
      %c0_100 = arith.constant 0 : index
      %122 = vector.load %arg2[%c32_99, %c0_100] : memref<72x32xf32, #tpu.memory_space<vmem>>, vector<8x32xf32>
      %cst_101 = arith.constant dense<0.000000e+00> : vector<28x32xf32>
      %123 = tpu.matmul %121, %122, %cst_101 {dimension_numbers = #tpu.dot_dimension_numbers<[1], [0], [0], [1], [0, 0, 1, 1], [], []>} : vector<28x8xf32>, vector<8x32xf32>, vector<28x32xf32> -> vector<28x32xf32>
      %124 = arith.addf %117, %123 : vector<28x32xf32>
      %c1_i32_102 = arith.constant 1 : i32
      %125 = arith.addi %88, %c1_i32_102 : i32
      %c0_103 = arith.constant 0 : index
      %126 = arith.index_cast %125 : i32 to index
      %c2_104 = arith.constant 2 : index
      %c0_105 = arith.constant 0 : index
      %127 = vector.load %arg1[%c0_103, %126, %c2_104, %c0_105] : memref<1x30x30x8xf32, #tpu.memory_space<vmem>>, vector<1x1x28x8xf32>
      %128 = vector.shape_cast %127 : vector<1x1x28x8xf32> to vector<28x8xf32>
      %c40_106 = arith.constant 40 : index
      %c0_107 = arith.constant 0 : index
      %129 = vector.load %arg2[%c40_106, %c0_107] : memref<72x32xf32, #tpu.memory_space<vmem>>, vector<8x32xf32>
      %cst_108 = arith.constant dense<0.000000e+00> : vector<28x32xf32>
      %130 = tpu.matmul %128, %129, %cst_108 {dimension_numbers = #tpu.dot_dimension_numbers<[1], [0], [0], [1], [0, 0, 1, 1], [], []>} : vector<28x8xf32>, vector<8x32xf32>, vector<28x32xf32> -> vector<28x32xf32>
      %131 = arith.addf %124, %130 : vector<28x32xf32>
      %c2_i32_109 = arith.constant 2 : i32
      %132 = arith.addi %88, %c2_i32_109 : i32
      %c0_110 = arith.constant 0 : index
      %133 = arith.index_cast %132 : i32 to index
      %c0_111 = arith.constant 0 : index
      %c0_112 = arith.constant 0 : index
      %134 = vector.load %arg1[%c0_110, %133, %c0_111, %c0_112] : memref<1x30x30x8xf32, #tpu.memory_space<vmem>>, vector<1x1x28x8xf32>
      %135 = vector.shape_cast %134 : vector<1x1x28x8xf32> to vector<28x8xf32>
      %c48_113 = arith.constant 48 : index
      %c0_114 = arith.constant 0 : index
      %136 = vector.load %arg2[%c48_113, %c0_114] : memref<72x32xf32, #tpu.memory_space<vmem>>, vector<8x32xf32>
      %cst_115 = arith.constant dense<0.000000e+00> : vector<28x32xf32>
      %137 = tpu.matmul %135, %136, %cst_115 {dimension_numbers = #tpu.dot_dimension_numbers<[1], [0], [0], [1], [0, 0, 1, 1], [], []>} : vector<28x8xf32>, vector<8x32xf32>, vector<28x32xf32> -> vector<28x32xf32>
      %138 = arith.addf %131, %137 : vector<28x32xf32>
      %c2_i32_116 = arith.constant 2 : i32
      %139 = arith.addi %88, %c2_i32_116 : i32
      %c0_117 = arith.constant 0 : index
      %140 = arith.index_cast %139 : i32 to index
      %c1_118 = arith.constant 1 : index
      %c0_119 = arith.constant 0 : index
      %141 = vector.load %arg1[%c0_117, %140, %c1_118, %c0_119] : memref<1x30x30x8xf32, #tpu.memory_space<vmem>>, vector<1x1x28x8xf32>
      %142 = vector.shape_cast %141 : vector<1x1x28x8xf32> to vector<28x8xf32>
      %c56_120 = arith.constant 56 : index
      %c0_121 = arith.constant 0 : index
      %143 = vector.load %arg2[%c56_120, %c0_121] : memref<72x32xf32, #tpu.memory_space<vmem>>, vector<8x32xf32>
      %cst_122 = arith.constant dense<0.000000e+00> : vector<28x32xf32>
      %144 = tpu.matmul %142, %143, %cst_122 {dimension_numbers = #tpu.dot_dimension_numbers<[1], [0], [0], [1], [0, 0, 1, 1], [], []>} : vector<28x8xf32>, vector<8x32xf32>, vector<28x32xf32> -> vector<28x32xf32>
      %145 = arith.addf %138, %144 : vector<28x32xf32>
      %c2_i32_123 = arith.constant 2 : i32
      %146 = arith.addi %88, %c2_i32_123 : i32
      %c0_124 = arith.constant 0 : index
      %147 = arith.index_cast %146 : i32 to index
      %c2_125 = arith.constant 2 : index
      %c0_126 = arith.constant 0 : index
      %148 = vector.load %arg1[%c0_124, %147, %c2_125, %c0_126] : memref<1x30x30x8xf32, #tpu.memory_space<vmem>>, vector<1x1x28x8xf32>
      %149 = vector.shape_cast %148 : vector<1x1x28x8xf32> to vector<28x8xf32>
      %c64_127 = arith.constant 64 : index
      %c0_128 = arith.constant 0 : index
      %150 = vector.load %arg2[%c64_127, %c0_128] : memref<72x32xf32, #tpu.memory_space<vmem>>, vector<8x32xf32>
      %cst_129 = arith.constant dense<0.000000e+00> : vector<28x32xf32>
      %151 = tpu.matmul %149, %150, %cst_129 {dimension_numbers = #tpu.dot_dimension_numbers<[1], [0], [0], [1], [0, 0, 1, 1], [], []>} : vector<28x8xf32>, vector<8x32xf32>, vector<28x32xf32> -> vector<28x32xf32>
      %152 = arith.addf %145, %151 : vector<28x32xf32>
      %c0_130 = arith.constant 0 : index
      %c0_131 = arith.constant 0 : index
      %153 = vector.load %arg3[%c0_130, %c0_131] : memref<1x32xf32, #tpu.memory_space<vmem>>, vector<1x32xf32>
      %154 = vector.broadcast %153 : vector<1x32xf32> to vector<28x32xf32>
      %155 = arith.addf %152, %154 : vector<28x32xf32>
      %cst_132 = arith.constant 0.000000e+00 : f32
      %156 = vector.broadcast %cst_132 : f32 to vector<28x32xf32>
      %157 = arith.maximumf %155, %156 : vector<28x32xf32>
      %158 = arith.maximumf %86, %157 : vector<28x32xf32>
      %cst_133 = arith.constant dense<0.000000e+00> : vector<14x32xf32>
      %159 = tpu.matmul %8, %158, %cst_133 {dimension_numbers = #tpu.dot_dimension_numbers<[1], [0], [0], [1], [0, 0, 1, 1], [], []>} : vector<14x28xf32>, vector<28x32xf32>, vector<14x32xf32> -> vector<14x32xf32>
      %cst_134 = arith.constant dense<0.000000e+00> : vector<14x32xf32>
      %160 = tpu.matmul %15, %158, %cst_134 {dimension_numbers = #tpu.dot_dimension_numbers<[1], [0], [0], [1], [0, 0, 1, 1], [], []>} : vector<14x28xf32>, vector<28x32xf32>, vector<14x32xf32> -> vector<14x32xf32>
      %161 = arith.maximumf %159, %160 : vector<14x32xf32>
      %c1_i32_135 = arith.constant 1 : i32
      %162 = arith.addi %c1_i32_135, %arg5 : i32
      %c0_136 = arith.constant 0 : index
      %163 = arith.index_cast %162 : i32 to index
      %c1_137 = arith.constant 1 : index
      %c0_138 = arith.constant 0 : index
      %164 = vector.load %arg4[%c0_136, %163, %c1_137, %c0_138] : memref<1x16x16x32xf32, #tpu.memory_space<vmem>>, vector<1x1x14x32xf32>
      %165 = vector.shape_cast %164 : vector<1x1x14x32xf32> to vector<14x32xf32>
      %166 = vector.shape_cast %161 : vector<14x32xf32> to vector<1x1x14x32xf32>
      tpu.vector_store %arg4[%c0_136, %163, %c1_137, %c0_138], %166 {strides = array<i32>} : memref<1x16x16x32xf32, #tpu.memory_space<vmem>>, vector<1x1x14x32xf32>,
    }
    %c14_i32_5 = arith.constant 14 : i32
    return
  }
  func.func @transform_0(%arg0: i32) -> (i32, i32, i32, i32) {
    %c0_i32 = arith.constant 0 : i32
    %c0_i32_0 = arith.constant 0 : i32
    %c0_i32_1 = arith.constant 0 : i32
    %c0_i32_2 = arith.constant 0 : i32
    return %arg0, %c0_i32, %c0_i32_0, %c0_i32_1 : i32, i32, i32, i32
  }
  func.func @transform_1(%arg0: i32) -> (i32, i32) {
    %c0_i32 = arith.constant 0 : i32
    %c0_i32_0 = arith.constant 0 : i32
    %c0_i32_1 = arith.constant 0 : i32
    return %c0_i32, %c0_i32_0 : i32, i32
  }
  func.func @transform_2(%arg0: i32) -> (i32, i32) {
    %c0_i32 = arith.constant 0 : i32
    %c0_i32_0 = arith.constant 0 : i32
    %c0_i32_1 = arith.constant 0 : i32
    return %c0_i32, %c0_i32_0 : i32, i32
  }
  func.func @transform_3(%arg0: i32) -> (i32, i32, i32, i32) {
    %c0_i32 = arith.constant 0 : i32
    %c0_i32_0 = arith.constant 0 : i32
    %c0_i32_1 = arith.constant 0 : i32
    %c0_i32_2 = arith.constant 0 : i32
    return %arg0, %c0_i32, %c0_i32_0, %c0_i32_1 : i32, i32, i32, i32
  }
}

module attributes {stable_mosaic.version = 11 : i64} {
  func.func @_conv_relu_pool_kernel(%arg0: i32, %arg1: memref<1x16x16x32xf32, #tpu.memory_space<vmem>>, %arg2: memref<288x64xf32, #tpu.memory_space<vmem>>, %arg3: memref<1x64xf32, #tpu.memory_space<vmem>>, %arg4: memref<1x9x9x64xf32, #tpu.memory_space<vmem>>) attributes {dimension_semantics = [#tpu.dimension_semantics<parallel>], iteration_bounds = array<i64: 2>, scalar_prefetch = 0 : i64, scratch_operands = 0 : i64, tpu.core_type = #tpu.core_type<tc>, window_params = [{transform_indices = @transform_0, window_bounds = array<i64: 1, 16, 16, 32>}, {pipeline_mode = #tpu.pipeline_mode<synchronous>, transform_indices = @transform_1, window_bounds = array<i64: 288, 64>}, {pipeline_mode = #tpu.pipeline_mode<synchronous>, transform_indices = @transform_2, window_bounds = array<i64: 1, 64>}, {transform_indices = @transform_3, window_bounds = array<i64: 1, 9, 9, 64>}]} {
    %cst = arith.constant 0.000000e+00 : f32
    %0 = vector.broadcast %cst : f32 to vector<1x9x9x64xf32>
    %c0 = arith.constant 0 : index
    %c0_0 = arith.constant 0 : index
    %c0_1 = arith.constant 0 : index
    %c0_2 = arith.constant 0 : index
    %1 = vector.load %arg4[%c0, %c0_0, %c0_1, %c0_2] : memref<1x9x9x64xf32, #tpu.memory_space<vmem>>, vector<1x9x9x64xf32>
    tpu.vector_store %arg4[%c0, %c0_0, %c0_1, %c0_2], %0 {strides = array<i32>} : memref<1x9x9x64xf32, #tpu.memory_space<vmem>>, vector<1x9x9x64xf32>,
    %2 = tpu.iota {dimensions = array<i32: 0>} : vector<7x14xi32>
    %3 = tpu.iota {dimensions = array<i32: 1>} : vector<7x14xi32>
    %c2_i32 = arith.constant 2 : i32
    %4 = vector.broadcast %c2_i32 : i32 to vector<7x14xi32>
    %5 = arith.muli %4, %2 : vector<7x14xi32>
    %6 = arith.cmpi eq, %3, %5 : vector<7x14xi32>
    %7 = arith.extui %6 : vector<7x14xi1> to vector<7x14xi32>
    %8 = arith.sitofp %7 : vector<7x14xi32> to vector<7x14xf32>
    %c2_i32_3 = arith.constant 2 : i32
    %9 = vector.broadcast %c2_i32_3 : i32 to vector<7x14xi32>
    %10 = arith.muli %9, %2 : vector<7x14xi32>
    %c1_i32 = arith.constant 1 : i32
    %11 = vector.broadcast %c1_i32 : i32 to vector<7x14xi32>
    %12 = arith.addi %10, %11 : vector<7x14xi32>
    %13 = arith.cmpi eq, %3, %12 : vector<7x14xi32>
    %14 = arith.extui %13 : vector<7x14xi1> to vector<7x14xi32>
    %15 = arith.sitofp %14 : vector<7x14xi32> to vector<7x14xf32>
    %c0_i32 = arith.constant 0 : i32
    %c7_i32 = arith.constant 7 : i32
    %16 = arith.addi %c0_i32, %c7_i32 : i32
    %c1_i32_4 = arith.constant 1 : i32
    scf.for %arg5 = %c0_i32 to %16 step %c1_i32_4  : i32 {
      %c2_i32_6 = arith.constant 2 : i32
      %17 = arith.muli %c2_i32_6, %arg5 : i32
      %cst_7 = arith.constant 0.000000e+00 : f32
      %18 = vector.broadcast %cst_7 : f32 to vector<14x64xf32>
      %c0_i32_8 = arith.constant 0 : i32
      %19 = arith.addi %17, %c0_i32_8 : i32
      %c0_9 = arith.constant 0 : index
      %20 = arith.index_cast %19 : i32 to index
      %c0_10 = arith.constant 0 : index
      %c0_11 = arith.constant 0 : index
      %21 = vector.load %arg1[%c0_9, %20, %c0_10, %c0_11] : memref<1x16x16x32xf32, #tpu.memory_space<vmem>>, vector<1x1x14x32xf32>
      %22 = vector.shape_cast %21 : vector<1x1x14x32xf32> to vector<14x32xf32>
      %c0_12 = arith.constant 0 : index
      %c0_13 = arith.constant 0 : index
      %23 = vector.load %arg2[%c0_12, %c0_13] : memref<288x64xf32, #tpu.memory_space<vmem>>, vector<32x64xf32>
      %cst_14 = arith.constant dense<0.000000e+00> : vector<14x64xf32>
      %24 = tpu.matmul %22, %23, %cst_14 {dimension_numbers = #tpu.dot_dimension_numbers<[1], [0], [0], [1], [0, 0, 1, 1], [], []>} : vector<14x32xf32>, vector<32x64xf32>, vector<14x64xf32> -> vector<14x64xf32>
      %25 = arith.addf %18, %24 : vector<14x64xf32>
      %c0_i32_15 = arith.constant 0 : i32
      %26 = arith.addi %17, %c0_i32_15 : i32
      %c0_16 = arith.constant 0 : index
      %27 = arith.index_cast %26 : i32 to index
      %c1 = arith.constant 1 : index
      %c0_17 = arith.constant 0 : index
      %28 = vector.load %arg1[%c0_16, %27, %c1, %c0_17] : memref<1x16x16x32xf32, #tpu.memory_space<vmem>>, vector<1x1x14x32xf32>
      %29 = vector.shape_cast %28 : vector<1x1x14x32xf32> to vector<14x32xf32>
      %c32 = arith.constant 32 : index
      %c0_18 = arith.constant 0 : index
      %30 = vector.load %arg2[%c32, %c0_18] : memref<288x64xf32, #tpu.memory_space<vmem>>, vector<32x64xf32>
      %cst_19 = arith.constant dense<0.000000e+00> : vector<14x64xf32>
      %31 = tpu.matmul %29, %30, %cst_19 {dimension_numbers = #tpu.dot_dimension_numbers<[1], [0], [0], [1], [0, 0, 1, 1], [], []>} : vector<14x32xf32>, vector<32x64xf32>, vector<14x64xf32> -> vector<14x64xf32>
      %32 = arith.addf %25, %31 : vector<14x64xf32>
      %c0_i32_20 = arith.constant 0 : i32
      %33 = arith.addi %17, %c0_i32_20 : i32
      %c0_21 = arith.constant 0 : index
      %34 = arith.index_cast %33 : i32 to index
      %c2 = arith.constant 2 : index
      %c0_22 = arith.constant 0 : index
      %35 = vector.load %arg1[%c0_21, %34, %c2, %c0_22] : memref<1x16x16x32xf32, #tpu.memory_space<vmem>>, vector<1x1x14x32xf32>
      %36 = vector.shape_cast %35 : vector<1x1x14x32xf32> to vector<14x32xf32>
      %c64 = arith.constant 64 : index
      %c0_23 = arith.constant 0 : index
      %37 = vector.load %arg2[%c64, %c0_23] : memref<288x64xf32, #tpu.memory_space<vmem>>, vector<32x64xf32>
      %cst_24 = arith.constant dense<0.000000e+00> : vector<14x64xf32>
      %38 = tpu.matmul %36, %37, %cst_24 {dimension_numbers = #tpu.dot_dimension_numbers<[1], [0], [0], [1], [0, 0, 1, 1], [], []>} : vector<14x32xf32>, vector<32x64xf32>, vector<14x64xf32> -> vector<14x64xf32>
      %39 = arith.addf %32, %38 : vector<14x64xf32>
      %c1_i32_25 = arith.constant 1 : i32
      %40 = arith.addi %17, %c1_i32_25 : i32
      %c0_26 = arith.constant 0 : index
      %41 = arith.index_cast %40 : i32 to index
      %c0_27 = arith.constant 0 : index
      %c0_28 = arith.constant 0 : index
      %42 = vector.load %arg1[%c0_26, %41, %c0_27, %c0_28] : memref<1x16x16x32xf32, #tpu.memory_space<vmem>>, vector<1x1x14x32xf32>
      %43 = vector.shape_cast %42 : vector<1x1x14x32xf32> to vector<14x32xf32>
      %c96 = arith.constant 96 : index
      %c0_29 = arith.constant 0 : index
      %44 = vector.load %arg2[%c96, %c0_29] : memref<288x64xf32, #tpu.memory_space<vmem>>, vector<32x64xf32>
      %cst_30 = arith.constant dense<0.000000e+00> : vector<14x64xf32>
      %45 = tpu.matmul %43, %44, %cst_30 {dimension_numbers = #tpu.dot_dimension_numbers<[1], [0], [0], [1], [0, 0, 1, 1], [], []>} : vector<14x32xf32>, vector<32x64xf32>, vector<14x64xf32> -> vector<14x64xf32>
      %46 = arith.addf %39, %45 : vector<14x64xf32>
      %c1_i32_31 = arith.constant 1 : i32
      %47 = arith.addi %17, %c1_i32_31 : i32
      %c0_32 = arith.constant 0 : index
      %48 = arith.index_cast %47 : i32 to index
      %c1_33 = arith.constant 1 : index
      %c0_34 = arith.constant 0 : index
      %49 = vector.load %arg1[%c0_32, %48, %c1_33, %c0_34] : memref<1x16x16x32xf32, #tpu.memory_space<vmem>>, vector<1x1x14x32xf32>
      %50 = vector.shape_cast %49 : vector<1x1x14x32xf32> to vector<14x32xf32>
      %c128 = arith.constant 128 : index
      %c0_35 = arith.constant 0 : index
      %51 = vector.load %arg2[%c128, %c0_35] : memref<288x64xf32, #tpu.memory_space<vmem>>, vector<32x64xf32>
      %cst_36 = arith.constant dense<0.000000e+00> : vector<14x64xf32>
      %52 = tpu.matmul %50, %51, %cst_36 {dimension_numbers = #tpu.dot_dimension_numbers<[1], [0], [0], [1], [0, 0, 1, 1], [], []>} : vector<14x32xf32>, vector<32x64xf32>, vector<14x64xf32> -> vector<14x64xf32>
      %53 = arith.addf %46, %52 : vector<14x64xf32>
      %c1_i32_37 = arith.constant 1 : i32
      %54 = arith.addi %17, %c1_i32_37 : i32
      %c0_38 = arith.constant 0 : index
      %55 = arith.index_cast %54 : i32 to index
      %c2_39 = arith.constant 2 : index
      %c0_40 = arith.constant 0 : index
      %56 = vector.load %arg1[%c0_38, %55, %c2_39, %c0_40] : memref<1x16x16x32xf32, #tpu.memory_space<vmem>>, vector<1x1x14x32xf32>
      %57 = vector.shape_cast %56 : vector<1x1x14x32xf32> to vector<14x32xf32>
      %c160 = arith.constant 160 : index
      %c0_41 = arith.constant 0 : index
      %58 = vector.load %arg2[%c160, %c0_41] : memref<288x64xf32, #tpu.memory_space<vmem>>, vector<32x64xf32>
      %cst_42 = arith.constant dense<0.000000e+00> : vector<14x64xf32>
      %59 = tpu.matmul %57, %58, %cst_42 {dimension_numbers = #tpu.dot_dimension_numbers<[1], [0], [0], [1], [0, 0, 1, 1], [], []>} : vector<14x32xf32>, vector<32x64xf32>, vector<14x64xf32> -> vector<14x64xf32>
      %60 = arith.addf %53, %59 : vector<14x64xf32>
      %c2_i32_43 = arith.constant 2 : i32
      %61 = arith.addi %17, %c2_i32_43 : i32
      %c0_44 = arith.constant 0 : index
      %62 = arith.index_cast %61 : i32 to index
      %c0_45 = arith.constant 0 : index
      %c0_46 = arith.constant 0 : index
      %63 = vector.load %arg1[%c0_44, %62, %c0_45, %c0_46] : memref<1x16x16x32xf32, #tpu.memory_space<vmem>>, vector<1x1x14x32xf32>
      %64 = vector.shape_cast %63 : vector<1x1x14x32xf32> to vector<14x32xf32>
      %c192 = arith.constant 192 : index
      %c0_47 = arith.constant 0 : index
      %65 = vector.load %arg2[%c192, %c0_47] : memref<288x64xf32, #tpu.memory_space<vmem>>, vector<32x64xf32>
      %cst_48 = arith.constant dense<0.000000e+00> : vector<14x64xf32>
      %66 = tpu.matmul %64, %65, %cst_48 {dimension_numbers = #tpu.dot_dimension_numbers<[1], [0], [0], [1], [0, 0, 1, 1], [], []>} : vector<14x32xf32>, vector<32x64xf32>, vector<14x64xf32> -> vector<14x64xf32>
      %67 = arith.addf %60, %66 : vector<14x64xf32>
      %c2_i32_49 = arith.constant 2 : i32
      %68 = arith.addi %17, %c2_i32_49 : i32
      %c0_50 = arith.constant 0 : index
      %69 = arith.index_cast %68 : i32 to index
      %c1_51 = arith.constant 1 : index
      %c0_52 = arith.constant 0 : index
      %70 = vector.load %arg1[%c0_50, %69, %c1_51, %c0_52] : memref<1x16x16x32xf32, #tpu.memory_space<vmem>>, vector<1x1x14x32xf32>
      %71 = vector.shape_cast %70 : vector<1x1x14x32xf32> to vector<14x32xf32>
      %c224 = arith.constant 224 : index
      %c0_53 = arith.constant 0 : index
      %72 = vector.load %arg2[%c224, %c0_53] : memref<288x64xf32, #tpu.memory_space<vmem>>, vector<32x64xf32>
      %cst_54 = arith.constant dense<0.000000e+00> : vector<14x64xf32>
      %73 = tpu.matmul %71, %72, %cst_54 {dimension_numbers = #tpu.dot_dimension_numbers<[1], [0], [0], [1], [0, 0, 1, 1], [], []>} : vector<14x32xf32>, vector<32x64xf32>, vector<14x64xf32> -> vector<14x64xf32>
      %74 = arith.addf %67, %73 : vector<14x64xf32>
      %c2_i32_55 = arith.constant 2 : i32
      %75 = arith.addi %17, %c2_i32_55 : i32
      %c0_56 = arith.constant 0 : index
      %76 = arith.index_cast %75 : i32 to index
      %c2_57 = arith.constant 2 : index
      %c0_58 = arith.constant 0 : index
      %77 = vector.load %arg1[%c0_56, %76, %c2_57, %c0_58] : memref<1x16x16x32xf32, #tpu.memory_space<vmem>>, vector<1x1x14x32xf32>
      %78 = vector.shape_cast %77 : vector<1x1x14x32xf32> to vector<14x32xf32>
      %c256 = arith.constant 256 : index
      %c0_59 = arith.constant 0 : index
      %79 = vector.load %arg2[%c256, %c0_59] : memref<288x64xf32, #tpu.memory_space<vmem>>, vector<32x64xf32>
      %cst_60 = arith.constant dense<0.000000e+00> : vector<14x64xf32>
      %80 = tpu.matmul %78, %79, %cst_60 {dimension_numbers = #tpu.dot_dimension_numbers<[1], [0], [0], [1], [0, 0, 1, 1], [], []>} : vector<14x32xf32>, vector<32x64xf32>, vector<14x64xf32> -> vector<14x64xf32>
      %81 = arith.addf %74, %80 : vector<14x64xf32>
      %c0_61 = arith.constant 0 : index
      %c0_62 = arith.constant 0 : index
      %82 = vector.load %arg3[%c0_61, %c0_62] : memref<1x64xf32, #tpu.memory_space<vmem>>, vector<1x64xf32>
      %83 = vector.broadcast %82 : vector<1x64xf32> to vector<14x64xf32>
      %84 = arith.addf %81, %83 : vector<14x64xf32>
      %cst_63 = arith.constant 0.000000e+00 : f32
      %85 = vector.broadcast %cst_63 : f32 to vector<14x64xf32>
      %86 = arith.maximumf %84, %85 : vector<14x64xf32>
      %c2_i32_64 = arith.constant 2 : i32
      %87 = arith.muli %c2_i32_64, %arg5 : i32
      %c1_i32_65 = arith.constant 1 : i32
      %88 = arith.addi %87, %c1_i32_65 : i32
      %cst_66 = arith.constant 0.000000e+00 : f32
      %89 = vector.broadcast %cst_66 : f32 to vector<14x64xf32>
      %c0_i32_67 = arith.constant 0 : i32
      %90 = arith.addi %88, %c0_i32_67 : i32
      %c0_68 = arith.constant 0 : index
      %91 = arith.index_cast %90 : i32 to index
      %c0_69 = arith.constant 0 : index
      %c0_70 = arith.constant 0 : index
      %92 = vector.load %arg1[%c0_68, %91, %c0_69, %c0_70] : memref<1x16x16x32xf32, #tpu.memory_space<vmem>>, vector<1x1x14x32xf32>
      %93 = vector.shape_cast %92 : vector<1x1x14x32xf32> to vector<14x32xf32>
      %c0_71 = arith.constant 0 : index
      %c0_72 = arith.constant 0 : index
      %94 = vector.load %arg2[%c0_71, %c0_72] : memref<288x64xf32, #tpu.memory_space<vmem>>, vector<32x64xf32>
      %cst_73 = arith.constant dense<0.000000e+00> : vector<14x64xf32>
      %95 = tpu.matmul %93, %94, %cst_73 {dimension_numbers = #tpu.dot_dimension_numbers<[1], [0], [0], [1], [0, 0, 1, 1], [], []>} : vector<14x32xf32>, vector<32x64xf32>, vector<14x64xf32> -> vector<14x64xf32>
      %96 = arith.addf %89, %95 : vector<14x64xf32>
      %c0_i32_74 = arith.constant 0 : i32
      %97 = arith.addi %88, %c0_i32_74 : i32
      %c0_75 = arith.constant 0 : index
      %98 = arith.index_cast %97 : i32 to index
      %c1_76 = arith.constant 1 : index
      %c0_77 = arith.constant 0 : index
      %99 = vector.load %arg1[%c0_75, %98, %c1_76, %c0_77] : memref<1x16x16x32xf32, #tpu.memory_space<vmem>>, vector<1x1x14x32xf32>
      %100 = vector.shape_cast %99 : vector<1x1x14x32xf32> to vector<14x32xf32>
      %c32_78 = arith.constant 32 : index
      %c0_79 = arith.constant 0 : index
      %101 = vector.load %arg2[%c32_78, %c0_79] : memref<288x64xf32, #tpu.memory_space<vmem>>, vector<32x64xf32>
      %cst_80 = arith.constant dense<0.000000e+00> : vector<14x64xf32>
      %102 = tpu.matmul %100, %101, %cst_80 {dimension_numbers = #tpu.dot_dimension_numbers<[1], [0], [0], [1], [0, 0, 1, 1], [], []>} : vector<14x32xf32>, vector<32x64xf32>, vector<14x64xf32> -> vector<14x64xf32>
      %103 = arith.addf %96, %102 : vector<14x64xf32>
      %c0_i32_81 = arith.constant 0 : i32
      %104 = arith.addi %88, %c0_i32_81 : i32
      %c0_82 = arith.constant 0 : index
      %105 = arith.index_cast %104 : i32 to index
      %c2_83 = arith.constant 2 : index
      %c0_84 = arith.constant 0 : index
      %106 = vector.load %arg1[%c0_82, %105, %c2_83, %c0_84] : memref<1x16x16x32xf32, #tpu.memory_space<vmem>>, vector<1x1x14x32xf32>
      %107 = vector.shape_cast %106 : vector<1x1x14x32xf32> to vector<14x32xf32>
      %c64_85 = arith.constant 64 : index
      %c0_86 = arith.constant 0 : index
      %108 = vector.load %arg2[%c64_85, %c0_86] : memref<288x64xf32, #tpu.memory_space<vmem>>, vector<32x64xf32>
      %cst_87 = arith.constant dense<0.000000e+00> : vector<14x64xf32>
      %109 = tpu.matmul %107, %108, %cst_87 {dimension_numbers = #tpu.dot_dimension_numbers<[1], [0], [0], [1], [0, 0, 1, 1], [], []>} : vector<14x32xf32>, vector<32x64xf32>, vector<14x64xf32> -> vector<14x64xf32>
      %110 = arith.addf %103, %109 : vector<14x64xf32>
      %c1_i32_88 = arith.constant 1 : i32
      %111 = arith.addi %88, %c1_i32_88 : i32
      %c0_89 = arith.constant 0 : index
      %112 = arith.index_cast %111 : i32 to index
      %c0_90 = arith.constant 0 : index
      %c0_91 = arith.constant 0 : index
      %113 = vector.load %arg1[%c0_89, %112, %c0_90, %c0_91] : memref<1x16x16x32xf32, #tpu.memory_space<vmem>>, vector<1x1x14x32xf32>
      %114 = vector.shape_cast %113 : vector<1x1x14x32xf32> to vector<14x32xf32>
      %c96_92 = arith.constant 96 : index
      %c0_93 = arith.constant 0 : index
      %115 = vector.load %arg2[%c96_92, %c0_93] : memref<288x64xf32, #tpu.memory_space<vmem>>, vector<32x64xf32>
      %cst_94 = arith.constant dense<0.000000e+00> : vector<14x64xf32>
      %116 = tpu.matmul %114, %115, %cst_94 {dimension_numbers = #tpu.dot_dimension_numbers<[1], [0], [0], [1], [0, 0, 1, 1], [], []>} : vector<14x32xf32>, vector<32x64xf32>, vector<14x64xf32> -> vector<14x64xf32>
      %117 = arith.addf %110, %116 : vector<14x64xf32>
      %c1_i32_95 = arith.constant 1 : i32
      %118 = arith.addi %88, %c1_i32_95 : i32
      %c0_96 = arith.constant 0 : index
      %119 = arith.index_cast %118 : i32 to index
      %c1_97 = arith.constant 1 : index
      %c0_98 = arith.constant 0 : index
      %120 = vector.load %arg1[%c0_96, %119, %c1_97, %c0_98] : memref<1x16x16x32xf32, #tpu.memory_space<vmem>>, vector<1x1x14x32xf32>
      %121 = vector.shape_cast %120 : vector<1x1x14x32xf32> to vector<14x32xf32>
      %c128_99 = arith.constant 128 : index
      %c0_100 = arith.constant 0 : index
      %122 = vector.load %arg2[%c128_99, %c0_100] : memref<288x64xf32, #tpu.memory_space<vmem>>, vector<32x64xf32>
      %cst_101 = arith.constant dense<0.000000e+00> : vector<14x64xf32>
      %123 = tpu.matmul %121, %122, %cst_101 {dimension_numbers = #tpu.dot_dimension_numbers<[1], [0], [0], [1], [0, 0, 1, 1], [], []>} : vector<14x32xf32>, vector<32x64xf32>, vector<14x64xf32> -> vector<14x64xf32>
      %124 = arith.addf %117, %123 : vector<14x64xf32>
      %c1_i32_102 = arith.constant 1 : i32
      %125 = arith.addi %88, %c1_i32_102 : i32
      %c0_103 = arith.constant 0 : index
      %126 = arith.index_cast %125 : i32 to index
      %c2_104 = arith.constant 2 : index
      %c0_105 = arith.constant 0 : index
      %127 = vector.load %arg1[%c0_103, %126, %c2_104, %c0_105] : memref<1x16x16x32xf32, #tpu.memory_space<vmem>>, vector<1x1x14x32xf32>
      %128 = vector.shape_cast %127 : vector<1x1x14x32xf32> to vector<14x32xf32>
      %c160_106 = arith.constant 160 : index
      %c0_107 = arith.constant 0 : index
      %129 = vector.load %arg2[%c160_106, %c0_107] : memref<288x64xf32, #tpu.memory_space<vmem>>, vector<32x64xf32>
      %cst_108 = arith.constant dense<0.000000e+00> : vector<14x64xf32>
      %130 = tpu.matmul %128, %129, %cst_108 {dimension_numbers = #tpu.dot_dimension_numbers<[1], [0], [0], [1], [0, 0, 1, 1], [], []>} : vector<14x32xf32>, vector<32x64xf32>, vector<14x64xf32> -> vector<14x64xf32>
      %131 = arith.addf %124, %130 : vector<14x64xf32>
      %c2_i32_109 = arith.constant 2 : i32
      %132 = arith.addi %88, %c2_i32_109 : i32
      %c0_110 = arith.constant 0 : index
      %133 = arith.index_cast %132 : i32 to index
      %c0_111 = arith.constant 0 : index
      %c0_112 = arith.constant 0 : index
      %134 = vector.load %arg1[%c0_110, %133, %c0_111, %c0_112] : memref<1x16x16x32xf32, #tpu.memory_space<vmem>>, vector<1x1x14x32xf32>
      %135 = vector.shape_cast %134 : vector<1x1x14x32xf32> to vector<14x32xf32>
      %c192_113 = arith.constant 192 : index
      %c0_114 = arith.constant 0 : index
      %136 = vector.load %arg2[%c192_113, %c0_114] : memref<288x64xf32, #tpu.memory_space<vmem>>, vector<32x64xf32>
      %cst_115 = arith.constant dense<0.000000e+00> : vector<14x64xf32>
      %137 = tpu.matmul %135, %136, %cst_115 {dimension_numbers = #tpu.dot_dimension_numbers<[1], [0], [0], [1], [0, 0, 1, 1], [], []>} : vector<14x32xf32>, vector<32x64xf32>, vector<14x64xf32> -> vector<14x64xf32>
      %138 = arith.addf %131, %137 : vector<14x64xf32>
      %c2_i32_116 = arith.constant 2 : i32
      %139 = arith.addi %88, %c2_i32_116 : i32
      %c0_117 = arith.constant 0 : index
      %140 = arith.index_cast %139 : i32 to index
      %c1_118 = arith.constant 1 : index
      %c0_119 = arith.constant 0 : index
      %141 = vector.load %arg1[%c0_117, %140, %c1_118, %c0_119] : memref<1x16x16x32xf32, #tpu.memory_space<vmem>>, vector<1x1x14x32xf32>
      %142 = vector.shape_cast %141 : vector<1x1x14x32xf32> to vector<14x32xf32>
      %c224_120 = arith.constant 224 : index
      %c0_121 = arith.constant 0 : index
      %143 = vector.load %arg2[%c224_120, %c0_121] : memref<288x64xf32, #tpu.memory_space<vmem>>, vector<32x64xf32>
      %cst_122 = arith.constant dense<0.000000e+00> : vector<14x64xf32>
      %144 = tpu.matmul %142, %143, %cst_122 {dimension_numbers = #tpu.dot_dimension_numbers<[1], [0], [0], [1], [0, 0, 1, 1], [], []>} : vector<14x32xf32>, vector<32x64xf32>, vector<14x64xf32> -> vector<14x64xf32>
      %145 = arith.addf %138, %144 : vector<14x64xf32>
      %c2_i32_123 = arith.constant 2 : i32
      %146 = arith.addi %88, %c2_i32_123 : i32
      %c0_124 = arith.constant 0 : index
      %147 = arith.index_cast %146 : i32 to index
      %c2_125 = arith.constant 2 : index
      %c0_126 = arith.constant 0 : index
      %148 = vector.load %arg1[%c0_124, %147, %c2_125, %c0_126] : memref<1x16x16x32xf32, #tpu.memory_space<vmem>>, vector<1x1x14x32xf32>
      %149 = vector.shape_cast %148 : vector<1x1x14x32xf32> to vector<14x32xf32>
      %c256_127 = arith.constant 256 : index
      %c0_128 = arith.constant 0 : index
      %150 = vector.load %arg2[%c256_127, %c0_128] : memref<288x64xf32, #tpu.memory_space<vmem>>, vector<32x64xf32>
      %cst_129 = arith.constant dense<0.000000e+00> : vector<14x64xf32>
      %151 = tpu.matmul %149, %150, %cst_129 {dimension_numbers = #tpu.dot_dimension_numbers<[1], [0], [0], [1], [0, 0, 1, 1], [], []>} : vector<14x32xf32>, vector<32x64xf32>, vector<14x64xf32> -> vector<14x64xf32>
      %152 = arith.addf %145, %151 : vector<14x64xf32>
      %c0_130 = arith.constant 0 : index
      %c0_131 = arith.constant 0 : index
      %153 = vector.load %arg3[%c0_130, %c0_131] : memref<1x64xf32, #tpu.memory_space<vmem>>, vector<1x64xf32>
      %154 = vector.broadcast %153 : vector<1x64xf32> to vector<14x64xf32>
      %155 = arith.addf %152, %154 : vector<14x64xf32>
      %cst_132 = arith.constant 0.000000e+00 : f32
      %156 = vector.broadcast %cst_132 : f32 to vector<14x64xf32>
      %157 = arith.maximumf %155, %156 : vector<14x64xf32>
      %158 = arith.maximumf %86, %157 : vector<14x64xf32>
      %cst_133 = arith.constant dense<0.000000e+00> : vector<7x64xf32>
      %159 = tpu.matmul %8, %158, %cst_133 {dimension_numbers = #tpu.dot_dimension_numbers<[1], [0], [0], [1], [0, 0, 1, 1], [], []>} : vector<7x14xf32>, vector<14x64xf32>, vector<7x64xf32> -> vector<7x64xf32>
      %cst_134 = arith.constant dense<0.000000e+00> : vector<7x64xf32>
      %160 = tpu.matmul %15, %158, %cst_134 {dimension_numbers = #tpu.dot_dimension_numbers<[1], [0], [0], [1], [0, 0, 1, 1], [], []>} : vector<7x14xf32>, vector<14x64xf32>, vector<7x64xf32> -> vector<7x64xf32>
      %161 = arith.maximumf %159, %160 : vector<7x64xf32>
      %c1_i32_135 = arith.constant 1 : i32
      %162 = arith.addi %c1_i32_135, %arg5 : i32
      %c0_136 = arith.constant 0 : index
      %163 = arith.index_cast %162 : i32 to index
      %c1_137 = arith.constant 1 : index
      %c0_138 = arith.constant 0 : index
      %164 = vector.load %arg4[%c0_136, %163, %c1_137, %c0_138] : memref<1x9x9x64xf32, #tpu.memory_space<vmem>>, vector<1x1x7x64xf32>
      %165 = vector.shape_cast %164 : vector<1x1x7x64xf32> to vector<7x64xf32>
      %166 = vector.shape_cast %161 : vector<7x64xf32> to vector<1x1x7x64xf32>
      tpu.vector_store %arg4[%c0_136, %163, %c1_137, %c0_138], %166 {strides = array<i32>} : memref<1x9x9x64xf32, #tpu.memory_space<vmem>>, vector<1x1x7x64xf32>,
    }
    %c7_i32_5 = arith.constant 7 : i32
    return
  }
  func.func @transform_0(%arg0: i32) -> (i32, i32, i32, i32) {
    %c0_i32 = arith.constant 0 : i32
    %c0_i32_0 = arith.constant 0 : i32
    %c0_i32_1 = arith.constant 0 : i32
    %c0_i32_2 = arith.constant 0 : i32
    return %arg0, %c0_i32, %c0_i32_0, %c0_i32_1 : i32, i32, i32, i32
  }
  func.func @transform_1(%arg0: i32) -> (i32, i32) {
    %c0_i32 = arith.constant 0 : i32
    %c0_i32_0 = arith.constant 0 : i32
    %c0_i32_1 = arith.constant 0 : i32
    return %c0_i32, %c0_i32_0 : i32, i32
  }
  func.func @transform_2(%arg0: i32) -> (i32, i32) {
    %c0_i32 = arith.constant 0 : i32
    %c0_i32_0 = arith.constant 0 : i32
    %c0_i32_1 = arith.constant 0 : i32
    return %c0_i32, %c0_i32_0 : i32, i32
  }
  func.func @transform_3(%arg0: i32) -> (i32, i32, i32, i32) {
    %c0_i32 = arith.constant 0 : i32
    %c0_i32_0 = arith.constant 0 : i32
    %c0_i32_1 = arith.constant 0 : i32
    %c0_i32_2 = arith.constant 0 : i32
    return %arg0, %c0_i32, %c0_i32_0, %c0_i32_1 : i32, i32, i32, i32
  }
}

module attributes {stable_mosaic.version = 11 : i64} {
  func.func @_conv_relu_pool_kernel(%arg0: i32, %arg1: memref<1x9x9x64xf32, #tpu.memory_space<vmem>>, %arg2: memref<576x64xf32, #tpu.memory_space<vmem>>, %arg3: memref<1x64xf32, #tpu.memory_space<vmem>>, %arg4: memref<1x3x3x64xf32, #tpu.memory_space<vmem>>) attributes {dimension_semantics = [#tpu.dimension_semantics<parallel>], iteration_bounds = array<i64: 2>, scalar_prefetch = 0 : i64, scratch_operands = 0 : i64, tpu.core_type = #tpu.core_type<tc>, window_params = [{transform_indices = @transform_0, window_bounds = array<i64: 1, 9, 9, 64>}, {pipeline_mode = #tpu.pipeline_mode<synchronous>, transform_indices = @transform_1, window_bounds = array<i64: 576, 64>}, {pipeline_mode = #tpu.pipeline_mode<synchronous>, transform_indices = @transform_2, window_bounds = array<i64: 1, 64>}, {transform_indices = @transform_3, window_bounds = array<i64: 1, 3, 3, 64>}]} {
    %0 = tpu.iota {dimensions = array<i32: 0>} : vector<3x7xi32>
    %1 = tpu.iota {dimensions = array<i32: 1>} : vector<3x7xi32>
    %c2_i32 = arith.constant 2 : i32
    %2 = vector.broadcast %c2_i32 : i32 to vector<3x7xi32>
    %3 = arith.muli %2, %0 : vector<3x7xi32>
    %4 = arith.cmpi eq, %1, %3 : vector<3x7xi32>
    %5 = arith.extui %4 : vector<3x7xi1> to vector<3x7xi32>
    %6 = arith.sitofp %5 : vector<3x7xi32> to vector<3x7xf32>
    %c2_i32_0 = arith.constant 2 : i32
    %7 = vector.broadcast %c2_i32_0 : i32 to vector<3x7xi32>
    %8 = arith.muli %7, %0 : vector<3x7xi32>
    %c1_i32 = arith.constant 1 : i32
    %9 = vector.broadcast %c1_i32 : i32 to vector<3x7xi32>
    %10 = arith.addi %8, %9 : vector<3x7xi32>
    %11 = arith.cmpi eq, %1, %10 : vector<3x7xi32>
    %12 = arith.extui %11 : vector<3x7xi1> to vector<3x7xi32>
    %13 = arith.sitofp %12 : vector<3x7xi32> to vector<3x7xf32>
    %c0_i32 = arith.constant 0 : i32
    %c3_i32 = arith.constant 3 : i32
    %14 = arith.addi %c0_i32, %c3_i32 : i32
    %c1_i32_1 = arith.constant 1 : i32
    scf.for %arg5 = %c0_i32 to %14 step %c1_i32_1  : i32 {
      %c2_i32_3 = arith.constant 2 : i32
      %15 = arith.muli %c2_i32_3, %arg5 : i32
      %cst = arith.constant 0.000000e+00 : f32
      %16 = vector.broadcast %cst : f32 to vector<7x64xf32>
      %c0_i32_4 = arith.constant 0 : i32
      %17 = arith.addi %15, %c0_i32_4 : i32
      %c0 = arith.constant 0 : index
      %18 = arith.index_cast %17 : i32 to index
      %c0_5 = arith.constant 0 : index
      %c0_6 = arith.constant 0 : index
      %19 = vector.load %arg1[%c0, %18, %c0_5, %c0_6] : memref<1x9x9x64xf32, #tpu.memory_space<vmem>>, vector<1x1x7x64xf32>
      %20 = vector.shape_cast %19 : vector<1x1x7x64xf32> to vector<7x64xf32>
      %c0_7 = arith.constant 0 : index
      %c0_8 = arith.constant 0 : index
      %21 = vector.load %arg2[%c0_7, %c0_8] : memref<576x64xf32, #tpu.memory_space<vmem>>, vector<64x64xf32>
      %cst_9 = arith.constant dense<0.000000e+00> : vector<7x64xf32>
      %22 = tpu.matmul %20, %21, %cst_9 {dimension_numbers = #tpu.dot_dimension_numbers<[1], [0], [0], [1], [0, 0, 1, 1], [], []>} : vector<7x64xf32>, vector<64x64xf32>, vector<7x64xf32> -> vector<7x64xf32>
      %23 = arith.addf %16, %22 : vector<7x64xf32>
      %c0_i32_10 = arith.constant 0 : i32
      %24 = arith.addi %15, %c0_i32_10 : i32
      %c0_11 = arith.constant 0 : index
      %25 = arith.index_cast %24 : i32 to index
      %c1 = arith.constant 1 : index
      %c0_12 = arith.constant 0 : index
      %26 = vector.load %arg1[%c0_11, %25, %c1, %c0_12] : memref<1x9x9x64xf32, #tpu.memory_space<vmem>>, vector<1x1x7x64xf32>
      %27 = vector.shape_cast %26 : vector<1x1x7x64xf32> to vector<7x64xf32>
      %c64 = arith.constant 64 : index
      %c0_13 = arith.constant 0 : index
      %28 = vector.load %arg2[%c64, %c0_13] : memref<576x64xf32, #tpu.memory_space<vmem>>, vector<64x64xf32>
      %cst_14 = arith.constant dense<0.000000e+00> : vector<7x64xf32>
      %29 = tpu.matmul %27, %28, %cst_14 {dimension_numbers = #tpu.dot_dimension_numbers<[1], [0], [0], [1], [0, 0, 1, 1], [], []>} : vector<7x64xf32>, vector<64x64xf32>, vector<7x64xf32> -> vector<7x64xf32>
      %30 = arith.addf %23, %29 : vector<7x64xf32>
      %c0_i32_15 = arith.constant 0 : i32
      %31 = arith.addi %15, %c0_i32_15 : i32
      %c0_16 = arith.constant 0 : index
      %32 = arith.index_cast %31 : i32 to index
      %c2 = arith.constant 2 : index
      %c0_17 = arith.constant 0 : index
      %33 = vector.load %arg1[%c0_16, %32, %c2, %c0_17] : memref<1x9x9x64xf32, #tpu.memory_space<vmem>>, vector<1x1x7x64xf32>
      %34 = vector.shape_cast %33 : vector<1x1x7x64xf32> to vector<7x64xf32>
      %c128 = arith.constant 128 : index
      %c0_18 = arith.constant 0 : index
      %35 = vector.load %arg2[%c128, %c0_18] : memref<576x64xf32, #tpu.memory_space<vmem>>, vector<64x64xf32>
      %cst_19 = arith.constant dense<0.000000e+00> : vector<7x64xf32>
      %36 = tpu.matmul %34, %35, %cst_19 {dimension_numbers = #tpu.dot_dimension_numbers<[1], [0], [0], [1], [0, 0, 1, 1], [], []>} : vector<7x64xf32>, vector<64x64xf32>, vector<7x64xf32> -> vector<7x64xf32>
      %37 = arith.addf %30, %36 : vector<7x64xf32>
      %c1_i32_20 = arith.constant 1 : i32
      %38 = arith.addi %15, %c1_i32_20 : i32
      %c0_21 = arith.constant 0 : index
      %39 = arith.index_cast %38 : i32 to index
      %c0_22 = arith.constant 0 : index
      %c0_23 = arith.constant 0 : index
      %40 = vector.load %arg1[%c0_21, %39, %c0_22, %c0_23] : memref<1x9x9x64xf32, #tpu.memory_space<vmem>>, vector<1x1x7x64xf32>
      %41 = vector.shape_cast %40 : vector<1x1x7x64xf32> to vector<7x64xf32>
      %c192 = arith.constant 192 : index
      %c0_24 = arith.constant 0 : index
      %42 = vector.load %arg2[%c192, %c0_24] : memref<576x64xf32, #tpu.memory_space<vmem>>, vector<64x64xf32>
      %cst_25 = arith.constant dense<0.000000e+00> : vector<7x64xf32>
      %43 = tpu.matmul %41, %42, %cst_25 {dimension_numbers = #tpu.dot_dimension_numbers<[1], [0], [0], [1], [0, 0, 1, 1], [], []>} : vector<7x64xf32>, vector<64x64xf32>, vector<7x64xf32> -> vector<7x64xf32>
      %44 = arith.addf %37, %43 : vector<7x64xf32>
      %c1_i32_26 = arith.constant 1 : i32
      %45 = arith.addi %15, %c1_i32_26 : i32
      %c0_27 = arith.constant 0 : index
      %46 = arith.index_cast %45 : i32 to index
      %c1_28 = arith.constant 1 : index
      %c0_29 = arith.constant 0 : index
      %47 = vector.load %arg1[%c0_27, %46, %c1_28, %c0_29] : memref<1x9x9x64xf32, #tpu.memory_space<vmem>>, vector<1x1x7x64xf32>
      %48 = vector.shape_cast %47 : vector<1x1x7x64xf32> to vector<7x64xf32>
      %c256 = arith.constant 256 : index
      %c0_30 = arith.constant 0 : index
      %49 = vector.load %arg2[%c256, %c0_30] : memref<576x64xf32, #tpu.memory_space<vmem>>, vector<64x64xf32>
      %cst_31 = arith.constant dense<0.000000e+00> : vector<7x64xf32>
      %50 = tpu.matmul %48, %49, %cst_31 {dimension_numbers = #tpu.dot_dimension_numbers<[1], [0], [0], [1], [0, 0, 1, 1], [], []>} : vector<7x64xf32>, vector<64x64xf32>, vector<7x64xf32> -> vector<7x64xf32>
      %51 = arith.addf %44, %50 : vector<7x64xf32>
      %c1_i32_32 = arith.constant 1 : i32
      %52 = arith.addi %15, %c1_i32_32 : i32
      %c0_33 = arith.constant 0 : index
      %53 = arith.index_cast %52 : i32 to index
      %c2_34 = arith.constant 2 : index
      %c0_35 = arith.constant 0 : index
      %54 = vector.load %arg1[%c0_33, %53, %c2_34, %c0_35] : memref<1x9x9x64xf32, #tpu.memory_space<vmem>>, vector<1x1x7x64xf32>
      %55 = vector.shape_cast %54 : vector<1x1x7x64xf32> to vector<7x64xf32>
      %c320 = arith.constant 320 : index
      %c0_36 = arith.constant 0 : index
      %56 = vector.load %arg2[%c320, %c0_36] : memref<576x64xf32, #tpu.memory_space<vmem>>, vector<64x64xf32>
      %cst_37 = arith.constant dense<0.000000e+00> : vector<7x64xf32>
      %57 = tpu.matmul %55, %56, %cst_37 {dimension_numbers = #tpu.dot_dimension_numbers<[1], [0], [0], [1], [0, 0, 1, 1], [], []>} : vector<7x64xf32>, vector<64x64xf32>, vector<7x64xf32> -> vector<7x64xf32>
      %58 = arith.addf %51, %57 : vector<7x64xf32>
      %c2_i32_38 = arith.constant 2 : i32
      %59 = arith.addi %15, %c2_i32_38 : i32
      %c0_39 = arith.constant 0 : index
      %60 = arith.index_cast %59 : i32 to index
      %c0_40 = arith.constant 0 : index
      %c0_41 = arith.constant 0 : index
      %61 = vector.load %arg1[%c0_39, %60, %c0_40, %c0_41] : memref<1x9x9x64xf32, #tpu.memory_space<vmem>>, vector<1x1x7x64xf32>
      %62 = vector.shape_cast %61 : vector<1x1x7x64xf32> to vector<7x64xf32>
      %c384 = arith.constant 384 : index
      %c0_42 = arith.constant 0 : index
      %63 = vector.load %arg2[%c384, %c0_42] : memref<576x64xf32, #tpu.memory_space<vmem>>, vector<64x64xf32>
      %cst_43 = arith.constant dense<0.000000e+00> : vector<7x64xf32>
      %64 = tpu.matmul %62, %63, %cst_43 {dimension_numbers = #tpu.dot_dimension_numbers<[1], [0], [0], [1], [0, 0, 1, 1], [], []>} : vector<7x64xf32>, vector<64x64xf32>, vector<7x64xf32> -> vector<7x64xf32>
      %65 = arith.addf %58, %64 : vector<7x64xf32>
      %c2_i32_44 = arith.constant 2 : i32
      %66 = arith.addi %15, %c2_i32_44 : i32
      %c0_45 = arith.constant 0 : index
      %67 = arith.index_cast %66 : i32 to index
      %c1_46 = arith.constant 1 : index
      %c0_47 = arith.constant 0 : index
      %68 = vector.load %arg1[%c0_45, %67, %c1_46, %c0_47] : memref<1x9x9x64xf32, #tpu.memory_space<vmem>>, vector<1x1x7x64xf32>
      %69 = vector.shape_cast %68 : vector<1x1x7x64xf32> to vector<7x64xf32>
      %c448 = arith.constant 448 : index
      %c0_48 = arith.constant 0 : index
      %70 = vector.load %arg2[%c448, %c0_48] : memref<576x64xf32, #tpu.memory_space<vmem>>, vector<64x64xf32>
      %cst_49 = arith.constant dense<0.000000e+00> : vector<7x64xf32>
      %71 = tpu.matmul %69, %70, %cst_49 {dimension_numbers = #tpu.dot_dimension_numbers<[1], [0], [0], [1], [0, 0, 1, 1], [], []>} : vector<7x64xf32>, vector<64x64xf32>, vector<7x64xf32> -> vector<7x64xf32>
      %72 = arith.addf %65, %71 : vector<7x64xf32>
      %c2_i32_50 = arith.constant 2 : i32
      %73 = arith.addi %15, %c2_i32_50 : i32
      %c0_51 = arith.constant 0 : index
      %74 = arith.index_cast %73 : i32 to index
      %c2_52 = arith.constant 2 : index
      %c0_53 = arith.constant 0 : index
      %75 = vector.load %arg1[%c0_51, %74, %c2_52, %c0_53] : memref<1x9x9x64xf32, #tpu.memory_space<vmem>>, vector<1x1x7x64xf32>
      %76 = vector.shape_cast %75 : vector<1x1x7x64xf32> to vector<7x64xf32>
      %c512 = arith.constant 512 : index
      %c0_54 = arith.constant 0 : index
      %77 = vector.load %arg2[%c512, %c0_54] : memref<576x64xf32, #tpu.memory_space<vmem>>, vector<64x64xf32>
      %cst_55 = arith.constant dense<0.000000e+00> : vector<7x64xf32>
      %78 = tpu.matmul %76, %77, %cst_55 {dimension_numbers = #tpu.dot_dimension_numbers<[1], [0], [0], [1], [0, 0, 1, 1], [], []>} : vector<7x64xf32>, vector<64x64xf32>, vector<7x64xf32> -> vector<7x64xf32>
      %79 = arith.addf %72, %78 : vector<7x64xf32>
      %c0_56 = arith.constant 0 : index
      %c0_57 = arith.constant 0 : index
      %80 = vector.load %arg3[%c0_56, %c0_57] : memref<1x64xf32, #tpu.memory_space<vmem>>, vector<1x64xf32>
      %81 = vector.broadcast %80 : vector<1x64xf32> to vector<7x64xf32>
      %82 = arith.addf %79, %81 : vector<7x64xf32>
      %cst_58 = arith.constant 0.000000e+00 : f32
      %83 = vector.broadcast %cst_58 : f32 to vector<7x64xf32>
      %84 = arith.maximumf %82, %83 : vector<7x64xf32>
      %c2_i32_59 = arith.constant 2 : i32
      %85 = arith.muli %c2_i32_59, %arg5 : i32
      %c1_i32_60 = arith.constant 1 : i32
      %86 = arith.addi %85, %c1_i32_60 : i32
      %cst_61 = arith.constant 0.000000e+00 : f32
      %87 = vector.broadcast %cst_61 : f32 to vector<7x64xf32>
      %c0_i32_62 = arith.constant 0 : i32
      %88 = arith.addi %86, %c0_i32_62 : i32
      %c0_63 = arith.constant 0 : index
      %89 = arith.index_cast %88 : i32 to index
      %c0_64 = arith.constant 0 : index
      %c0_65 = arith.constant 0 : index
      %90 = vector.load %arg1[%c0_63, %89, %c0_64, %c0_65] : memref<1x9x9x64xf32, #tpu.memory_space<vmem>>, vector<1x1x7x64xf32>
      %91 = vector.shape_cast %90 : vector<1x1x7x64xf32> to vector<7x64xf32>
      %c0_66 = arith.constant 0 : index
      %c0_67 = arith.constant 0 : index
      %92 = vector.load %arg2[%c0_66, %c0_67] : memref<576x64xf32, #tpu.memory_space<vmem>>, vector<64x64xf32>
      %cst_68 = arith.constant dense<0.000000e+00> : vector<7x64xf32>
      %93 = tpu.matmul %91, %92, %cst_68 {dimension_numbers = #tpu.dot_dimension_numbers<[1], [0], [0], [1], [0, 0, 1, 1], [], []>} : vector<7x64xf32>, vector<64x64xf32>, vector<7x64xf32> -> vector<7x64xf32>
      %94 = arith.addf %87, %93 : vector<7x64xf32>
      %c0_i32_69 = arith.constant 0 : i32
      %95 = arith.addi %86, %c0_i32_69 : i32
      %c0_70 = arith.constant 0 : index
      %96 = arith.index_cast %95 : i32 to index
      %c1_71 = arith.constant 1 : index
      %c0_72 = arith.constant 0 : index
      %97 = vector.load %arg1[%c0_70, %96, %c1_71, %c0_72] : memref<1x9x9x64xf32, #tpu.memory_space<vmem>>, vector<1x1x7x64xf32>
      %98 = vector.shape_cast %97 : vector<1x1x7x64xf32> to vector<7x64xf32>
      %c64_73 = arith.constant 64 : index
      %c0_74 = arith.constant 0 : index
      %99 = vector.load %arg2[%c64_73, %c0_74] : memref<576x64xf32, #tpu.memory_space<vmem>>, vector<64x64xf32>
      %cst_75 = arith.constant dense<0.000000e+00> : vector<7x64xf32>
      %100 = tpu.matmul %98, %99, %cst_75 {dimension_numbers = #tpu.dot_dimension_numbers<[1], [0], [0], [1], [0, 0, 1, 1], [], []>} : vector<7x64xf32>, vector<64x64xf32>, vector<7x64xf32> -> vector<7x64xf32>
      %101 = arith.addf %94, %100 : vector<7x64xf32>
      %c0_i32_76 = arith.constant 0 : i32
      %102 = arith.addi %86, %c0_i32_76 : i32
      %c0_77 = arith.constant 0 : index
      %103 = arith.index_cast %102 : i32 to index
      %c2_78 = arith.constant 2 : index
      %c0_79 = arith.constant 0 : index
      %104 = vector.load %arg1[%c0_77, %103, %c2_78, %c0_79] : memref<1x9x9x64xf32, #tpu.memory_space<vmem>>, vector<1x1x7x64xf32>
      %105 = vector.shape_cast %104 : vector<1x1x7x64xf32> to vector<7x64xf32>
      %c128_80 = arith.constant 128 : index
      %c0_81 = arith.constant 0 : index
      %106 = vector.load %arg2[%c128_80, %c0_81] : memref<576x64xf32, #tpu.memory_space<vmem>>, vector<64x64xf32>
      %cst_82 = arith.constant dense<0.000000e+00> : vector<7x64xf32>
      %107 = tpu.matmul %105, %106, %cst_82 {dimension_numbers = #tpu.dot_dimension_numbers<[1], [0], [0], [1], [0, 0, 1, 1], [], []>} : vector<7x64xf32>, vector<64x64xf32>, vector<7x64xf32> -> vector<7x64xf32>
      %108 = arith.addf %101, %107 : vector<7x64xf32>
      %c1_i32_83 = arith.constant 1 : i32
      %109 = arith.addi %86, %c1_i32_83 : i32
      %c0_84 = arith.constant 0 : index
      %110 = arith.index_cast %109 : i32 to index
      %c0_85 = arith.constant 0 : index
      %c0_86 = arith.constant 0 : index
      %111 = vector.load %arg1[%c0_84, %110, %c0_85, %c0_86] : memref<1x9x9x64xf32, #tpu.memory_space<vmem>>, vector<1x1x7x64xf32>
      %112 = vector.shape_cast %111 : vector<1x1x7x64xf32> to vector<7x64xf32>
      %c192_87 = arith.constant 192 : index
      %c0_88 = arith.constant 0 : index
      %113 = vector.load %arg2[%c192_87, %c0_88] : memref<576x64xf32, #tpu.memory_space<vmem>>, vector<64x64xf32>
      %cst_89 = arith.constant dense<0.000000e+00> : vector<7x64xf32>
      %114 = tpu.matmul %112, %113, %cst_89 {dimension_numbers = #tpu.dot_dimension_numbers<[1], [0], [0], [1], [0, 0, 1, 1], [], []>} : vector<7x64xf32>, vector<64x64xf32>, vector<7x64xf32> -> vector<7x64xf32>
      %115 = arith.addf %108, %114 : vector<7x64xf32>
      %c1_i32_90 = arith.constant 1 : i32
      %116 = arith.addi %86, %c1_i32_90 : i32
      %c0_91 = arith.constant 0 : index
      %117 = arith.index_cast %116 : i32 to index
      %c1_92 = arith.constant 1 : index
      %c0_93 = arith.constant 0 : index
      %118 = vector.load %arg1[%c0_91, %117, %c1_92, %c0_93] : memref<1x9x9x64xf32, #tpu.memory_space<vmem>>, vector<1x1x7x64xf32>
      %119 = vector.shape_cast %118 : vector<1x1x7x64xf32> to vector<7x64xf32>
      %c256_94 = arith.constant 256 : index
      %c0_95 = arith.constant 0 : index
      %120 = vector.load %arg2[%c256_94, %c0_95] : memref<576x64xf32, #tpu.memory_space<vmem>>, vector<64x64xf32>
      %cst_96 = arith.constant dense<0.000000e+00> : vector<7x64xf32>
      %121 = tpu.matmul %119, %120, %cst_96 {dimension_numbers = #tpu.dot_dimension_numbers<[1], [0], [0], [1], [0, 0, 1, 1], [], []>} : vector<7x64xf32>, vector<64x64xf32>, vector<7x64xf32> -> vector<7x64xf32>
      %122 = arith.addf %115, %121 : vector<7x64xf32>
      %c1_i32_97 = arith.constant 1 : i32
      %123 = arith.addi %86, %c1_i32_97 : i32
      %c0_98 = arith.constant 0 : index
      %124 = arith.index_cast %123 : i32 to index
      %c2_99 = arith.constant 2 : index
      %c0_100 = arith.constant 0 : index
      %125 = vector.load %arg1[%c0_98, %124, %c2_99, %c0_100] : memref<1x9x9x64xf32, #tpu.memory_space<vmem>>, vector<1x1x7x64xf32>
      %126 = vector.shape_cast %125 : vector<1x1x7x64xf32> to vector<7x64xf32>
      %c320_101 = arith.constant 320 : index
      %c0_102 = arith.constant 0 : index
      %127 = vector.load %arg2[%c320_101, %c0_102] : memref<576x64xf32, #tpu.memory_space<vmem>>, vector<64x64xf32>
      %cst_103 = arith.constant dense<0.000000e+00> : vector<7x64xf32>
      %128 = tpu.matmul %126, %127, %cst_103 {dimension_numbers = #tpu.dot_dimension_numbers<[1], [0], [0], [1], [0, 0, 1, 1], [], []>} : vector<7x64xf32>, vector<64x64xf32>, vector<7x64xf32> -> vector<7x64xf32>
      %129 = arith.addf %122, %128 : vector<7x64xf32>
      %c2_i32_104 = arith.constant 2 : i32
      %130 = arith.addi %86, %c2_i32_104 : i32
      %c0_105 = arith.constant 0 : index
      %131 = arith.index_cast %130 : i32 to index
      %c0_106 = arith.constant 0 : index
      %c0_107 = arith.constant 0 : index
      %132 = vector.load %arg1[%c0_105, %131, %c0_106, %c0_107] : memref<1x9x9x64xf32, #tpu.memory_space<vmem>>, vector<1x1x7x64xf32>
      %133 = vector.shape_cast %132 : vector<1x1x7x64xf32> to vector<7x64xf32>
      %c384_108 = arith.constant 384 : index
      %c0_109 = arith.constant 0 : index
      %134 = vector.load %arg2[%c384_108, %c0_109] : memref<576x64xf32, #tpu.memory_space<vmem>>, vector<64x64xf32>
      %cst_110 = arith.constant dense<0.000000e+00> : vector<7x64xf32>
      %135 = tpu.matmul %133, %134, %cst_110 {dimension_numbers = #tpu.dot_dimension_numbers<[1], [0], [0], [1], [0, 0, 1, 1], [], []>} : vector<7x64xf32>, vector<64x64xf32>, vector<7x64xf32> -> vector<7x64xf32>
      %136 = arith.addf %129, %135 : vector<7x64xf32>
      %c2_i32_111 = arith.constant 2 : i32
      %137 = arith.addi %86, %c2_i32_111 : i32
      %c0_112 = arith.constant 0 : index
      %138 = arith.index_cast %137 : i32 to index
      %c1_113 = arith.constant 1 : index
      %c0_114 = arith.constant 0 : index
      %139 = vector.load %arg1[%c0_112, %138, %c1_113, %c0_114] : memref<1x9x9x64xf32, #tpu.memory_space<vmem>>, vector<1x1x7x64xf32>
      %140 = vector.shape_cast %139 : vector<1x1x7x64xf32> to vector<7x64xf32>
      %c448_115 = arith.constant 448 : index
      %c0_116 = arith.constant 0 : index
      %141 = vector.load %arg2[%c448_115, %c0_116] : memref<576x64xf32, #tpu.memory_space<vmem>>, vector<64x64xf32>
      %cst_117 = arith.constant dense<0.000000e+00> : vector<7x64xf32>
      %142 = tpu.matmul %140, %141, %cst_117 {dimension_numbers = #tpu.dot_dimension_numbers<[1], [0], [0], [1], [0, 0, 1, 1], [], []>} : vector<7x64xf32>, vector<64x64xf32>, vector<7x64xf32> -> vector<7x64xf32>
      %143 = arith.addf %136, %142 : vector<7x64xf32>
      %c2_i32_118 = arith.constant 2 : i32
      %144 = arith.addi %86, %c2_i32_118 : i32
      %c0_119 = arith.constant 0 : index
      %145 = arith.index_cast %144 : i32 to index
      %c2_120 = arith.constant 2 : index
      %c0_121 = arith.constant 0 : index
      %146 = vector.load %arg1[%c0_119, %145, %c2_120, %c0_121] : memref<1x9x9x64xf32, #tpu.memory_space<vmem>>, vector<1x1x7x64xf32>
      %147 = vector.shape_cast %146 : vector<1x1x7x64xf32> to vector<7x64xf32>
      %c512_122 = arith.constant 512 : index
      %c0_123 = arith.constant 0 : index
      %148 = vector.load %arg2[%c512_122, %c0_123] : memref<576x64xf32, #tpu.memory_space<vmem>>, vector<64x64xf32>
      %cst_124 = arith.constant dense<0.000000e+00> : vector<7x64xf32>
      %149 = tpu.matmul %147, %148, %cst_124 {dimension_numbers = #tpu.dot_dimension_numbers<[1], [0], [0], [1], [0, 0, 1, 1], [], []>} : vector<7x64xf32>, vector<64x64xf32>, vector<7x64xf32> -> vector<7x64xf32>
      %150 = arith.addf %143, %149 : vector<7x64xf32>
      %c0_125 = arith.constant 0 : index
      %c0_126 = arith.constant 0 : index
      %151 = vector.load %arg3[%c0_125, %c0_126] : memref<1x64xf32, #tpu.memory_space<vmem>>, vector<1x64xf32>
      %152 = vector.broadcast %151 : vector<1x64xf32> to vector<7x64xf32>
      %153 = arith.addf %150, %152 : vector<7x64xf32>
      %cst_127 = arith.constant 0.000000e+00 : f32
      %154 = vector.broadcast %cst_127 : f32 to vector<7x64xf32>
      %155 = arith.maximumf %153, %154 : vector<7x64xf32>
      %156 = arith.maximumf %84, %155 : vector<7x64xf32>
      %cst_128 = arith.constant dense<0.000000e+00> : vector<3x64xf32>
      %157 = tpu.matmul %6, %156, %cst_128 {dimension_numbers = #tpu.dot_dimension_numbers<[1], [0], [0], [1], [0, 0, 1, 1], [], []>} : vector<3x7xf32>, vector<7x64xf32>, vector<3x64xf32> -> vector<3x64xf32>
      %cst_129 = arith.constant dense<0.000000e+00> : vector<3x64xf32>
      %158 = tpu.matmul %13, %156, %cst_129 {dimension_numbers = #tpu.dot_dimension_numbers<[1], [0], [0], [1], [0, 0, 1, 1], [], []>} : vector<3x7xf32>, vector<7x64xf32>, vector<3x64xf32> -> vector<3x64xf32>
      %159 = arith.maximumf %157, %158 : vector<3x64xf32>
      %c0_130 = arith.constant 0 : index
      %160 = arith.index_cast %arg5 : i32 to index
      %c0_131 = arith.constant 0 : index
      %c0_132 = arith.constant 0 : index
      %161 = vector.load %arg4[%c0_130, %160, %c0_131, %c0_132] : memref<1x3x3x64xf32, #tpu.memory_space<vmem>>, vector<1x1x3x64xf32>
      %162 = vector.shape_cast %161 : vector<1x1x3x64xf32> to vector<3x64xf32>
      %163 = vector.shape_cast %159 : vector<3x64xf32> to vector<1x1x3x64xf32>
      tpu.vector_store %arg4[%c0_130, %160, %c0_131, %c0_132], %163 {strides = array<i32>} : memref<1x3x3x64xf32, #tpu.memory_space<vmem>>, vector<1x1x3x64xf32>,
    }
    %c3_i32_2 = arith.constant 3 : i32
    return
  }
  func.func @transform_0(%arg0: i32) -> (i32, i32, i32, i32) {
    %c0_i32 = arith.constant 0 : i32
    %c0_i32_0 = arith.constant 0 : i32
    %c0_i32_1 = arith.constant 0 : i32
    %c0_i32_2 = arith.constant 0 : i32
    return %arg0, %c0_i32, %c0_i32_0, %c0_i32_1 : i32, i32, i32, i32
  }
  func.func @transform_1(%arg0: i32) -> (i32, i32) {
    %c0_i32 = arith.constant 0 : i32
    %c0_i32_0 = arith.constant 0 : i32
    %c0_i32_1 = arith.constant 0 : i32
    return %c0_i32, %c0_i32_0 : i32, i32
  }
  func.func @transform_2(%arg0: i32) -> (i32, i32) {
    %c0_i32 = arith.constant 0 : i32
    %c0_i32_0 = arith.constant 0 : i32
    %c0_i32_1 = arith.constant 0 : i32
    return %c0_i32, %c0_i32_0 : i32, i32
  }
  func.func @transform_3(%arg0: i32) -> (i32, i32, i32, i32) {
    %c0_i32 = arith.constant 0 : i32
    %c0_i32_0 = arith.constant 0 : i32
    %c0_i32_1 = arith.constant 0 : i32
    %c0_i32_2 = arith.constant 0 : i32
    return %arg0, %c0_i32, %c0_i32_0, %c0_i32_1 : i32, i32, i32, i32
  }
}

module attributes {stable_mosaic.version = 11 : i64} {
  func.func @_dense_head_kernel(%arg0: i32, %arg1: memref<2x576xf32, #tpu.memory_space<vmem>>, %arg2: memref<576x128xf32, #tpu.memory_space<vmem>>, %arg3: memref<1x128xf32, #tpu.memory_space<vmem>>, %arg4: memref<128x128xf32, #tpu.memory_space<vmem>>, %arg5: memref<1x128xf32, #tpu.memory_space<vmem>>, %arg6: memref<2x128xf32, #tpu.memory_space<vmem>>) attributes {dimension_semantics = [#tpu.dimension_semantics<parallel>], iteration_bounds = array<i64: 1>, scalar_prefetch = 0 : i64, scratch_operands = 0 : i64, tpu.core_type = #tpu.core_type<tc>, window_params = [{transform_indices = @transform_0, window_bounds = array<i64: 2, 576>}, {pipeline_mode = #tpu.pipeline_mode<synchronous>, transform_indices = @transform_1, window_bounds = array<i64: 576, 128>}, {pipeline_mode = #tpu.pipeline_mode<synchronous>, transform_indices = @transform_2, window_bounds = array<i64: 1, 128>}, {pipeline_mode = #tpu.pipeline_mode<synchronous>, transform_indices = @transform_3, window_bounds = array<i64: 128, 128>}, {pipeline_mode = #tpu.pipeline_mode<synchronous>, transform_indices = @transform_4, window_bounds = array<i64: 1, 128>}, {transform_indices = @transform_5, window_bounds = array<i64: 2, 128>}]} {
    %c0 = arith.constant 0 : index
    %c0_0 = arith.constant 0 : index
    %0 = vector.load %arg1[%c0, %c0_0] : memref<2x576xf32, #tpu.memory_space<vmem>>, vector<2x576xf32>
    %c0_1 = arith.constant 0 : index
    %c0_2 = arith.constant 0 : index
    %1 = vector.load %arg2[%c0_1, %c0_2] : memref<576x128xf32, #tpu.memory_space<vmem>>, vector<576x128xf32>
    %cst = arith.constant dense<0.000000e+00> : vector<2x128xf32>
    %2 = tpu.matmul %0, %1, %cst {dimension_numbers = #tpu.dot_dimension_numbers<[1], [0], [0], [1], [0, 0, 1, 1], [], []>} : vector<2x576xf32>, vector<576x128xf32>, vector<2x128xf32> -> vector<2x128xf32>
    %c0_3 = arith.constant 0 : index
    %c0_4 = arith.constant 0 : index
    %3 = vector.load %arg3[%c0_3, %c0_4] : memref<1x128xf32, #tpu.memory_space<vmem>>, vector<1x128xf32>
    %4 = vector.broadcast %3 : vector<1x128xf32> to vector<2x128xf32>
    %5 = arith.addf %2, %4 : vector<2x128xf32>
    %cst_5 = arith.constant 0.000000e+00 : f32
    %6 = vector.broadcast %cst_5 : f32 to vector<2x128xf32>
    %7 = arith.maximumf %5, %6 : vector<2x128xf32>
    %c0_6 = arith.constant 0 : index
    %c0_7 = arith.constant 0 : index
    %8 = vector.load %arg4[%c0_6, %c0_7] : memref<128x128xf32, #tpu.memory_space<vmem>>, vector<128x128xf32>
    %cst_8 = arith.constant dense<0.000000e+00> : vector<2x128xf32>
    %9 = tpu.matmul %7, %8, %cst_8 {dimension_numbers = #tpu.dot_dimension_numbers<[1], [0], [0], [1], [0, 0, 1, 1], [], []>} : vector<2x128xf32>, vector<128x128xf32>, vector<2x128xf32> -> vector<2x128xf32>
    %c0_9 = arith.constant 0 : index
    %c0_10 = arith.constant 0 : index
    %10 = vector.load %arg5[%c0_9, %c0_10] : memref<1x128xf32, #tpu.memory_space<vmem>>, vector<1x128xf32>
    %11 = vector.broadcast %10 : vector<1x128xf32> to vector<2x128xf32>
    %12 = arith.addf %9, %11 : vector<2x128xf32>
    %c0_11 = arith.constant 0 : index
    %c0_12 = arith.constant 0 : index
    %13 = vector.load %arg6[%c0_11, %c0_12] : memref<2x128xf32, #tpu.memory_space<vmem>>, vector<2x128xf32>
    tpu.vector_store %arg6[%c0_11, %c0_12], %12 {strides = array<i32>} : memref<2x128xf32, #tpu.memory_space<vmem>>, vector<2x128xf32>,
    return
  }
  func.func @transform_0(%arg0: i32) -> (i32, i32) {
    %c0_i32 = arith.constant 0 : i32
    %c0_i32_0 = arith.constant 0 : i32
    return %arg0, %c0_i32 : i32, i32
  }
  func.func @transform_1(%arg0: i32) -> (i32, i32) {
    %c0_i32 = arith.constant 0 : i32
    %c0_i32_0 = arith.constant 0 : i32
    %c0_i32_1 = arith.constant 0 : i32
    return %c0_i32, %c0_i32_0 : i32, i32
  }
  func.func @transform_2(%arg0: i32) -> (i32, i32) {
    %c0_i32 = arith.constant 0 : i32
    %c0_i32_0 = arith.constant 0 : i32
    %c0_i32_1 = arith.constant 0 : i32
    return %c0_i32, %c0_i32_0 : i32, i32
  }
  func.func @transform_3(%arg0: i32) -> (i32, i32) {
    %c0_i32 = arith.constant 0 : i32
    %c0_i32_0 = arith.constant 0 : i32
    %c0_i32_1 = arith.constant 0 : i32
    return %c0_i32, %c0_i32_0 : i32, i32
  }
  func.func @transform_4(%arg0: i32) -> (i32, i32) {
    %c0_i32 = arith.constant 0 : i32
    %c0_i32_0 = arith.constant 0 : i32
    %c0_i32_1 = arith.constant 0 : i32
    return %c0_i32, %c0_i32_0 : i32, i32
  }
  func.func @transform_5(%arg0: i32) -> (i32, i32) {
    %c0_i32 = arith.constant 0 : i32
    %c0_i32_0 = arith.constant 0 : i32
    return %arg0, %c0_i32 : i32, i32
  }
}

</mosaic_0001>

<llo_original>
// kernel: net_forward.5
$region0: #{net_forward.5}
  #allocation0 [shape = 'u32[]', space=smem, size = 0x4, offset = 0x4, fixed_abs, tag = 'smem constant byte address 0x4 - core index']
  #allocation1 [shape = 'u32[72,128]{1,0:T(1,128)}', space=vmem, size = 0x9000, scoped, tag = 'internal scratch']
  %s0 = inlined_call_operand.vmem [shape: f32[2,16,16,32], index: 0, kind: input, shape index: {}]
  %s1 = inlined_call_operand.vmem [shape: f32[288,64], index: 1, kind: input, shape index: {}]
  %s2 = inlined_call_operand.vmem [shape: f32[1,64], index: 2, kind: input, shape index: {}]
  %s3 = inlined_call_operand.vmem [shape: f32[2,9,9,64], index: 3, kind: output, shape index: {}]
  %s4 = sld [smem:[#allocation0]]
  $region52: #{net_forward.5} parent=0
    _
  %s6 = ssub.s32 1, %s4
  %s7 = scalar_select 0, %s6, %s4
  loop: start=0, step=1, limit=4
  $region2: #{net_forward.5} parent=0 // loop_pre_header
    _
  $region3: #{net_forward.5} parent=0 // loop_header
    %s9 = sphi 0, %s13
    %p10 = scmp.ge.s32.totalorder %s9, 4
    %s19 = sphi 0, %s21
    %s22 = sphi 0, %s19
    %s23 = sphi 0, %s22
    %s39 = sphi 0, %s23
    %s43 = sphi 0, %s43
    %s45 = sphi 0, %s43
    %s46 = sphi 0, %s45
    %s60 = sphi 0, %s46
    %s64 = sphi 0, %s64
    %s66 = sphi 0, %s64
    %s67 = sphi 0, %s66
    %s81 = sphi 0, %s67
    %s87 = sphi 0, %s89
    %s90 = sphi 0, %s87
    %s91 = sphi 0, %s90
    %s107 = sphi 0, %s91
  $region4: #{net_forward.5} parent=0 // loop_header_branch
    %12 = sbr.rel (%p10) target = $region8
  $region5: #{net_forward.5} parent=0 // loop_body
    %s14 = ssub.s32 %s9, 1
    %s15 = ssub.s32 %s9, 2
    %s16 = sadd.s32 %s9, 1
    %s17 = ssub.s32 %s9, %s16
    %p18 = scmp.eq.s32.totalorder %s17, 0
    %s20 = sadd.s32 %s19, 1
    %s21 = scalar_select %p18, %s19, %s20
    %p24 = pneg %p18
    %p25 = scmp.eq.s32.totalorder %s9, 1
    %p26 = por %p24, %p25
    %p27 = scmp.ne.s32.totalorder %s19, %s22
    %p28 = scmp.eq.s32.totalorder %s9, 0
    %p29 = por %p27, %p28
    %p30 = scmp.ne.s32.totalorder %s19, %s22
    %p31 = scmp.eq.s32.totalorder %s14, 1
    %p32 = por %p30, %p31
    %p33 = scmp.ne.s32.totalorder %s22, %s23
    %p34 = scmp.eq.s32.totalorder %s14, 0
    %p35 = por %p33, %p34
    %p36 = scmp.ne.s32.totalorder %s22, %s23
    %p37 = scmp.eq.s32.totalorder %s15, 1
    %p38 = por %p36, %p37
    %p40 = scmp.ne.s32.totalorder %s23, %s39
    %p41 = scmp.eq.s32.totalorder %s15, 0
    %p42 = por %p40, %p41
    %s44 = sadd.s32 %s43, 1
    %p47 = scmp.eq.s32.totalorder %s9, 1
    %p48 = scmp.ne.s32.totalorder %s43, %s45
    %p49 = scmp.eq.s32.totalorder %s9, 0
    %p50 = por %p48, %p49
    %p51 = scmp.ne.s32.totalorder %s43, %s45
    %p52 = scmp.eq.s32.totalorder %s14, 1
    %p53 = por %p51, %p52
    %p54 = scmp.ne.s32.totalorder %s45, %s46
    %p55 = scmp.eq.s32.totalorder %s14, 0
    %p56 = por %p54, %p55
    %p57 = scmp.ne.s32.totalorder %s45, %s46
    %p58 = scmp.eq.s32.totalorder %s15, 1
    %p59 = por %p57, %p58
    %p61 = scmp.ne.s32.totalorder %s46, %s60
    %p62 = scmp.eq.s32.totalorder %s15, 0
    %p63 = por %p61, %p62
    %s65 = sadd.s32 %s64, 1
    %p68 = scmp.eq.s32.totalorder %s9, 1
    %p69 = scmp.ne.s32.totalorder %s64, %s66
    %p70 = scmp.eq.s32.totalorder %s9, 0
    %p71 = por %p69, %p70
    %p72 = scmp.ne.s32.totalorder %s64, %s66
    %p73 = scmp.eq.s32.totalorder %s14, 1
    %p74 = por %p72, %p73
    %p75 = scmp.ne.s32.totalorder %s66, %s67
    %p76 = scmp.eq.s32.totalorder %s14, 0
    %p77 = por %p75, %p76
    %p78 = scmp.ne.s32.totalorder %s66, %s67
    %p79 = scmp.eq.s32.totalorder %s15, 1
    %p80 = por %p78, %p79
    %p82 = scmp.ne.s32.totalorder %s67, %s81
    %p83 = scmp.eq.s32.totalorder %s15, 0
    %p84 = por %p82, %p83
    %s85 = ssub.s32 %s9, %s16
    %p86 = scmp.eq.s32.totalorder %s85, 0
    %s88 = sadd.s32 %s87, 1
    %s89 = scalar_select %p86, %s87, %s88
    %p92 = pneg %p86
    %p93 = scmp.eq.s32.totalorder %s9, 1
    %p94 = por %p92, %p93
    %p95 = scmp.ne.s32.totalorder %s87, %s90
    %p96 = scmp.eq.s32.totalorder %s9, 0
    %p97 = por %p95, %p96
    %p98 = scmp.ne.s32.totalorder %s87, %s90
    %p99 = scmp.eq.s32.totalorder %s14, 1
    %p100 = por %p98, %p99
    %p101 = scmp.ne.s32.totalorder %s90, %s91
    %p102 = scmp.eq.s32.totalorder %s14, 0
    %p103 = por %p101, %p102
    %p104 = scmp.ne.s32.totalorder %s90, %s91
    %p105 = scmp.eq.s32.totalorder %s15, 1
    %p106 = por %p104, %p105
    %p108 = scmp.ne.s32.totalorder %s91, %s107
    %p109 = scmp.eq.s32.totalorder %s15, 0
    %p110 = por %p108, %p109
    %p111 = scmp.le.s32.totalorder 1, %s9
    %p112 = scmp.lt.s32.totalorder %s9, 3
    %p113 = pnand %p111, %p112
    %p114 = pneg %p113
    // Predicated region
    $region9: #{net_forward.5} parent=5 // pred_check
      _
    $region10: #{net_forward.5} parent=5 // pred_check_branch
      %116 = sbr.rel (%p113) target = $region12
    $region11: #{net_forward.5} parent=5 // pred_region
      %s117 = ssub.s32 %s9, 1
      // Predicated region
      $region13: #{net_forward.5} parent=11 // pred_check
        %p118 = pneg %p56
      $region14: #{net_forward.5} parent=11 // pred_check_branch
        %120 = sbr.rel (%p118) target = $region16
      $region15: #{net_forward.5} parent=11 // pred_region
        _
      $region16: #{net_forward.5} parent=11 // pred_fallthru
        _
      // Predicated region
      $region17: #{net_forward.5} parent=11 // pred_check
        %p121 = pneg %p77
      $region18: #{net_forward.5} parent=11 // pred_check_branch
        %123 = sbr.rel (%p121) target = $region20
      $region19: #{net_forward.5} parent=11 // pred_region
        _
      $region20: #{net_forward.5} parent=11 // pred_fallthru
        _
    $region12: #{net_forward.5} parent=5 // pred_fallthru
      _
    %p124 = scmp.lt.s32.totalorder %s9, 2
    // Predicated region
    $region21: #{net_forward.5} parent=5 // pred_check
      %p125 = pneg %p124
    $region22: #{net_forward.5} parent=5 // pred_check_branch
      %127 = sbr.rel (%p125) target = $region24
    $region23: #{net_forward.5} parent=5 // pred_region
      // Predicated region
      $region25: #{net_forward.5} parent=23 // pred_check
        %p128 = pneg %p29
      $region26: #{net_forward.5} parent=23 // pred_check_branch
        %130 = sbr.rel (%p128) target = $region28
      $region27: #{net_forward.5} parent=23 // pred_region
        %p131 = scmp.lt.s32.totalorder %s9, 1
        %s132 = scalar_select %p131, %s9, 1
        %s133 = smul.addr %s132, 32
        %s134 = smul.addr %s133, 8
        %s135 = scalar_lea.vmem %s0, %s134
      $region28: #{net_forward.5} parent=23 // pred_fallthru
        _
    $region24: #{net_forward.5} parent=5 // pred_fallthru
      _
    %p136 = scmp.le.s32.totalorder 1, %s9
    %p137 = scmp.lt.s32.totalorder %s9, 3
    %p138 = pnand %p136, %p137
    %p139 = pneg %p138
    // Predicated region
    $region29: #{net_forward.5} parent=5 // pred_check
      _
    $region30: #{net_forward.5} parent=5 // pred_check_branch
      %141 = sbr.rel (%p138) target = $region32
    $region31: #{net_forward.5} parent=5 // pred_region
      %s142 = ssub.s32 %s9, 1
      %p143 = scmp.lt.s32.totalorder %s14, 1
      %s144 = scalar_select %p143, %s14, 1
      %s145 = smul.addr %s144, 32
      %s146 = smul.addr %s145, 8
      %s147 = scalar_lea.vmem %s0, %s146
      %p148 = pneg %p35
      %p149 = pneg %p32
      %p150 = pneg %p56
      %p151 = pneg %p53
      %p152 = pneg %p77
      %p153 = pneg %p74
      %p154 = pneg %p103
      %p155 = pneg %p100
      %p156 = scmp.lt.s32.totalorder %s14, 1
      %s157 = scalar_select %p156, %s14, 1
      %s158 = smul.addr %s157, 18
      %s159 = smul.addr %s158, 8
      %s160 = scalar_lea.vmem %s3, %s159
      %p161 = scmp.lt.s32.totalorder %s14, 1
      %s162 = scalar_select %p161, %s14, 1
      %s163 = smul.addr %s162, 32
      %s164 = smul.addr %s163, 8
      %s165 = scalar_lea.vmem %s0, %s164
      %p166 = scmp.lt.s32.totalorder %s14, 1
      %s167 = scalar_select %p166, %s14, 1
      %s168 = smul.addr %s167, 18
      %s169 = smul.addr %s168, 8
      %s170 = scalar_lea.vmem %s3, %s169
      %vm171 = vcmask 523264
      %172 = vst.msk [vmem:[%s170] sm:$0xff] %vm171, 0.0
      %vm173 = vcmask 516096
      %174 = vst.msk [vmem:[%s170 + $0x8] sm:$0x1] %vm173, 0.0
      %175 = vst.msk [vmem:[%s170 + $0x10] sm:$0xff] %vm171, 0.0
      %176 = vst.msk [vmem:[%s170 + $0x18] sm:$0x1] %vm173, 0.0
      %177 = vst.msk [vmem:[%s170 + $0x20] sm:$0xff] %vm171, 0.0
      %178 = vst.msk [vmem:[%s170 + $0x28] sm:$0x1] %vm173, 0.0
      %179 = vst.msk [vmem:[%s170 + $0x30] sm:$0xff] %vm171, 0.0
      %180 = vst.msk [vmem:[%s170 + $0x38] sm:$0x1] %vm173, 0.0
      %181 = vst.msk [vmem:[%s170 + $0x40] sm:$0xff] %vm171, 0.0
      %182 = vst.msk [vmem:[%s170 + $0x48] sm:$0x1] %vm173, 0.0
      %183 = vst.msk [vmem:[%s170 + $0x50] sm:$0xff] %vm171, 0.0
      %184 = vst.msk [vmem:[%s170 + $0x58] sm:$0x1] %vm173, 0.0
      %185 = vst.msk [vmem:[%s170 + $0x60] sm:$0xff] %vm171, 0.0
      %186 = vst.msk [vmem:[%s170 + $0x68] sm:$0x1] %vm173, 0.0
      %187 = vst.msk [vmem:[%s170 + $0x70] sm:$0xff] %vm171, 0.0
      %188 = vst.msk [vmem:[%s170 + $0x78] sm:$0x1] %vm173, 0.0
      %189 = vst.msk [vmem:[%s170 + $0x80] sm:$0xff] %vm171, 0.0
      %190 = vst.msk [vmem:[%s170 + $0x88] sm:$0x1] %vm173, 0.0
      %v191 = vlaneseq
      %v192 = vshrl.u32 %v191, 7
      %v193 = vlaneseq
      %v194 = vand.u32 %v193, 127
      %v195 = vmul.u32 %v192, 2
      %vm196 = vcmp.eq.s32.totalorder %v194, %v195
      %v197 = vsel %vm196, 1, 0
      %v198 = vcvt.s32.f32 %v197
      %v199 = vadd.s32 %v195, 1
      %vm200 = vcmp.eq.s32.totalorder %v194, %v199
      %v201 = vsel %vm200, 1, 0
      %v202 = vcvt.s32.f32 %v201
      loop: start=0, step=1, limit=7
      $region33: #{net_forward.5} parent=31 // loop_pre_header
        _
      $region34: #{net_forward.5} parent=31 // loop_header
        %s204 = sphi 0, %s208
        %p205 = scmp.ge.s32.totalorder %s204, 7
      $region35: #{net_forward.5} parent=31 // loop_header_branch
        %207 = sbr.rel (%p205) target = $region39
      $region36: #{net_forward.5} parent=31 // loop_body
        %s209 = smul.u32 %s204, 2
        %s210 = smul.u32 %s209, 16
        %s211 = scalar_lea.vmem %s165, %s210
        %v212 = vld [vmem:[%s211] sm:$0xff]
        %v213 = vld [vmem:[%s211 + $0x8] sm:$0x3f]
        %v214 = vld [vmem:[%s1] sm:$0xff]
        %v215 = vld [vmem:[%s1 + $0x8] sm:$0xff]
        %v216 = vld [vmem:[%s1 + $0x10] sm:$0xff]
        %v217 = vld [vmem:[%s1 + $0x18] sm:$0xff]
        %v218 = vld [vmem:[%s211 + $0x1] sm:$0xff]
        %v219 = vld [vmem:[%s211 + $0x9] sm:$0x3f]
        %v220 = vld [vmem:[%s1 + $0x20] sm:$0xff]
        %v221 = vld [vmem:[%s1 + $0x28] sm:$0xff]
        %v222 = vld [vmem:[%s1 + $0x30] sm:$0xff]
        %v223 = vld [vmem:[%s1 + $0x38] sm:$0xff]
        %vm224 = vcmask 261120
        %v226 = vsel %vm224, %v218, 0
        %v229 = vsel %vm224, %v219, 0
        %231 = vmatpush.msra.mxu0 0.0
        %232 = vmatpush.msra.mxu0 0.0
        %233 = vmatpush.msra.mxu0 0.0
        %234 = vmatpush.msra.mxu0 0.0
        %235 = vmatpush.msra.mxu0 0.0
        %236 = vmatpush.msra.mxu0 0.0
        %237 = vmatpush.msra.mxu0 0.0
        %238 = vmatpush.msra.mxu0 0.0
        %239 = vmatpush.msra.mxu0 0.0
        %240 = vmatpush.msra.mxu0 0.0
        %241 = vmatpush.msra.mxu0 0.0
        %242 = vmatpush.msra.mxu0 0.0
        %243 = vmatpush.msra.mxu0 %v223
        %244 = vmatpush.msra.mxu0 %v222
        %245 = vmatpush.msra.mxu0 %v221
        %246 = vmatpush.msra.mxu0 %v220
        %247 = vmatmul.f32.gmra.mxu0 %v226
        %v248 = vpop.f32.mrf.mxu0
        %v249 = vadd.f32 0.0, %v248
        %250 = vmatmul.f32.gmra.mxu0 %v229
        %v251 = vpop.f32.mrf.mxu0
        %v252 = vadd.f32 0.0, %v251
        %253 = vdwg.mxu0
        %v255 = vsel %vm224, %v212, 0
        %v258 = vsel %vm224, %v213, 0
        %260 = vmatpush.msra.mxu0 0.0
        %261 = vmatpush.msra.mxu0 0.0
        %262 = vmatpush.msra.mxu0 0.0
        %263 = vmatpush.msra.mxu0 0.0
        %264 = vmatpush.msra.mxu0 0.0
        %265 = vmatpush.msra.mxu0 0.0
        %266 = vmatpush.msra.mxu0 0.0
        %267 = vmatpush.msra.mxu0 0.0
        %268 = vmatpush.msra.mxu0 0.0
        %269 = vmatpush.msra.mxu0 0.0
        %270 = vmatpush.msra.mxu0 0.0
        %271 = vmatpush.msra.mxu0 0.0
        %272 = vmatpush.msra.mxu0 %v217
        %273 = vmatpush.msra.mxu0 %v216
        %274 = vmatpush.msra.mxu0 %v215
        %275 = vmatpush.msra.mxu0 %v214
        %276 = vmatmul.f32.gmra.mxu0 %v255
        %v277 = vpop.f32.mrf.mxu0
        %v278 = vadd.f32 %v249, %v277
        %279 = vmatmul.f32.gmra.mxu0 %v258
        %v280 = vpop.f32.mrf.mxu0
        %v281 = vadd.f32 %v252, %v280
        %282 = vdwg.mxu0
        %v283 = vld [vmem:[%s211 + $0x2] sm:$0xff]
        %v284 = vld [vmem:[%s211 + $0xa] sm:$0x3f]
        %v285 = vld [vmem:[%s1 + $0x40] sm:$0xff]
        %v286 = vld [vmem:[%s1 + $0x48] sm:$0xff]
        %v287 = vld [vmem:[%s1 + $0x50] sm:$0xff]
        %v288 = vld [vmem:[%s1 + $0x58] sm:$0xff]
        %v290 = vsel %vm224, %v283, 0
        %v293 = vsel %vm224, %v284, 0
        %295 = vmatpush.msra.mxu0 0.0
        %296 = vmatpush.msra.mxu0 0.0
        %297 = vmatpush.msra.mxu0 0.0
        %298 = vmatpush.msra.mxu0 0.0
        %299 = vmatpush.msra.mxu0 0.0
        %300 = vmatpush.msra.mxu0 0.0
        %301 = vmatpush.msra.mxu0 0.0
        %302 = vmatpush.msra.mxu0 0.0
        %303 = vmatpush.msra.mxu0 0.0
        %304 = vmatpush.msra.mxu0 0.0
        %305 = vmatpush.msra.mxu0 0.0
        %306 = vmatpush.msra.mxu0 0.0
        %307 = vmatpush.msra.mxu0 %v288
        %308 = vmatpush.msra.mxu0 %v287
        %309 = vmatpush.msra.mxu0 %v286
        %310 = vmatpush.msra.mxu0 %v285
        %311 = vmatmul.f32.gmra.mxu0 %v290
        %v312 = vpop.f32.mrf.mxu0
        %v313 = vadd.f32 0.0, %v312
        %314 = vmatmul.f32.gmra.mxu0 %v293
        %v315 = vpop.f32.mrf.mxu0
        %v316 = vadd.f32 0.0, %v315
        %317 = vdwg.mxu0
        %v318 = vadd.f32 %v278, %v313
        %v319 = vadd.f32 %v281, %v316
        %s320 = sadd.s32 %s209, 1
        %s321 = smul.u32 %s320, 16
        %s322 = scalar_lea.vmem %s165, %s321
        %v323 = vld [vmem:[%s322] sm:$0xff]
        %v324 = vld [vmem:[%s322 + $0x8] sm:$0x3f]
        %v325 = vld [vmem:[%s1 + $0x60] sm:$0xff]
        %v326 = vld [vmem:[%s1 + $0x68] sm:$0xff]
        %v327 = vld [vmem:[%s1 + $0x70] sm:$0xff]
        %v328 = vld [vmem:[%s1 + $0x78] sm:$0xff]
        %v330 = vsel %vm224, %v323, 0
        %v333 = vsel %vm224, %v324, 0
        %335 = vmatpush.msra.mxu0 0.0
        %336 = vmatpush.msra.mxu0 0.0
        %337 = vmatpush.msra.mxu0 0.0
        %338 = vmatpush.msra.mxu0 0.0
        %339 = vmatpush.msra.mxu0 0.0
        %340 = vmatpush.msra.mxu0 0.0
        %341 = vmatpush.msra.mxu0 0.0
        %342 = vmatpush.msra.mxu0 0.0
        %343 = vmatpush.msra.mxu0 0.0
        %344 = vmatpush.msra.mxu0 0.0
        %345 = vmatpush.msra.mxu0 0.0
        %346 = vmatpush.msra.mxu0 0.0
        %347 = vmatpush.msra.mxu0 %v328
        %348 = vmatpush.msra.mxu0 %v327
        %349 = vmatpush.msra.mxu0 %v326
        %350 = vmatpush.msra.mxu0 %v325
        %351 = vmatmul.f32.gmra.mxu0 %v330
        %v352 = vpop.f32.mrf.mxu0
        %v353 = vadd.f32 0.0, %v352
        %354 = vmatmul.f32.gmra.mxu0 %v333
        %v355 = vpop.f32.mrf.mxu0
        %v356 = vadd.f32 0.0, %v355
        %357 = vdwg.mxu0
        %v358 = vadd.f32 %v318, %v353
        %v359 = vadd.f32 %v319, %v356
        %v360 = vld [vmem:[%s322 + $0x1] sm:$0xff]
        %v361 = vld [vmem:[%s322 + $0x9] sm:$0x3f]
        %v362 = vld [vmem:[%s1 + $0x80] sm:$0xff]
        %v363 = vld [vmem:[%s1 + $0x88] sm:$0xff]
        %v364 = vld [vmem:[%s1 + $0x90] sm:$0xff]
        %v365 = vld [vmem:[%s1 + $0x98] sm:$0xff]
        %v367 = vsel %vm224, %v360, 0
        %v370 = vsel %vm224, %v361, 0
        %372 = vmatpush.msra.mxu0 0.0
        %373 = vmatpush.msra.mxu0 0.0
        %374 = vmatpush.msra.mxu0 0.0
        %375 = vmatpush.msra.mxu0 0.0
        %376 = vmatpush.msra.mxu0 0.0
        %377 = vmatpush.msra.mxu0 0.0
        %378 = vmatpush.msra.mxu0 0.0
        %379 = vmatpush.msra.mxu0 0.0
        %380 = vmatpush.msra.mxu0 0.0
        %381 = vmatpush.msra.mxu0 0.0
        %382 = vmatpush.msra.mxu0 0.0
        %383 = vmatpush.msra.mxu0 0.0
        %384 = vmatpush.msra.mxu0 %v365
        %385 = vmatpush.msra.mxu0 %v364
        %386 = vmatpush.msra.mxu0 %v363
        %387 = vmatpush.msra.mxu0 %v362
        %388 = vmatmul.f32.gmra.mxu0 %v367
        %v389 = vpop.f32.mrf.mxu0
        %v390 = vadd.f32 0.0, %v389
        %391 = vmatmul.f32.gmra.mxu0 %v370
        %v392 = vpop.f32.mrf.mxu0
        %v393 = vadd.f32 0.0, %v392
        %394 = vdwg.mxu0
        %v395 = vadd.f32 %v358, %v390
        %v396 = vadd.f32 %v359, %v393
        %v397 = vld [vmem:[%s322 + $0x2] sm:$0xff]
        %v398 = vld [vmem:[%s322 + $0xa] sm:$0x3f]
        %v399 = vld [vmem:[%s1 + $0xa0] sm:$0xff]
        %v400 = vld [vmem:[%s1 + $0xa8] sm:$0xff]
        %v401 = vld [vmem:[%s1 + $0xb0] sm:$0xff]
        %v402 = vld [vmem:[%s1 + $0xb8] sm:$0xff]
        %v404 = vsel %vm224, %v397, 0
        %v407 = vsel %vm224, %v398, 0
        %409 = vmatpush.msra.mxu0 0.0
        %410 = vmatpush.msra.mxu0 0.0
        %411 = vmatpush.msra.mxu0 0.0
        %412 = vmatpush.msra.mxu0 0.0
        %413 = vmatpush.msra.mxu0 0.0
        %414 = vmatpush.msra.mxu0 0.0
        %415 = vmatpush.msra.mxu0 0.0
        %416 = vmatpush.msra.mxu0 0.0
        %417 = vmatpush.msra.mxu0 0.0
        %418 = vmatpush.msra.mxu0 0.0
        %419 = vmatpush.msra.mxu0 0.0
        %420 = vmatpush.msra.mxu0 0.0
        %421 = vmatpush.msra.mxu0 %v402
        %422 = vmatpush.msra.mxu0 %v401
        %423 = vmatpush.msra.mxu0 %v400
        %424 = vmatpush.msra.mxu0 %v399
        %425 = vmatmul.f32.gmra.mxu0 %v404
        %v426 = vpop.f32.mrf.mxu0
        %v427 = vadd.f32 0.0, %v426
        %428 = vmatmul.f32.gmra.mxu0 %v407
        %v429 = vpop.f32.mrf.mxu0
        %v430 = vadd.f32 0.0, %v429
        %431 = vdwg.mxu0
        %v432 = vadd.f32 %v395, %v427
        %v433 = vadd.f32 %v396, %v430
        %s434 = sadd.s32 %s209, 2
        %s435 = smul.u32 %s434, 16
        %s436 = scalar_lea.vmem %s165, %s435
        %v437 = vld [vmem:[%s436] sm:$0xff]
        %v438 = vld [vmem:[%s436 + $0x8] sm:$0x3f]
        %v439 = vld [vmem:[%s1 + $0xc0] sm:$0xff]
        %v440 = vld [vmem:[%s1 + $0xc8] sm:$0xff]
        %v441 = vld [vmem:[%s1 + $0xd0] sm:$0xff]
        %v442 = vld [vmem:[%s1 + $0xd8] sm:$0xff]
        %v444 = vsel %vm224, %v437, 0
        %v447 = vsel %vm224, %v438, 0
        %449 = vmatpush.msra.mxu0 0.0
        %450 = vmatpush.msra.mxu0 0.0
        %451 = vmatpush.msra.mxu0 0.0
        %452 = vmatpush.msra.mxu0 0.0
        %453 = vmatpush.msra.mxu0 0.0
        %454 = vmatpush.msra.mxu0 0.0
        %455 = vmatpush.msra.mxu0 0.0
        %456 = vmatpush.msra.mxu0 0.0
        %457 = vmatpush.msra.mxu0 0.0
        %458 = vmatpush.msra.mxu0 0.0
        %459 = vmatpush.msra.mxu0 0.0
        %460 = vmatpush.msra.mxu0 0.0
        %461 = vmatpush.msra.mxu0 %v442
        %462 = vmatpush.msra.mxu0 %v441
        %463 = vmatpush.msra.mxu0 %v440
        %464 = vmatpush.msra.mxu0 %v439
        %465 = vmatmul.f32.gmra.mxu0 %v444
        %v466 = vpop.f32.mrf.mxu0
        %v467 = vadd.f32 0.0, %v466
        %468 = vmatmul.f32.gmra.mxu0 %v447
        %v469 = vpop.f32.mrf.mxu0
        %v470 = vadd.f32 0.0, %v469
        %471 = vdwg.mxu0
        %v472 = vadd.f32 %v432, %v467
        %v473 = vadd.f32 %v433, %v470
        %v474 = vld [vmem:[%s436 + $0x1] sm:$0xff]
        %v475 = vld [vmem:[%s436 + $0x9] sm:$0x3f]
        %v476 = vld [vmem:[%s1 + $0xe0] sm:$0xff]
        %v477 = vld [vmem:[%s1 + $0xe8] sm:$0xff]
        %v478 = vld [vmem:[%s1 + $0xf0] sm:$0xff]
        %v479 = vld [vmem:[%s1 + $0xf8] sm:$0xff]
        %v481 = vsel %vm224, %v474, 0
        %v484 = vsel %vm224, %v475, 0
        %486 = vmatpush.msra.mxu0 0.0
        %487 = vmatpush.msra.mxu0 0.0
        %488 = vmatpush.msra.mxu0 0.0
        %489 = vmatpush.msra.mxu0 0.0
        %490 = vmatpush.msra.mxu0 0.0
        %491 = vmatpush.msra.mxu0 0.0
        %492 = vmatpush.msra.mxu0 0.0
        %493 = vmatpush.msra.mxu0 0.0
        %494 = vmatpush.msra.mxu0 0.0
        %495 = vmatpush.msra.mxu0 0.0
        %496 = vmatpush.msra.mxu0 0.0
        %497 = vmatpush.msra.mxu0 0.0
        %498 = vmatpush.msra.mxu0 %v479
        %499 = vmatpush.msra.mxu0 %v478
        %500 = vmatpush.msra.mxu0 %v477
        %501 = vmatpush.msra.mxu0 %v476
        %502 = vmatmul.f32.gmra.mxu0 %v481
        %v503 = vpop.f32.mrf.mxu0
        %v504 = vadd.f32 0.0, %v503
        %505 = vmatmul.f32.gmra.mxu0 %v484
        %v506 = vpop.f32.mrf.mxu0
        %v507 = vadd.f32 0.0, %v506
        %508 = vdwg.mxu0
        %v509 = vadd.f32 %v472, %v504
        %v510 = vadd.f32 %v473, %v507
        %v511 = vld [vmem:[%s436 + $0x2] sm:$0xff]
        %v512 = vld [vmem:[%s436 + $0xa] sm:$0x3f]
        %v513 = vld [vmem:[%s1 + $0x100] sm:$0xff]
        %v514 = vld [vmem:[%s1 + $0x108] sm:$0xff]
        %v515 = vld [vmem:[%s1 + $0x110] sm:$0xff]
        %v516 = vld [vmem:[%s1 + $0x118] sm:$0xff]
        %v518 = vsel %vm224, %v511, 0
        %v521 = vsel %vm224, %v512, 0
        %523 = vmatpush.msra.mxu0 0.0
        %524 = vmatpush.msra.mxu0 0.0
        %525 = vmatpush.msra.mxu0 0.0
        %526 = vmatpush.msra.mxu0 0.0
        %527 = vmatpush.msra.mxu0 0.0
        %528 = vmatpush.msra.mxu0 0.0
        %529 = vmatpush.msra.mxu0 0.0
        %530 = vmatpush.msra.mxu0 0.0
        %531 = vmatpush.msra.mxu0 0.0
        %532 = vmatpush.msra.mxu0 0.0
        %533 = vmatpush.msra.mxu0 0.0
        %534 = vmatpush.msra.mxu0 0.0
        %535 = vmatpush.msra.mxu0 %v516
        %536 = vmatpush.msra.mxu0 %v515
        %537 = vmatpush.msra.mxu0 %v514
        %538 = vmatpush.msra.mxu0 %v513
        %539 = vmatmul.f32.gmra.mxu0 %v518
        %v540 = vpop.f32.mrf.mxu0
        %v541 = vadd.f32 0.0, %v540
        %542 = vmatmul.f32.gmra.mxu0 %v521
        %v543 = vpop.f32.mrf.mxu0
        %v544 = vadd.f32 0.0, %v543
        %545 = vdwg.mxu0
        %v546 = vadd.f32 %v509, %v541
        %v547 = vadd.f32 %v510, %v544
        %v548 = vld [vmem:[%s2] sm:$0x1]
        %v550 = vperm.slane %v548, 0
        %v552 = vadd.f32 %v546, %v550
        %v553 = vadd.f32 %v547, %v550
        %v554 = vmax.f32 %v552, 0.0
        %v555 = vmax.f32 %v553, 0.0
        %556 = vmatpush.msra.mxu0 0.0
        %557 = vmatpush.msra.mxu0 0.0
        %558 = vmatpush.msra.mxu0 0.0
        %559 = vmatpush.msra.mxu0 0.0
        %560 = vmatpush.msra.mxu0 0.0
        %561 = vmatpush.msra.mxu0 0.0
        %562 = vmatpush.msra.mxu0 0.0
        %563 = vmatpush.msra.mxu0 0.0
        %564 = vmatpush.msra.mxu0 0.0
        %565 = vmatpush.msra.mxu0 0.0
        %566 = vmatpush.msra.mxu0 0.0
        %567 = vmatpush.msra.mxu0 0.0
        %568 = vmatpush.msra.mxu0 %v223
        %569 = vmatpush.msra.mxu0 %v222
        %570 = vmatpush.msra.mxu0 %v221
        %571 = vmatpush.msra.mxu0 %v220
        %572 = vmatmul.f32.gmra.mxu0 %v367
        %v573 = vpop.f32.mrf.mxu0
        %v574 = vadd.f32 0.0, %v573
        %575 = vmatmul.f32.gmra.mxu0 %v370
        %v576 = vpop.f32.mrf.mxu0
        %v577 = vadd.f32 0.0, %v576
        %578 = vdwg.mxu0
        %579 = vmatpush.msra.mxu0 0.0
        %580 = vmatpush.msra.mxu0 0.0
        %581 = vmatpush.msra.mxu0 0.0
        %582 = vmatpush.msra.mxu0 0.0
        %583 = vmatpush.msra.mxu0 0.0
        %584 = vmatpush.msra.mxu0 0.0
        %585 = vmatpush.msra.mxu0 0.0
        %586 = vmatpush.msra.mxu0 0.0
        %587 = vmatpush.msra.mxu0 0.0
        %588 = vmatpush.msra.mxu0 0.0
        %589 = vmatpush.msra.mxu0 0.0
        %590 = vmatpush.msra.mxu0 0.0
        %591 = vmatpush.msra.mxu0 %v217
        %592 = vmatpush.msra.mxu0 %v216
        %593 = vmatpush.msra.mxu0 %v215
        %594 = vmatpush.msra.mxu0 %v214
        %595 = vmatmul.f32.gmra.mxu0 %v330
        %v596 = vpop.f32.mrf.mxu0
        %v597 = vadd.f32 %v574, %v596
        %598 = vmatmul.f32.gmra.mxu0 %v333
        %v599 = vpop.f32.mrf.mxu0
        %v600 = vadd.f32 %v577, %v599
        %601 = vdwg.mxu0
        %602 = vmatpush.msra.mxu0 0.0
        %603 = vmatpush.msra.mxu0 0.0
        %604 = vmatpush.msra.mxu0 0.0
        %605 = vmatpush.msra.mxu0 0.0
        %606 = vmatpush.msra.mxu0 0.0
        %607 = vmatpush.msra.mxu0 0.0
        %608 = vmatpush.msra.mxu0 0.0
        %609 = vmatpush.msra.mxu0 0.0
        %610 = vmatpush.msra.mxu0 0.0
        %611 = vmatpush.msra.mxu0 0.0
        %612 = vmatpush.msra.mxu0 0.0
        %613 = vmatpush.msra.mxu0 0.0
        %614 = vmatpush.msra.mxu0 %v288
        %615 = vmatpush.msra.mxu0 %v287
        %616 = vmatpush.msra.mxu0 %v286
        %617 = vmatpush.msra.mxu0 %v285
        %618 = vmatmul.f32.gmra.mxu0 %v404
        %v619 = vpop.f32.mrf.mxu0
        %v620 = vadd.f32 0.0, %v619
        %621 = vmatmul.f32.gmra.mxu0 %v407
        %v622 = vpop.f32.mrf.mxu0
        %v623 = vadd.f32 0.0, %v622
        %624 = vdwg.mxu0
        %v625 = vadd.f32 %v597, %v620
        %v626 = vadd.f32 %v600, %v623
        %627 = vmatpush.msra.mxu0 0.0
        %628 = vmatpush.msra.mxu0 0.0
        %629 = vmatpush.msra.mxu0 0.0
        %630 = vmatpush.msra.mxu0 0.0
        %631 = vmatpush.msra.mxu0 0.0
        %632 = vmatpush.msra.mxu0 0.0
        %633 = vmatpush.msra.mxu0 0.0
        %634 = vmatpush.msra.mxu0 0.0
        %635 = vmatpush.msra.mxu0 0.0
        %636 = vmatpush.msra.mxu0 0.0
        %637 = vmatpush.msra.mxu0 0.0
        %638 = vmatpush.msra.mxu0 0.0
        %639 = vmatpush.msra.mxu0 %v328
        %640 = vmatpush.msra.mxu0 %v327
        %641 = vmatpush.msra.mxu0 %v326
        %642 = vmatpush.msra.mxu0 %v325
        %643 = vmatmul.f32.gmra.mxu0 %v444
        %v644 = vpop.f32.mrf.mxu0
        %v645 = vadd.f32 0.0, %v644
        %646 = vmatmul.f32.gmra.mxu0 %v447
        %v647 = vpop.f32.mrf.mxu0
        %v648 = vadd.f32 0.0, %v647
        %649 = vdwg.mxu0
        %v650 = vadd.f32 %v625, %v645
        %v651 = vadd.f32 %v626, %v648
        %652 = vmatpush.msra.mxu0 0.0
        %653 = vmatpush.msra.mxu0 0.0
        %654 = vmatpush.msra.mxu0 0.0
        %655 = vmatpush.msra.mxu0 0.0
        %656 = vmatpush.msra.mxu0 0.0
        %657 = vmatpush.msra.mxu0 0.0
        %658 = vmatpush.msra.mxu0 0.0
        %659 = vmatpush.msra.mxu0 0.0
        %660 = vmatpush.msra.mxu0 0.0
        %661 = vmatpush.msra.mxu0 0.0
        %662 = vmatpush.msra.mxu0 0.0
        %663 = vmatpush.msra.mxu0 0.0
        %664 = vmatpush.msra.mxu0 %v365
        %665 = vmatpush.msra.mxu0 %v364
        %666 = vmatpush.msra.mxu0 %v363
        %667 = vmatpush.msra.mxu0 %v362
        %668 = vmatmul.f32.gmra.mxu0 %v481
        %v669 = vpop.f32.mrf.mxu0
        %v670 = vadd.f32 0.0, %v669
        %671 = vmatmul.f32.gmra.mxu0 %v484
        %v672 = vpop.f32.mrf.mxu0
        %v673 = vadd.f32 0.0, %v672
        %674 = vdwg.mxu0
        %v675 = vadd.f32 %v650, %v670
        %v676 = vadd.f32 %v651, %v673
        %677 = vmatpush.msra.mxu0 0.0
        %678 = vmatpush.msra.mxu0 0.0
        %679 = vmatpush.msra.mxu0 0.0
        %680 = vmatpush.msra.mxu0 0.0
        %681 = vmatpush.msra.mxu0 0.0
        %682 = vmatpush.msra.mxu0 0.0
        %683 = vmatpush.msra.mxu0 0.0
        %684 = vmatpush.msra.mxu0 0.0
        %685 = vmatpush.msra.mxu0 0.0
        %686 = vmatpush.msra.mxu0 0.0
        %687 = vmatpush.msra.mxu0 0.0
        %688 = vmatpush.msra.mxu0 0.0
        %689 = vmatpush.msra.mxu0 %v402
        %690 = vmatpush.msra.mxu0 %v401
        %691 = vmatpush.msra.mxu0 %v400
        %692 = vmatpush.msra.mxu0 %v399
        %693 = vmatmul.f32.gmra.mxu0 %v518
        %v694 = vpop.f32.mrf.mxu0
        %v695 = vadd.f32 0.0, %v694
        %696 = vmatmul.f32.gmra.mxu0 %v521
        %v697 = vpop.f32.mrf.mxu0
        %v698 = vadd.f32 0.0, %v697
        %699 = vdwg.mxu0
        %v700 = vadd.f32 %v675, %v695
        %v701 = vadd.f32 %v676, %v698
        %s702 = sadd.s32 %s209, 3
        %s703 = smul.u32 %s702, 16
        %s704 = scalar_lea.vmem %s165, %s703
        %v705 = vld [vmem:[%s704] sm:$0xff]
        %v706 = vld [vmem:[%s704 + $0x8] sm:$0x3f]
        %v708 = vsel %vm224, %v705, 0
        %v711 = vsel %vm224, %v706, 0
        %713 = vmatpush.msra.mxu0 0.0
        %714 = vmatpush.msra.mxu0 0.0
        %715 = vmatpush.msra.mxu0 0.0
        %716 = vmatpush.msra.mxu0 0.0
        %717 = vmatpush.msra.mxu0 0.0
        %718 = vmatpush.msra.mxu0 0.0
        %719 = vmatpush.msra.mxu0 0.0
        %720 = vmatpush.msra.mxu0 0.0
        %721 = vmatpush.msra.mxu0 0.0
        %722 = vmatpush.msra.mxu0 0.0
        %723 = vmatpush.msra.mxu0 0.0
        %724 = vmatpush.msra.mxu0 0.0
        %725 = vmatpush.msra.mxu0 %v442
        %726 = vmatpush.msra.mxu0 %v441
        %727 = vmatpush.msra.mxu0 %v440
        %728 = vmatpush.msra.mxu0 %v439
        %729 = vmatmul.f32.gmra.mxu0 %v708
        %v730 = vpop.f32.mrf.mxu0
        %v731 = vadd.f32 0.0, %v730
        %732 = vmatmul.f32.gmra.mxu0 %v711
        %v733 = vpop.f32.mrf.mxu0
        %v734 = vadd.f32 0.0, %v733
        %735 = vdwg.mxu0
        %v736 = vadd.f32 %v700, %v731
        %v737 = vadd.f32 %v701, %v734
        %v738 = vld [vmem:[%s704 + $0x1] sm:$0xff]
        %v739 = vld [vmem:[%s704 + $0x9] sm:$0x3f]
        %v741 = vsel %vm224, %v738, 0
        %v744 = vsel %vm224, %v739, 0
        %746 = vmatpush.msra.mxu0 0.0
        %747 = vmatpush.msra.mxu0 0.0
        %748 = vmatpush.msra.mxu0 0.0
        %749 = vmatpush.msra.mxu0 0.0
        %750 = vmatpush.msra.mxu0 0.0
        %751 = vmatpush.msra.mxu0 0.0
        %752 = vmatpush.msra.mxu0 0.0
        %753 = vmatpush.msra.mxu0 0.0
        %754 = vmatpush.msra.mxu0 0.0
        %755 = vmatpush.msra.mxu0 0.0
        %756 = vmatpush.msra.mxu0 0.0
        %757 = vmatpush.msra.mxu0 0.0
        %758 = vmatpush.msra.mxu0 %v479
        %759 = vmatpush.msra.mxu0 %v478
        %760 = vmatpush.msra.mxu0 %v477
        %761 = vmatpush.msra.mxu0 %v476
        %762 = vmatmul.f32.gmra.mxu0 %v741
        %v763 = vpop.f32.mrf.mxu0
        %v764 = vadd.f32 0.0, %v763
        %765 = vmatmul.f32.gmra.mxu0 %v744
        %v766 = vpop.f32.mrf.mxu0
        %v767 = vadd.f32 0.0, %v766
        %768 = vdwg.mxu0
        %v769 = vadd.f32 %v736, %v764
        %v770 = vadd.f32 %v737, %v767
        %v771 = vld [vmem:[%s704 + $0x2] sm:$0xff]
        %v772 = vld [vmem:[%s704 + $0xa] sm:$0x3f]
        %v774 = vsel %vm224, %v771, 0
        %v777 = vsel %vm224, %v772, 0
        %779 = vmatpush.msra.mxu0 0.0
        %780 = vmatpush.msra.mxu0 0.0
        %781 = vmatpush.msra.mxu0 0.0
        %782 = vmatpush.msra.mxu0 0.0
        %783 = vmatpush.msra.mxu0 0.0
        %784 = vmatpush.msra.mxu0 0.0
        %785 = vmatpush.msra.mxu0 0.0
        %786 = vmatpush.msra.mxu0 0.0
        %787 = vmatpush.msra.mxu0 0.0
        %788 = vmatpush.msra.mxu0 0.0
        %789 = vmatpush.msra.mxu0 0.0
        %790 = vmatpush.msra.mxu0 0.0
        %791 = vmatpush.msra.mxu0 %v516
        %792 = vmatpush.msra.mxu0 %v515
        %793 = vmatpush.msra.mxu0 %v514
        %794 = vmatpush.msra.mxu0 %v513
        %795 = vmatmul.f32.gmra.mxu0 %v774
        %v796 = vpop.f32.mrf.mxu0
        %v797 = vadd.f32 0.0, %v796
        %798 = vmatmul.f32.gmra.mxu0 %v777
        %v799 = vpop.f32.mrf.mxu0
        %v800 = vadd.f32 0.0, %v799
        %801 = vdwg.mxu0
        %v802 = vadd.f32 %v769, %v797
        %v803 = vadd.f32 %v770, %v800
        %v804 = vadd.f32 %v802, %v550
        %v805 = vadd.f32 %v803, %v550
        %v806 = vmax.f32 %v804, 0.0
        %v807 = vmax.f32 %v805, 0.0
        %v808 = vmax.f32 %v554, %v806
        %v809 = vmax.f32 %v555, %v807
        %vm810 = vcmask 113664
        %v812 = vsel %vm810, %v198, 0
        %vm814 = vcmask 1045504
        %v816 = vsel %vm814, %v809, 0
        %818 = vmatpush.msra.mxu0 0.0
        %819 = vmatpush.msra.mxu0 0.0
        %820 = vmatpush.msra.mxu0 0.0
        %821 = vmatpush.msra.mxu0 0.0
        %822 = vmatpush.msra.mxu0 0.0
        %823 = vmatpush.msra.mxu0 0.0
        %824 = vmatpush.msra.mxu0 0.0
        %825 = vmatpush.msra.mxu0 0.0
        %826 = vmatpush.msra.mxu0 0.0
        %827 = vmatpush.msra.mxu0 0.0
        %828 = vmatpush.msra.mxu0 0.0
        %829 = vmatpush.msra.mxu0 0.0
        %830 = vmatpush.msra.mxu0 0.0
        %831 = vmatpush.msra.mxu0 0.0
        %832 = vmatpush.msra.mxu0 %v816
        %833 = vmatpush.msra.mxu0 %v808
        %834 = vmatmul.f32.gmra.mxu0 %v812
        %v835 = vpop.f32.mrf.mxu0
        %v836 = vadd.f32 0.0, %v835
        %837 = vdwg.mxu0
        %v839 = vsel %vm810, %v202, 0
        %841 = vmatpush.msra.mxu0 0.0
        %842 = vmatpush.msra.mxu0 0.0
        %843 = vmatpush.msra.mxu0 0.0
        %844 = vmatpush.msra.mxu0 0.0
        %845 = vmatpush.msra.mxu0 0.0
        %846 = vmatpush.msra.mxu0 0.0
        %847 = vmatpush.msra.mxu0 0.0
        %848 = vmatpush.msra.mxu0 0.0
        %849 = vmatpush.msra.mxu0 0.0
        %850 = vmatpush.msra.mxu0 0.0
        %851 = vmatpush.msra.mxu0 0.0
        %852 = vmatpush.msra.mxu0 0.0
        %853 = vmatpush.msra.mxu0 0.0
        %854 = vmatpush.msra.mxu0 0.0
        %855 = vmatpush.msra.mxu0 %v816
        %856 = vmatpush.msra.mxu0 %v808
        %857 = vmatmul.f32.gmra.mxu0 %v839
        %v858 = vpop.f32.mrf.mxu0
        %v859 = vadd.f32 0.0, %v858
        %860 = vdwg.mxu0
        %v861 = vmax.f32 %v836, %v859
        %s862 = sadd.s32 %s204, 1
        %s863 = smul.u32 %s862, 16
        %s864 = scalar_lea.vmem %s170, %s863
        %vm865 = vcmask 522240
        %866 = vst.msk [vmem:[%s864 + $0x1] sm:$0x7f] %vm865, %v861
      $region37: #{net_forward.5} parent=31 // loop_footer
        %s208 = sadd.s32 1, %s204
      $region38: #{net_forward.5} parent=31 // loop_footer_branch
        %203 = sbr.rel target = $region34
      $region39: #{net_forward.5} parent=31 // loop_exit
        _
      %p867 = scmp.lt.s32.totalorder %s14, 1
      %s868 = scalar_select %p867, %s14, 1
      %s869 = smul.addr %s868, 18
      %s870 = smul.addr %s869, 8
      %s871 = scalar_lea.vmem %s3, %s870
      // Predicated region
      $region40: #{net_forward.5} parent=31 // pred_check
        %p872 = pneg %p100
      $region41: #{net_forward.5} parent=31 // pred_check_branch
        %874 = sbr.rel (%p872) target = $region43
      $region42: #{net_forward.5} parent=31 // pred_region
        _
      $region43: #{net_forward.5} parent=31 // pred_fallthru
        _
    $region32: #{net_forward.5} parent=5 // pred_fallthru
      _
    %p875 = scmp.le.s32.totalorder 2, %s9
    // Predicated region
    $region44: #{net_forward.5} parent=5 // pred_check
      %p876 = pneg %p875
    $region45: #{net_forward.5} parent=5 // pred_check_branch
      %878 = sbr.rel (%p876) target = $region47
    $region46: #{net_forward.5} parent=5 // pred_region
      %s879 = ssub.s32 %s9, 2
      // Predicated region
      $region48: #{net_forward.5} parent=46 // pred_check
        %p880 = pneg %p106
      $region49: #{net_forward.5} parent=46 // pred_check_branch
        %882 = sbr.rel (%p880) target = $region51
      $region50: #{net_forward.5} parent=46 // pred_region
        %p883 = scmp.lt.s32.totalorder %s15, 1
        %s884 = scalar_select %p883, %s15, 1
        %s885 = smul.addr %s884, 18
        %s886 = smul.addr %s885, 8
        %s887 = scalar_lea.vmem %s3, %s886
      $region51: #{net_forward.5} parent=46 // pred_fallthru
        _
    $region47: #{net_forward.5} parent=5 // pred_fallthru
      _
  $region6: #{net_forward.5} parent=0 // loop_footer
    %s13 = sadd.s32 1, %s9
  $region7: #{net_forward.5} parent=0 // loop_footer_branch
    %8 = sbr.rel target = $region3
  $region8: #{net_forward.5} parent=0 // loop_exit
    _

// kernel: net_forward.4
$region0: #{net_forward.4}
  #allocation0 [shape = 'u32[]', space=smem, size = 0x4, offset = 0x4, fixed_abs, tag = 'smem constant byte address 0x4 - core index']
  #allocation1 [shape = 'u32[72,128]{1,0:T(1,128)}', space=vmem, size = 0x9000, scoped, tag = 'internal scratch']
  %s0 = inlined_call_operand.vmem [shape: f32[2,30,30,8], index: 0, kind: input, shape index: {}]
  %s1 = inlined_call_operand.vmem [shape: f32[72,32], index: 1, kind: input, shape index: {}]
  %s2 = inlined_call_operand.vmem [shape: f32[1,32], index: 2, kind: input, shape index: {}]
  %s3 = inlined_call_operand.vmem [shape: f32[2,16,16,32], index: 3, kind: output, shape index: {}]
  %s4 = sld [smem:[#allocation0]]
  $region52: #{net_forward.4} parent=0
    _
  %s6 = ssub.s32 1, %s4
  %s7 = scalar_select 0, %s6, %s4
  loop: start=0, step=1, limit=4
  $region2: #{net_forward.4} parent=0 // loop_pre_header
    _
  $region3: #{net_forward.4} parent=0 // loop_header
    %s9 = sphi 0, %s13
    %p10 = scmp.ge.s32.totalorder %s9, 4
    %s19 = sphi 0, %s21
    %s22 = sphi 0, %s19
    %s23 = sphi 0, %s22
    %s39 = sphi 0, %s23
    %s43 = sphi 0, %s43
    %s45 = sphi 0, %s43
    %s46 = sphi 0, %s45
    %s60 = sphi 0, %s46
    %s64 = sphi 0, %s64
    %s66 = sphi 0, %s64
    %s67 = sphi 0, %s66
    %s81 = sphi 0, %s67
    %s87 = sphi 0, %s89
    %s90 = sphi 0, %s87
    %s91 = sphi 0, %s90
    %s107 = sphi 0, %s91
  $region4: #{net_forward.4} parent=0 // loop_header_branch
    %12 = sbr.rel (%p10) target = $region8
  $region5: #{net_forward.4} parent=0 // loop_body
    %s14 = ssub.s32 %s9, 1
    %s15 = ssub.s32 %s9, 2
    %s16 = sadd.s32 %s9, 1
    %s17 = ssub.s32 %s9, %s16
    %p18 = scmp.eq.s32.totalorder %s17, 0
    %s20 = sadd.s32 %s19, 1
    %s21 = scalar_select %p18, %s19, %s20
    %p24 = pneg %p18
    %p25 = scmp.eq.s32.totalorder %s9, 1
    %p26 = por %p24, %p25
    %p27 = scmp.ne.s32.totalorder %s19, %s22
    %p28 = scmp.eq.s32.totalorder %s9, 0
    %p29 = por %p27, %p28
    %p30 = scmp.ne.s32.totalorder %s19, %s22
    %p31 = scmp.eq.s32.totalorder %s14, 1
    %p32 = por %p30, %p31
    %p33 = scmp.ne.s32.totalorder %s22, %s23
    %p34 = scmp.eq.s32.totalorder %s14, 0
    %p35 = por %p33, %p34
    %p36 = scmp.ne.s32.totalorder %s22, %s23
    %p37 = scmp.eq.s32.totalorder %s15, 1
    %p38 = por %p36, %p37
    %p40 = scmp.ne.s32.totalorder %s23, %s39
    %p41 = scmp.eq.s32.totalorder %s15, 0
    %p42 = por %p40, %p41
    %s44 = sadd.s32 %s43, 1
    %p47 = scmp.eq.s32.totalorder %s9, 1
    %p48 = scmp.ne.s32.totalorder %s43, %s45
    %p49 = scmp.eq.s32.totalorder %s9, 0
    %p50 = por %p48, %p49
    %p51 = scmp.ne.s32.totalorder %s43, %s45
    %p52 = scmp.eq.s32.totalorder %s14, 1
    %p53 = por %p51, %p52
    %p54 = scmp.ne.s32.totalorder %s45, %s46
    %p55 = scmp.eq.s32.totalorder %s14, 0
    %p56 = por %p54, %p55
    %p57 = scmp.ne.s32.totalorder %s45, %s46
    %p58 = scmp.eq.s32.totalorder %s15, 1
    %p59 = por %p57, %p58
    %p61 = scmp.ne.s32.totalorder %s46, %s60
    %p62 = scmp.eq.s32.totalorder %s15, 0
    %p63 = por %p61, %p62
    %s65 = sadd.s32 %s64, 1
    %p68 = scmp.eq.s32.totalorder %s9, 1
    %p69 = scmp.ne.s32.totalorder %s64, %s66
    %p70 = scmp.eq.s32.totalorder %s9, 0
    %p71 = por %p69, %p70
    %p72 = scmp.ne.s32.totalorder %s64, %s66
    %p73 = scmp.eq.s32.totalorder %s14, 1
    %p74 = por %p72, %p73
    %p75 = scmp.ne.s32.totalorder %s66, %s67
    %p76 = scmp.eq.s32.totalorder %s14, 0
    %p77 = por %p75, %p76
    %p78 = scmp.ne.s32.totalorder %s66, %s67
    %p79 = scmp.eq.s32.totalorder %s15, 1
    %p80 = por %p78, %p79
    %p82 = scmp.ne.s32.totalorder %s67, %s81
    %p83 = scmp.eq.s32.totalorder %s15, 0
    %p84 = por %p82, %p83
    %s85 = ssub.s32 %s9, %s16
    %p86 = scmp.eq.s32.totalorder %s85, 0
    %s88 = sadd.s32 %s87, 1
    %s89 = scalar_select %p86, %s87, %s88
    %p92 = pneg %p86
    %p93 = scmp.eq.s32.totalorder %s9, 1
    %p94 = por %p92, %p93
    %p95 = scmp.ne.s32.totalorder %s87, %s90
    %p96 = scmp.eq.s32.totalorder %s9, 0
    %p97 = por %p95, %p96
    %p98 = scmp.ne.s32.totalorder %s87, %s90
    %p99 = scmp.eq.s32.totalorder %s14, 1
    %p100 = por %p98, %p99
    %p101 = scmp.ne.s32.totalorder %s90, %s91
    %p102 = scmp.eq.s32.totalorder %s14, 0
    %p103 = por %p101, %p102
    %p104 = scmp.ne.s32.totalorder %s90, %s91
    %p105 = scmp.eq.s32.totalorder %s15, 1
    %p106 = por %p104, %p105
    %p108 = scmp.ne.s32.totalorder %s91, %s107
    %p109 = scmp.eq.s32.totalorder %s15, 0
    %p110 = por %p108, %p109
    %p111 = scmp.le.s32.totalorder 1, %s9
    %p112 = scmp.lt.s32.totalorder %s9, 3
    %p113 = pnand %p111, %p112
    %p114 = pneg %p113
    // Predicated region
    $region9: #{net_forward.4} parent=5 // pred_check
      _
    $region10: #{net_forward.4} parent=5 // pred_check_branch
      %116 = sbr.rel (%p113) target = $region12
    $region11: #{net_forward.4} parent=5 // pred_region
      %s117 = ssub.s32 %s9, 1
      // Predicated region
      $region13: #{net_forward.4} parent=11 // pred_check
        %p118 = pneg %p56
      $region14: #{net_forward.4} parent=11 // pred_check_branch
        %120 = sbr.rel (%p118) target = $region16
      $region15: #{net_forward.4} parent=11 // pred_region
        _
      $region16: #{net_forward.4} parent=11 // pred_fallthru
        _
      // Predicated region
      $region17: #{net_forward.4} parent=11 // pred_check
        %p121 = pneg %p77
      $region18: #{net_forward.4} parent=11 // pred_check_branch
        %123 = sbr.rel (%p121) target = $region20
      $region19: #{net_forward.4} parent=11 // pred_region
        _
      $region20: #{net_forward.4} parent=11 // pred_fallthru
        _
    $region12: #{net_forward.4} parent=5 // pred_fallthru
      _
    %p124 = scmp.lt.s32.totalorder %s9, 2
    // Predicated region
    $region21: #{net_forward.4} parent=5 // pred_check
      %p125 = pneg %p124
    $region22: #{net_forward.4} parent=5 // pred_check_branch
      %127 = sbr.rel (%p125) target = $region24
    $region23: #{net_forward.4} parent=5 // pred_region
      // Predicated region
      $region25: #{net_forward.4} parent=23 // pred_check
        %p128 = pneg %p29
      $region26: #{net_forward.4} parent=23 // pred_check_branch
        %130 = sbr.rel (%p128) target = $region28
      $region27: #{net_forward.4} parent=23 // pred_region
        %p131 = scmp.lt.s32.totalorder %s9, 1
        %s132 = scalar_select %p131, %s9, 1
        %s133 = smul.addr %s132, 120
        %s134 = smul.addr %s133, 8
        %s135 = scalar_lea.vmem %s0, %s134
      $region28: #{net_forward.4} parent=23 // pred_fallthru
        _
    $region24: #{net_forward.4} parent=5 // pred_fallthru
      _
    %p136 = scmp.le.s32.totalorder 1, %s9
    %p137 = scmp.lt.s32.totalorder %s9, 3
    %p138 = pnand %p136, %p137
    %p139 = pneg %p138
    // Predicated region
    $region29: #{net_forward.4} parent=5 // pred_check
      _
    $region30: #{net_forward.4} parent=5 // pred_check_branch
      %141 = sbr.rel (%p138) target = $region32
    $region31: #{net_forward.4} parent=5 // pred_region
      %s142 = ssub.s32 %s9, 1
      %p143 = scmp.lt.s32.totalorder %s14, 1
      %s144 = scalar_select %p143, %s14, 1
      %s145 = smul.addr %s144, 120
      %s146 = smul.addr %s145, 8
      %s147 = scalar_lea.vmem %s0, %s146
      %p148 = pneg %p35
      %p149 = pneg %p32
      %p150 = pneg %p56
      %p151 = pneg %p53
      %p152 = pneg %p77
      %p153 = pneg %p74
      %p154 = pneg %p103
      %p155 = pneg %p100
      %p156 = scmp.lt.s32.totalorder %s14, 1
      %s157 = scalar_select %p156, %s14, 1
      %s158 = smul.addr %s157, 32
      %s159 = smul.addr %s158, 8
      %s160 = scalar_lea.vmem %s3, %s159
      %p161 = scmp.lt.s32.totalorder %s14, 1
      %s162 = scalar_select %p161, %s14, 1
      %s163 = smul.addr %s162, 120
      %s164 = smul.addr %s163, 8
      %s165 = scalar_lea.vmem %s0, %s164
      %p166 = scmp.lt.s32.totalorder %s14, 1
      %s167 = scalar_select %p166, %s14, 1
      %s168 = smul.addr %s167, 32
      %s169 = smul.addr %s168, 8
      %s170 = scalar_lea.vmem %s3, %s169
      %vm171 = vcmask 261120
      %172 = vst.msk [vmem:[%s170] sm:$0xff] %vm171, 0.0
      %173 = vst.msk [vmem:[%s170 + $0x8] sm:$0xff] %vm171, 0.0
      %174 = vst.msk [vmem:[%s170 + $0x10] sm:$0xff] %vm171, 0.0
      %175 = vst.msk [vmem:[%s170 + $0x18] sm:$0xff] %vm171, 0.0
      %176 = vst.msk [vmem:[%s170 + $0x20] sm:$0xff] %vm171, 0.0
      %177 = vst.msk [vmem:[%s170 + $0x28] sm:$0xff] %vm171, 0.0
      %178 = vst.msk [vmem:[%s170 + $0x30] sm:$0xff] %vm171, 0.0
      %179 = vst.msk [vmem:[%s170 + $0x38] sm:$0xff] %vm171, 0.0
      %180 = vst.msk [vmem:[%s170 + $0x40] sm:$0xff] %vm171, 0.0
      %181 = vst.msk [vmem:[%s170 + $0x48] sm:$0xff] %vm171, 0.0
      %182 = vst.msk [vmem:[%s170 + $0x50] sm:$0xff] %vm171, 0.0
      %183 = vst.msk [vmem:[%s170 + $0x58] sm:$0xff] %vm171, 0.0
      %184 = vst.msk [vmem:[%s170 + $0x60] sm:$0xff] %vm171, 0.0
      %185 = vst.msk [vmem:[%s170 + $0x68] sm:$0xff] %vm171, 0.0
      %186 = vst.msk [vmem:[%s170 + $0x70] sm:$0xff] %vm171, 0.0
      %187 = vst.msk [vmem:[%s170 + $0x78] sm:$0xff] %vm171, 0.0
      %188 = vst.msk [vmem:[%s170 + $0x80] sm:$0xff] %vm171, 0.0
      %189 = vst.msk [vmem:[%s170 + $0x88] sm:$0xff] %vm171, 0.0
      %190 = vst.msk [vmem:[%s170 + $0x90] sm:$0xff] %vm171, 0.0
      %191 = vst.msk [vmem:[%s170 + $0x98] sm:$0xff] %vm171, 0.0
      %192 = vst.msk [vmem:[%s170 + $0xa0] sm:$0xff] %vm171, 0.0
      %193 = vst.msk [vmem:[%s170 + $0xa8] sm:$0xff] %vm171, 0.0
      %194 = vst.msk [vmem:[%s170 + $0xb0] sm:$0xff] %vm171, 0.0
      %195 = vst.msk [vmem:[%s170 + $0xb8] sm:$0xff] %vm171, 0.0
      %196 = vst.msk [vmem:[%s170 + $0xc0] sm:$0xff] %vm171, 0.0
      %197 = vst.msk [vmem:[%s170 + $0xc8] sm:$0xff] %vm171, 0.0
      %198 = vst.msk [vmem:[%s170 + $0xd0] sm:$0xff] %vm171, 0.0
      %199 = vst.msk [vmem:[%s170 + $0xd8] sm:$0xff] %vm171, 0.0
      %200 = vst.msk [vmem:[%s170 + $0xe0] sm:$0xff] %vm171, 0.0
      %201 = vst.msk [vmem:[%s170 + $0xe8] sm:$0xff] %vm171, 0.0
      %202 = vst.msk [vmem:[%s170 + $0xf0] sm:$0xff] %vm171, 0.0
      %203 = vst.msk [vmem:[%s170 + $0xf8] sm:$0xff] %vm171, 0.0
      %v204 = vlaneseq
      %v205 = vshrl.u32 %v204, 7
      %v206 = vadd.s32 %v205, 8
      %v207 = vlaneseq
      %v208 = vand.u32 %v207, 127
      %v209 = vmul.u32 %v205, 2
      %v210 = vmul.u32 %v206, 2
      %vm211 = vcmp.eq.s32.totalorder %v208, %v209
      %vm212 = vcmp.eq.s32.totalorder %v208, %v210
      %v213 = vsel %vm211, 1, 0
      %v214 = vsel %vm212, 1, 0
      %v215 = vcvt.s32.f32 %v213
      %v216 = vcvt.s32.f32 %v214
      %v217 = vadd.s32 %v209, 1
      %v218 = vadd.s32 %v210, 1
      %vm219 = vcmp.eq.s32.totalorder %v208, %v217
      %vm220 = vcmp.eq.s32.totalorder %v208, %v218
      %v221 = vsel %vm219, 1, 0
      %v222 = vsel %vm220, 1, 0
      %v223 = vcvt.s32.f32 %v221
      %v224 = vcvt.s32.f32 %v222
      loop: start=0, step=1, limit=14
      $region33: #{net_forward.4} parent=31 // loop_pre_header
        _
      $region34: #{net_forward.4} parent=31 // loop_header
        %s226 = sphi 0, %s230
        %p227 = scmp.ge.s32.totalorder %s226, 14
      $region35: #{net_forward.4} parent=31 // loop_header_branch
        %229 = sbr.rel (%p227) target = $region39
      $region36: #{net_forward.4} parent=31 // loop_body
        %s231 = smul.u32 %s226, 2
        %s232 = smul.u32 %s231, 32
        %s233 = scalar_lea.vmem %s165, %s232
        %v234 = vld [vmem:[%s233] sm:$0xff]
        %v235 = vld [vmem:[%s233 + $0x8] sm:$0xff]
        %v236 = vld [vmem:[%s233 + $0x10] sm:$0xff]
        %v237 = vld [vmem:[%s233 + $0x18] sm:$0xf]
        %v238 = vld [vmem:[%s1] sm:$0xff]
        %v239 = vld [vmem:[%s233 + $0x1] sm:$0xff]
        %v240 = vld [vmem:[%s233 + $0x9] sm:$0xff]
        %v241 = vld [vmem:[%s233 + $0x11] sm:$0xff]
        %v242 = vld [vmem:[%s233 + $0x19] sm:$0xf]
        %v243 = vld [vmem:[%s1 + $0x8] sm:$0xff]
        %vm244 = vcmask 64512
        %v246 = vsel %vm244, %v239, 0
        %v249 = vsel %vm244, %v240, 0
        %v252 = vsel %vm244, %v241, 0
        %v255 = vsel %vm244, %v242, 0
        %257 = vmatpush.msra.mxu0 0.0
        %258 = vmatpush.msra.mxu0 0.0
        %259 = vmatpush.msra.mxu0 0.0
        %260 = vmatpush.msra.mxu0 0.0
        %261 = vmatpush.msra.mxu0 0.0
        %262 = vmatpush.msra.mxu0 0.0
        %263 = vmatpush.msra.mxu0 0.0
        %264 = vmatpush.msra.mxu0 0.0
        %265 = vmatpush.msra.mxu0 0.0
        %266 = vmatpush.msra.mxu0 0.0
        %267 = vmatpush.msra.mxu0 0.0
        %268 = vmatpush.msra.mxu0 0.0
        %269 = vmatpush.msra.mxu0 0.0
        %270 = vmatpush.msra.mxu0 0.0
        %271 = vmatpush.msra.mxu0 0.0
        %272 = vmatpush.msra.mxu0 %v243
        %273 = vmatmul.f32.gmra.mxu0 %v246
        %v274 = vpop.f32.mrf.mxu0
        %v275 = vadd.f32 0.0, %v274
        %276 = vmatmul.f32.gmra.mxu0 %v249
        %v277 = vpop.f32.mrf.mxu0
        %v278 = vadd.f32 0.0, %v277
        %279 = vmatmul.f32.gmra.mxu0 %v252
        %v280 = vpop.f32.mrf.mxu0
        %v281 = vadd.f32 0.0, %v280
        %282 = vmatmul.f32.gmra.mxu0 %v255
        %v283 = vpop.f32.mrf.mxu0
        %v284 = vadd.f32 0.0, %v283
        %285 = vdwg.mxu0
        %v287 = vsel %vm244, %v234, 0
        %v290 = vsel %vm244, %v235, 0
        %v293 = vsel %vm244, %v236, 0
        %v296 = vsel %vm244, %v237, 0
        %298 = vmatpush.msra.mxu0 0.0
        %299 = vmatpush.msra.mxu0 0.0
        %300 = vmatpush.msra.mxu0 0.0
        %301 = vmatpush.msra.mxu0 0.0
        %302 = vmatpush.msra.mxu0 0.0
        %303 = vmatpush.msra.mxu0 0.0
        %304 = vmatpush.msra.mxu0 0.0
        %305 = vmatpush.msra.mxu0 0.0
        %306 = vmatpush.msra.mxu0 0.0
        %307 = vmatpush.msra.mxu0 0.0
        %308 = vmatpush.msra.mxu0 0.0
        %309 = vmatpush.msra.mxu0 0.0
        %310 = vmatpush.msra.mxu0 0.0
        %311 = vmatpush.msra.mxu0 0.0
        %312 = vmatpush.msra.mxu0 0.0
        %313 = vmatpush.msra.mxu0 %v238
        %314 = vmatmul.f32.gmra.mxu0 %v287
        %v315 = vpop.f32.mrf.mxu0
        %v316 = vadd.f32 %v275, %v315
        %317 = vmatmul.f32.gmra.mxu0 %v290
        %v318 = vpop.f32.mrf.mxu0
        %v319 = vadd.f32 %v278, %v318
        %320 = vmatmul.f32.gmra.mxu0 %v293
        %v321 = vpop.f32.mrf.mxu0
        %v322 = vadd.f32 %v281, %v321
        %323 = vmatmul.f32.gmra.mxu0 %v296
        %v324 = vpop.f32.mrf.mxu0
        %v325 = vadd.f32 %v284, %v324
        %326 = vdwg.mxu0
        %v327 = vld [vmem:[%s233 + $0x2] sm:$0xff]
        %v328 = vld [vmem:[%s233 + $0xa] sm:$0xff]
        %v329 = vld [vmem:[%s233 + $0x12] sm:$0xff]
        %v330 = vld [vmem:[%s233 + $0x1a] sm:$0xf]
        %v331 = vld [vmem:[%s1 + $0x10] sm:$0xff]
        %v333 = vsel %vm244, %v327, 0
        %v336 = vsel %vm244, %v328, 0
        %v339 = vsel %vm244, %v329, 0
        %v342 = vsel %vm244, %v330, 0
        %344 = vmatpush.msra.mxu0 0.0
        %345 = vmatpush.msra.mxu0 0.0
        %346 = vmatpush.msra.mxu0 0.0
        %347 = vmatpush.msra.mxu0 0.0
        %348 = vmatpush.msra.mxu0 0.0
        %349 = vmatpush.msra.mxu0 0.0
        %350 = vmatpush.msra.mxu0 0.0
        %351 = vmatpush.msra.mxu0 0.0
        %352 = vmatpush.msra.mxu0 0.0
        %353 = vmatpush.msra.mxu0 0.0
        %354 = vmatpush.msra.mxu0 0.0
        %355 = vmatpush.msra.mxu0 0.0
        %356 = vmatpush.msra.mxu0 0.0
        %357 = vmatpush.msra.mxu0 0.0
        %358 = vmatpush.msra.mxu0 0.0
        %359 = vmatpush.msra.mxu0 %v331
        %360 = vmatmul.f32.gmra.mxu0 %v333
        %v361 = vpop.f32.mrf.mxu0
        %v362 = vadd.f32 0.0, %v361
        %363 = vmatmul.f32.gmra.mxu0 %v336
        %v364 = vpop.f32.mrf.mxu0
        %v365 = vadd.f32 0.0, %v364
        %366 = vmatmul.f32.gmra.mxu0 %v339
        %v367 = vpop.f32.mrf.mxu0
        %v368 = vadd.f32 0.0, %v367
        %369 = vmatmul.f32.gmra.mxu0 %v342
        %v370 = vpop.f32.mrf.mxu0
        %v371 = vadd.f32 0.0, %v370
        %372 = vdwg.mxu0
        %v373 = vadd.f32 %v316, %v362
        %v374 = vadd.f32 %v319, %v365
        %v375 = vadd.f32 %v322, %v368
        %v376 = vadd.f32 %v325, %v371
        %s377 = sadd.s32 %s231, 1
        %s378 = smul.u32 %s377, 32
        %s379 = scalar_lea.vmem %s165, %s378
        %v380 = vld [vmem:[%s379] sm:$0xff]
        %v381 = vld [vmem:[%s379 + $0x8] sm:$0xff]
        %v382 = vld [vmem:[%s379 + $0x10] sm:$0xff]
        %v383 = vld [vmem:[%s379 + $0x18] sm:$0xf]
        %v384 = vld [vmem:[%s1 + $0x18] sm:$0xff]
        %v386 = vsel %vm244, %v380, 0
        %v389 = vsel %vm244, %v381, 0
        %v392 = vsel %vm244, %v382, 0
        %v395 = vsel %vm244, %v383, 0
        %397 = vmatpush.msra.mxu0 0.0
        %398 = vmatpush.msra.mxu0 0.0
        %399 = vmatpush.msra.mxu0 0.0
        %400 = vmatpush.msra.mxu0 0.0
        %401 = vmatpush.msra.mxu0 0.0
        %402 = vmatpush.msra.mxu0 0.0
        %403 = vmatpush.msra.mxu0 0.0
        %404 = vmatpush.msra.mxu0 0.0
        %405 = vmatpush.msra.mxu0 0.0
        %406 = vmatpush.msra.mxu0 0.0
        %407 = vmatpush.msra.mxu0 0.0
        %408 = vmatpush.msra.mxu0 0.0
        %409 = vmatpush.msra.mxu0 0.0
        %410 = vmatpush.msra.mxu0 0.0
        %411 = vmatpush.msra.mxu0 0.0
        %412 = vmatpush.msra.mxu0 %v384
        %413 = vmatmul.f32.gmra.mxu0 %v386
        %v414 = vpop.f32.mrf.mxu0
        %v415 = vadd.f32 0.0, %v414
        %416 = vmatmul.f32.gmra.mxu0 %v389
        %v417 = vpop.f32.mrf.mxu0
        %v418 = vadd.f32 0.0, %v417
        %419 = vmatmul.f32.gmra.mxu0 %v392
        %v420 = vpop.f32.mrf.mxu0
        %v421 = vadd.f32 0.0, %v420
        %422 = vmatmul.f32.gmra.mxu0 %v395
        %v423 = vpop.f32.mrf.mxu0
        %v424 = vadd.f32 0.0, %v423
        %425 = vdwg.mxu0
        %v426 = vadd.f32 %v373, %v415
        %v427 = vadd.f32 %v374, %v418
        %v428 = vadd.f32 %v375, %v421
        %v429 = vadd.f32 %v376, %v424
        %v430 = vld [vmem:[%s379 + $0x1] sm:$0xff]
        %v431 = vld [vmem:[%s379 + $0x9] sm:$0xff]
        %v432 = vld [vmem:[%s379 + $0x11] sm:$0xff]
        %v433 = vld [vmem:[%s379 + $0x19] sm:$0xf]
        %v434 = vld [vmem:[%s1 + $0x20] sm:$0xff]
        %v436 = vsel %vm244, %v430, 0
        %v439 = vsel %vm244, %v431, 0
        %v442 = vsel %vm244, %v432, 0
        %v445 = vsel %vm244, %v433, 0
        %447 = vmatpush.msra.mxu0 0.0
        %448 = vmatpush.msra.mxu0 0.0
        %449 = vmatpush.msra.mxu0 0.0
        %450 = vmatpush.msra.mxu0 0.0
        %451 = vmatpush.msra.mxu0 0.0
        %452 = vmatpush.msra.mxu0 0.0
        %453 = vmatpush.msra.mxu0 0.0
        %454 = vmatpush.msra.mxu0 0.0
        %455 = vmatpush.msra.mxu0 0.0
        %456 = vmatpush.msra.mxu0 0.0
        %457 = vmatpush.msra.mxu0 0.0
        %458 = vmatpush.msra.mxu0 0.0
        %459 = vmatpush.msra.mxu0 0.0
        %460 = vmatpush.msra.mxu0 0.0
        %461 = vmatpush.msra.mxu0 0.0
        %462 = vmatpush.msra.mxu0 %v434
        %463 = vmatmul.f32.gmra.mxu0 %v436
        %v464 = vpop.f32.mrf.mxu0
        %v465 = vadd.f32 0.0, %v464
        %466 = vmatmul.f32.gmra.mxu0 %v439
        %v467 = vpop.f32.mrf.mxu0
        %v468 = vadd.f32 0.0, %v467
        %469 = vmatmul.f32.gmra.mxu0 %v442
        %v470 = vpop.f32.mrf.mxu0
        %v471 = vadd.f32 0.0, %v470
        %472 = vmatmul.f32.gmra.mxu0 %v445
        %v473 = vpop.f32.mrf.mxu0
        %v474 = vadd.f32 0.0, %v473
        %475 = vdwg.mxu0
        %v476 = vadd.f32 %v426, %v465
        %v477 = vadd.f32 %v427, %v468
        %v478 = vadd.f32 %v428, %v471
        %v479 = vadd.f32 %v429, %v474
        %v480 = vld [vmem:[%s379 + $0x2] sm:$0xff]
        %v481 = vld [vmem:[%s379 + $0xa] sm:$0xff]
        %v482 = vld [vmem:[%s379 + $0x12] sm:$0xff]
        %v483 = vld [vmem:[%s379 + $0x1a] sm:$0xf]
        %v484 = vld [vmem:[%s1 + $0x28] sm:$0xff]
        %v486 = vsel %vm244, %v480, 0
        %v489 = vsel %vm244, %v481, 0
        %v492 = vsel %vm244, %v482, 0
        %v495 = vsel %vm244, %v483, 0
        %497 = vmatpush.msra.mxu0 0.0
        %498 = vmatpush.msra.mxu0 0.0
        %499 = vmatpush.msra.mxu0 0.0
        %500 = vmatpush.msra.mxu0 0.0
        %501 = vmatpush.msra.mxu0 0.0
        %502 = vmatpush.msra.mxu0 0.0
        %503 = vmatpush.msra.mxu0 0.0
        %504 = vmatpush.msra.mxu0 0.0
        %505 = vmatpush.msra.mxu0 0.0
        %506 = vmatpush.msra.mxu0 0.0
        %507 = vmatpush.msra.mxu0 0.0
        %508 = vmatpush.msra.mxu0 0.0
        %509 = vmatpush.msra.mxu0 0.0
        %510 = vmatpush.msra.mxu0 0.0
        %511 = vmatpush.msra.mxu0 0.0
        %512 = vmatpush.msra.mxu0 %v484
        %513 = vmatmul.f32.gmra.mxu0 %v486
        %v514 = vpop.f32.mrf.mxu0
        %v515 = vadd.f32 0.0, %v514
        %516 = vmatmul.f32.gmra.mxu0 %v489
        %v517 = vpop.f32.mrf.mxu0
        %v518 = vadd.f32 0.0, %v517
        %519 = vmatmul.f32.gmra.mxu0 %v492
        %v520 = vpop.f32.mrf.mxu0
        %v521 = vadd.f32 0.0, %v520
        %522 = vmatmul.f32.gmra.mxu0 %v495
        %v523 = vpop.f32.mrf.mxu0
        %v524 = vadd.f32 0.0, %v523
        %525 = vdwg.mxu0
        %v526 = vadd.f32 %v476, %v515
        %v527 = vadd.f32 %v477, %v518
        %v528 = vadd.f32 %v478, %v521
        %v529 = vadd.f32 %v479, %v524
        %s530 = sadd.s32 %s231, 2
        %s531 = smul.u32 %s530, 32
        %s532 = scalar_lea.vmem %s165, %s531
        %v533 = vld [vmem:[%s532] sm:$0xff]
        %v534 = vld [vmem:[%s532 + $0x8] sm:$0xff]
        %v535 = vld [vmem:[%s532 + $0x10] sm:$0xff]
        %v536 = vld [vmem:[%s532 + $0x18] sm:$0xf]
        %v537 = vld [vmem:[%s1 + $0x30] sm:$0xff]
        %v539 = vsel %vm244, %v533, 0
        %v542 = vsel %vm244, %v534, 0
        %v545 = vsel %vm244, %v535, 0
        %v548 = vsel %vm244, %v536, 0
        %550 = vmatpush.msra.mxu0 0.0
        %551 = vmatpush.msra.mxu0 0.0
        %552 = vmatpush.msra.mxu0 0.0
        %553 = vmatpush.msra.mxu0 0.0
        %554 = vmatpush.msra.mxu0 0.0
        %555 = vmatpush.msra.mxu0 0.0
        %556 = vmatpush.msra.mxu0 0.0
        %557 = vmatpush.msra.mxu0 0.0
        %558 = vmatpush.msra.mxu0 0.0
        %559 = vmatpush.msra.mxu0 0.0
        %560 = vmatpush.msra.mxu0 0.0
        %561 = vmatpush.msra.mxu0 0.0
        %562 = vmatpush.msra.mxu0 0.0
        %563 = vmatpush.msra.mxu0 0.0
        %564 = vmatpush.msra.mxu0 0.0
        %565 = vmatpush.msra.mxu0 %v537
        %566 = vmatmul.f32.gmra.mxu0 %v539
        %v567 = vpop.f32.mrf.mxu0
        %v568 = vadd.f32 0.0, %v567
        %569 = vmatmul.f32.gmra.mxu0 %v542
        %v570 = vpop.f32.mrf.mxu0
        %v571 = vadd.f32 0.0, %v570
        %572 = vmatmul.f32.gmra.mxu0 %v545
        %v573 = vpop.f32.mrf.mxu0
        %v574 = vadd.f32 0.0, %v573
        %575 = vmatmul.f32.gmra.mxu0 %v548
        %v576 = vpop.f32.mrf.mxu0
        %v577 = vadd.f32 0.0, %v576
        %578 = vdwg.mxu0
        %v579 = vadd.f32 %v526, %v568
        %v580 = vadd.f32 %v527, %v571
        %v581 = vadd.f32 %v528, %v574
        %v582 = vadd.f32 %v529, %v577
        %v583 = vld [vmem:[%s532 + $0x1] sm:$0xff]
        %v584 = vld [vmem:[%s532 + $0x9] sm:$0xff]
        %v585 = vld [vmem:[%s532 + $0x11] sm:$0xff]
        %v586 = vld [vmem:[%s532 + $0x19] sm:$0xf]
        %v587 = vld [vmem:[%s1 + $0x38] sm:$0xff]
        %v589 = vsel %vm244, %v583, 0
        %v592 = vsel %vm244, %v584, 0
        %v595 = vsel %vm244, %v585, 0
        %v598 = vsel %vm244, %v586, 0
        %600 = vmatpush.msra.mxu0 0.0
        %601 = vmatpush.msra.mxu0 0.0
        %602 = vmatpush.msra.mxu0 0.0
        %603 = vmatpush.msra.mxu0 0.0
        %604 = vmatpush.msra.mxu0 0.0
        %605 = vmatpush.msra.mxu0 0.0
        %606 = vmatpush.msra.mxu0 0.0
        %607 = vmatpush.msra.mxu0 0.0
        %608 = vmatpush.msra.mxu0 0.0
        %609 = vmatpush.msra.mxu0 0.0
        %610 = vmatpush.msra.mxu0 0.0
        %611 = vmatpush.msra.mxu0 0.0
        %612 = vmatpush.msra.mxu0 0.0
        %613 = vmatpush.msra.mxu0 0.0
        %614 = vmatpush.msra.mxu0 0.0
        %615 = vmatpush.msra.mxu0 %v587
        %616 = vmatmul.f32.gmra.mxu0 %v589
        %v617 = vpop.f32.mrf.mxu0
        %v618 = vadd.f32 0.0, %v617
        %619 = vmatmul.f32.gmra.mxu0 %v592
        %v620 = vpop.f32.mrf.mxu0
        %v621 = vadd.f32 0.0, %v620
        %622 = vmatmul.f32.gmra.mxu0 %v595
        %v623 = vpop.f32.mrf.mxu0
        %v624 = vadd.f32 0.0, %v623
        %625 = vmatmul.f32.gmra.mxu0 %v598
        %v626 = vpop.f32.mrf.mxu0
        %v627 = vadd.f32 0.0, %v626
        %628 = vdwg.mxu0
        %v629 = vadd.f32 %v579, %v618
        %v630 = vadd.f32 %v580, %v621
        %v631 = vadd.f32 %v581, %v624
        %v632 = vadd.f32 %v582, %v627
        %v633 = vld [vmem:[%s532 + $0x2] sm:$0xff]
        %v634 = vld [vmem:[%s532 + $0xa] sm:$0xff]
        %v635 = vld [vmem:[%s532 + $0x12] sm:$0xff]
        %v636 = vld [vmem:[%s532 + $0x1a] sm:$0xf]
        %v637 = vld [vmem:[%s1 + $0x40] sm:$0xff]
        %v639 = vsel %vm244, %v633, 0
        %v642 = vsel %vm244, %v634, 0
        %v645 = vsel %vm244, %v635, 0
        %v648 = vsel %vm244, %v636, 0
        %650 = vmatpush.msra.mxu0 0.0
        %651 = vmatpush.msra.mxu0 0.0
        %652 = vmatpush.msra.mxu0 0.0
        %653 = vmatpush.msra.mxu0 0.0
        %654 = vmatpush.msra.mxu0 0.0
        %655 = vmatpush.msra.mxu0 0.0
        %656 = vmatpush.msra.mxu0 0.0
        %657 = vmatpush.msra.mxu0 0.0
        %658 = vmatpush.msra.mxu0 0.0
        %659 = vmatpush.msra.mxu0 0.0
        %660 = vmatpush.msra.mxu0 0.0
        %661 = vmatpush.msra.mxu0 0.0
        %662 = vmatpush.msra.mxu0 0.0
        %663 = vmatpush.msra.mxu0 0.0
        %664 = vmatpush.msra.mxu0 0.0
        %665 = vmatpush.msra.mxu0 %v637
        %666 = vmatmul.f32.gmra.mxu0 %v639
        %v667 = vpop.f32.mrf.mxu0
        %v668 = vadd.f32 0.0, %v667
        %669 = vmatmul.f32.gmra.mxu0 %v642
        %v670 = vpop.f32.mrf.mxu0
        %v671 = vadd.f32 0.0, %v670
        %672 = vmatmul.f32.gmra.mxu0 %v645
        %v673 = vpop.f32.mrf.mxu0
        %v674 = vadd.f32 0.0, %v673
        %675 = vmatmul.f32.gmra.mxu0 %v648
        %v676 = vpop.f32.mrf.mxu0
        %v677 = vadd.f32 0.0, %v676
        %678 = vdwg.mxu0
        %v679 = vadd.f32 %v629, %v668
        %v680 = vadd.f32 %v630, %v671
        %v681 = vadd.f32 %v631, %v674
        %v682 = vadd.f32 %v632, %v677
        %v683 = vld [vmem:[%s2] sm:$0x1]
        %v685 = vperm.slane %v683, 0
        %v687 = vadd.f32 %v679, %v685
        %v688 = vadd.f32 %v680, %v685
        %v689 = vadd.f32 %v681, %v685
        %v690 = vadd.f32 %v682, %v685
        %v691 = vmax.f32 %v687, 0.0
        %v692 = vmax.f32 %v688, 0.0
        %v693 = vmax.f32 %v689, 0.0
        %v694 = vmax.f32 %v690, 0.0
        %695 = vmatpush.msra.mxu0 0.0
        %696 = vmatpush.msra.mxu0 0.0
        %697 = vmatpush.msra.mxu0 0.0
        %698 = vmatpush.msra.mxu0 0.0
        %699 = vmatpush.msra.mxu0 0.0
        %700 = vmatpush.msra.mxu0 0.0
        %701 = vmatpush.msra.mxu0 0.0
        %702 = vmatpush.msra.mxu0 0.0
        %703 = vmatpush.msra.mxu0 0.0
        %704 = vmatpush.msra.mxu0 0.0
        %705 = vmatpush.msra.mxu0 0.0
        %706 = vmatpush.msra.mxu0 0.0
        %707 = vmatpush.msra.mxu0 0.0
        %708 = vmatpush.msra.mxu0 0.0
        %709 = vmatpush.msra.mxu0 0.0
        %710 = vmatpush.msra.mxu0 %v243
        %711 = vmatmul.f32.gmra.mxu0 %v436
        %v712 = vpop.f32.mrf.mxu0
        %v713 = vadd.f32 0.0, %v712
        %714 = vmatmul.f32.gmra.mxu0 %v439
        %v715 = vpop.f32.mrf.mxu0
        %v716 = vadd.f32 0.0, %v715
        %717 = vmatmul.f32.gmra.mxu0 %v442
        %v718 = vpop.f32.mrf.mxu0
        %v719 = vadd.f32 0.0, %v718
        %720 = vmatmul.f32.gmra.mxu0 %v445
        %v721 = vpop.f32.mrf.mxu0
        %v722 = vadd.f32 0.0, %v721
        %723 = vdwg.mxu0
        %724 = vmatpush.msra.mxu0 0.0
        %725 = vmatpush.msra.mxu0 0.0
        %726 = vmatpush.msra.mxu0 0.0
        %727 = vmatpush.msra.mxu0 0.0
        %728 = vmatpush.msra.mxu0 0.0
        %729 = vmatpush.msra.mxu0 0.0
        %730 = vmatpush.msra.mxu0 0.0
        %731 = vmatpush.msra.mxu0 0.0
        %732 = vmatpush.msra.mxu0 0.0
        %733 = vmatpush.msra.mxu0 0.0
        %734 = vmatpush.msra.mxu0 0.0
        %735 = vmatpush.msra.mxu0 0.0
        %736 = vmatpush.msra.mxu0 0.0
        %737 = vmatpush.msra.mxu0 0.0
        %738 = vmatpush.msra.mxu0 0.0
        %739 = vmatpush.msra.mxu0 %v238
        %740 = vmatmul.f32.gmra.mxu0 %v386
        %v741 = vpop.f32.mrf.mxu0
        %v742 = vadd.f32 %v713, %v741
        %743 = vmatmul.f32.gmra.mxu0 %v389
        %v744 = vpop.f32.mrf.mxu0
        %v745 = vadd.f32 %v716, %v744
        %746 = vmatmul.f32.gmra.mxu0 %v392
        %v747 = vpop.f32.mrf.mxu0
        %v748 = vadd.f32 %v719, %v747
        %749 = vmatmul.f32.gmra.mxu0 %v395
        %v750 = vpop.f32.mrf.mxu0
        %v751 = vadd.f32 %v722, %v750
        %752 = vdwg.mxu0
        %753 = vmatpush.msra.mxu0 0.0
        %754 = vmatpush.msra.mxu0 0.0
        %755 = vmatpush.msra.mxu0 0.0
        %756 = vmatpush.msra.mxu0 0.0
        %757 = vmatpush.msra.mxu0 0.0
        %758 = vmatpush.msra.mxu0 0.0
        %759 = vmatpush.msra.mxu0 0.0
        %760 = vmatpush.msra.mxu0 0.0
        %761 = vmatpush.msra.mxu0 0.0
        %762 = vmatpush.msra.mxu0 0.0
        %763 = vmatpush.msra.mxu0 0.0
        %764 = vmatpush.msra.mxu0 0.0
        %765 = vmatpush.msra.mxu0 0.0
        %766 = vmatpush.msra.mxu0 0.0
        %767 = vmatpush.msra.mxu0 0.0
        %768 = vmatpush.msra.mxu0 %v331
        %769 = vmatmul.f32.gmra.mxu0 %v486
        %v770 = vpop.f32.mrf.mxu0
        %v771 = vadd.f32 0.0, %v770
        %772 = vmatmul.f32.gmra.mxu0 %v489
        %v773 = vpop.f32.mrf.mxu0
        %v774 = vadd.f32 0.0, %v773
        %775 = vmatmul.f32.gmra.mxu0 %v492
        %v776 = vpop.f32.mrf.mxu0
        %v777 = vadd.f32 0.0, %v776
        %778 = vmatmul.f32.gmra.mxu0 %v495
        %v779 = vpop.f32.mrf.mxu0
        %v780 = vadd.f32 0.0, %v779
        %781 = vdwg.mxu0
        %v782 = vadd.f32 %v742, %v771
        %v783 = vadd.f32 %v745, %v774
        %v784 = vadd.f32 %v748, %v777
        %v785 = vadd.f32 %v751, %v780
        %786 = vmatpush.msra.mxu0 0.0
        %787 = vmatpush.msra.mxu0 0.0
        %788 = vmatpush.msra.mxu0 0.0
        %789 = vmatpush.msra.mxu0 0.0
        %790 = vmatpush.msra.mxu0 0.0
        %791 = vmatpush.msra.mxu0 0.0
        %792 = vmatpush.msra.mxu0 0.0
        %793 = vmatpush.msra.mxu0 0.0
        %794 = vmatpush.msra.mxu0 0.0
        %795 = vmatpush.msra.mxu0 0.0
        %796 = vmatpush.msra.mxu0 0.0
        %797 = vmatpush.msra.mxu0 0.0
        %798 = vmatpush.msra.mxu0 0.0
        %799 = vmatpush.msra.mxu0 0.0
        %800 = vmatpush.msra.mxu0 0.0
        %801 = vmatpush.msra.mxu0 %v384
        %802 = vmatmul.f32.gmra.mxu0 %v539
        %v803 = vpop.f32.mrf.mxu0
        %v804 = vadd.f32 0.0, %v803
        %805 = vmatmul.f32.gmra.mxu0 %v542
        %v806 = vpop.f32.mrf.mxu0
        %v807 = vadd.f32 0.0, %v806
        %808 = vmatmul.f32.gmra.mxu0 %v545
        %v809 = vpop.f32.mrf.mxu0
        %v810 = vadd.f32 0.0, %v809
        %811 = vmatmul.f32.gmra.mxu0 %v548
        %v812 = vpop.f32.mrf.mxu0
        %v813 = vadd.f32 0.0, %v812
        %814 = vdwg.mxu0
        %v815 = vadd.f32 %v782, %v804
        %v816 = vadd.f32 %v783, %v807
        %v817 = vadd.f32 %v784, %v810
        %v818 = vadd.f32 %v785, %v813
        %819 = vmatpush.msra.mxu0 0.0
        %820 = vmatpush.msra.mxu0 0.0
        %821 = vmatpush.msra.mxu0 0.0
        %822 = vmatpush.msra.mxu0 0.0
        %823 = vmatpush.msra.mxu0 0.0
        %824 = vmatpush.msra.mxu0 0.0
        %825 = vmatpush.msra.mxu0 0.0
        %826 = vmatpush.msra.mxu0 0.0
        %827 = vmatpush.msra.mxu0 0.0
        %828 = vmatpush.msra.mxu0 0.0
        %829 = vmatpush.msra.mxu0 0.0
        %830 = vmatpush.msra.mxu0 0.0
        %831 = vmatpush.msra.mxu0 0.0
        %832 = vmatpush.msra.mxu0 0.0
        %833 = vmatpush.msra.mxu0 0.0
        %834 = vmatpush.msra.mxu0 %v434
        %835 = vmatmul.f32.gmra.mxu0 %v589
        %v836 = vpop.f32.mrf.mxu0
        %v837 = vadd.f32 0.0, %v836
        %838 = vmatmul.f32.gmra.mxu0 %v592
        %v839 = vpop.f32.mrf.mxu0
        %v840 = vadd.f32 0.0, %v839
        %841 = vmatmul.f32.gmra.mxu0 %v595
        %v842 = vpop.f32.mrf.mxu0
        %v843 = vadd.f32 0.0, %v842
        %844 = vmatmul.f32.gmra.mxu0 %v598
        %v845 = vpop.f32.mrf.mxu0
        %v846 = vadd.f32 0.0, %v845
        %847 = vdwg.mxu0
        %v848 = vadd.f32 %v815, %v837
        %v849 = vadd.f32 %v816, %v840
        %v850 = vadd.f32 %v817, %v843
        %v851 = vadd.f32 %v818, %v846
        %852 = vmatpush.msra.mxu0 0.0
        %853 = vmatpush.msra.mxu0 0.0
        %854 = vmatpush.msra.mxu0 0.0
        %855 = vmatpush.msra.mxu0 0.0
        %856 = vmatpush.msra.mxu0 0.0
        %857 = vmatpush.msra.mxu0 0.0
        %858 = vmatpush.msra.mxu0 0.0
        %859 = vmatpush.msra.mxu0 0.0
        %860 = vmatpush.msra.mxu0 0.0
        %861 = vmatpush.msra.mxu0 0.0
        %862 = vmatpush.msra.mxu0 0.0
        %863 = vmatpush.msra.mxu0 0.0
        %864 = vmatpush.msra.mxu0 0.0
        %865 = vmatpush.msra.mxu0 0.0
        %866 = vmatpush.msra.mxu0 0.0
        %867 = vmatpush.msra.mxu0 %v484
        %868 = vmatmul.f32.gmra.mxu0 %v639
        %v869 = vpop.f32.mrf.mxu0
        %v870 = vadd.f32 0.0, %v869
        %871 = vmatmul.f32.gmra.mxu0 %v642
        %v872 = vpop.f32.mrf.mxu0
        %v873 = vadd.f32 0.0, %v872
        %874 = vmatmul.f32.gmra.mxu0 %v645
        %v875 = vpop.f32.mrf.mxu0
        %v876 = vadd.f32 0.0, %v875
        %877 = vmatmul.f32.gmra.mxu0 %v648
        %v878 = vpop.f32.mrf.mxu0
        %v879 = vadd.f32 0.0, %v878
        %880 = vdwg.mxu0
        %v881 = vadd.f32 %v848, %v870
        %v882 = vadd.f32 %v849, %v873
        %v883 = vadd.f32 %v850, %v876
        %v884 = vadd.f32 %v851, %v879
        %s885 = sadd.s32 %s231, 3
        %s886 = smul.u32 %s885, 32
        %s887 = scalar_lea.vmem %s165, %s886
        %v888 = vld [vmem:[%s887] sm:$0xff]
        %v889 = vld [vmem:[%s887 + $0x8] sm:$0xff]
        %v890 = vld [vmem:[%s887 + $0x10] sm:$0xff]
        %v891 = vld [vmem:[%s887 + $0x18] sm:$0xf]
        %v893 = vsel %vm244, %v888, 0
        %v896 = vsel %vm244, %v889, 0
        %v899 = vsel %vm244, %v890, 0
        %v902 = vsel %vm244, %v891, 0
        %904 = vmatpush.msra.mxu0 0.0
        %905 = vmatpush.msra.mxu0 0.0
        %906 = vmatpush.msra.mxu0 0.0
        %907 = vmatpush.msra.mxu0 0.0
        %908 = vmatpush.msra.mxu0 0.0
        %909 = vmatpush.msra.mxu0 0.0
        %910 = vmatpush.msra.mxu0 0.0
        %911 = vmatpush.msra.mxu0 0.0
        %912 = vmatpush.msra.mxu0 0.0
        %913 = vmatpush.msra.mxu0 0.0
        %914 = vmatpush.msra.mxu0 0.0
        %915 = vmatpush.msra.mxu0 0.0
        %916 = vmatpush.msra.mxu0 0.0
        %917 = vmatpush.msra.mxu0 0.0
        %918 = vmatpush.msra.mxu0 0.0
        %919 = vmatpush.msra.mxu0 %v537
        %920 = vmatmul.f32.gmra.mxu0 %v893
        %v921 = vpop.f32.mrf.mxu0
        %v922 = vadd.f32 0.0, %v921
        %923 = vmatmul.f32.gmra.mxu0 %v896
        %v924 = vpop.f32.mrf.mxu0
        %v925 = vadd.f32 0.0, %v924
        %926 = vmatmul.f32.gmra.mxu0 %v899
        %v927 = vpop.f32.mrf.mxu0
        %v928 = vadd.f32 0.0, %v927
        %929 = vmatmul.f32.gmra.mxu0 %v902
        %v930 = vpop.f32.mrf.mxu0
        %v931 = vadd.f32 0.0, %v930
        %932 = vdwg.mxu0
        %v933 = vadd.f32 %v881, %v922
        %v934 = vadd.f32 %v882, %v925
        %v935 = vadd.f32 %v883, %v928
        %v936 = vadd.f32 %v884, %v931
        %v937 = vld [vmem:[%s887 + $0x1] sm:$0xff]
        %v938 = vld [vmem:[%s887 + $0x9] sm:$0xff]
        %v939 = vld [vmem:[%s887 + $0x11] sm:$0xff]
        %v940 = vld [vmem:[%s887 + $0x19] sm:$0xf]
        %v942 = vsel %vm244, %v937, 0
        %v945 = vsel %vm244, %v938, 0
        %v948 = vsel %vm244, %v939, 0
        %v951 = vsel %vm244, %v940, 0
        %953 = vmatpush.msra.mxu0 0.0
        %954 = vmatpush.msra.mxu0 0.0
        %955 = vmatpush.msra.mxu0 0.0
        %956 = vmatpush.msra.mxu0 0.0
        %957 = vmatpush.msra.mxu0 0.0
        %958 = vmatpush.msra.mxu0 0.0
        %959 = vmatpush.msra.mxu0 0.0
        %960 = vmatpush.msra.mxu0 0.0
        %961 = vmatpush.msra.mxu0 0.0
        %962 = vmatpush.msra.mxu0 0.0
        %963 = vmatpush.msra.mxu0 0.0
        %964 = vmatpush.msra.mxu0 0.0
        %965 = vmatpush.msra.mxu0 0.0
        %966 = vmatpush.msra.mxu0 0.0
        %967 = vmatpush.msra.mxu0 0.0
        %968 = vmatpush.msra.mxu0 %v587
        %969 = vmatmul.f32.gmra.mxu0 %v942
        %v970 = vpop.f32.mrf.mxu0
        %v971 = vadd.f32 0.0, %v970
        %972 = vmatmul.f32.gmra.mxu0 %v945
        %v973 = vpop.f32.mrf.mxu0
        %v974 = vadd.f32 0.0, %v973
        %975 = vmatmul.f32.gmra.mxu0 %v948
        %v976 = vpop.f32.mrf.mxu0
        %v977 = vadd.f32 0.0, %v976
        %978 = vmatmul.f32.gmra.mxu0 %v951
        %v979 = vpop.f32.mrf.mxu0
        %v980 = vadd.f32 0.0, %v979
        %981 = vdwg.mxu0
        %v982 = vadd.f32 %v933, %v971
        %v983 = vadd.f32 %v934, %v974
        %v984 = vadd.f32 %v935, %v977
        %v985 = vadd.f32 %v936, %v980
        %v986 = vld [vmem:[%s887 + $0x2] sm:$0xff]
        %v987 = vld [vmem:[%s887 + $0xa] sm:$0xff]
        %v988 = vld [vmem:[%s887 + $0x12] sm:$0xff]
        %v989 = vld [vmem:[%s887 + $0x1a] sm:$0xf]
        %v991 = vsel %vm244, %v986, 0
        %v994 = vsel %vm244, %v987, 0
        %v997 = vsel %vm244, %v988, 0
        %v1000 = vsel %vm244, %v989, 0
        %1002 = vmatpush.msra.mxu0 0.0
        %1003 = vmatpush.msra.mxu0 0.0
        %1004 = vmatpush.msra.mxu0 0.0
        %1005 = vmatpush.msra.mxu0 0.0
        %1006 = vmatpush.msra.mxu0 0.0
        %1007 = vmatpush.msra.mxu0 0.0
        %1008 = vmatpush.msra.mxu0 0.0
        %1009 = vmatpush.msra.mxu0 0.0
        %1010 = vmatpush.msra.mxu0 0.0
        %1011 = vmatpush.msra.mxu0 0.0
        %1012 = vmatpush.msra.mxu0 0.0
        %1013 = vmatpush.msra.mxu0 0.0
        %1014 = vmatpush.msra.mxu0 0.0
        %1015 = vmatpush.msra.mxu0 0.0
        %1016 = vmatpush.msra.mxu0 0.0
        %1017 = vmatpush.msra.mxu0 %v637
        %1018 = vmatmul.f32.gmra.mxu0 %v991
        %v1019 = vpop.f32.mrf.mxu0
        %v1020 = vadd.f32 0.0, %v1019
        %1021 = vmatmul.f32.gmra.mxu0 %v994
        %v1022 = vpop.f32.mrf.mxu0
        %v1023 = vadd.f32 0.0, %v1022
        %1024 = vmatmul.f32.gmra.mxu0 %v997
        %v1025 = vpop.f32.mrf.mxu0
        %v1026 = vadd.f32 0.0, %v1025
        %1027 = vmatmul.f32.gmra.mxu0 %v1000
        %v1028 = vpop.f32.mrf.mxu0
        %v1029 = vadd.f32 0.0, %v1028
        %1030 = vdwg.mxu0
        %v1031 = vadd.f32 %v982, %v1020
        %v1032 = vadd.f32 %v983, %v1023
        %v1033 = vadd.f32 %v984, %v1026
        %v1034 = vadd.f32 %v985, %v1029
        %v1035 = vadd.f32 %v1031, %v685
        %v1036 = vadd.f32 %v1032, %v685
        %v1037 = vadd.f32 %v1033, %v685
        %v1038 = vadd.f32 %v1034, %v685
        %v1039 = vmax.f32 %v1035, 0.0
        %v1040 = vmax.f32 %v1036, 0.0
        %v1041 = vmax.f32 %v1037, 0.0
        %v1042 = vmax.f32 %v1038, 0.0
        %v1043 = vmax.f32 %v691, %v1039
        %v1044 = vmax.f32 %v692, %v1040
        %v1045 = vmax.f32 %v693, %v1041
        %v1046 = vmax.f32 %v694, %v1042
        %vm1047 = vcmask 228352
        %v1049 = vsel %vm1047, %v215, 0
        %v1052 = vsel %vm1047, %v216, 0
        %vm1054 = vcmask 1043456
        %v1056 = vsel %vm1054, %v1046, 0
        %1058 = vmatpush.msra.mxu0 0.0
        %1059 = vmatpush.msra.mxu0 0.0
        %1060 = vmatpush.msra.mxu0 0.0
        %1061 = vmatpush.msra.mxu0 0.0
        %1062 = vmatpush.msra.mxu0 0.0
        %1063 = vmatpush.msra.mxu0 0.0
        %1064 = vmatpush.msra.mxu0 0.0
        %1065 = vmatpush.msra.mxu0 0.0
        %1066 = vmatpush.msra.mxu0 0.0
        %1067 = vmatpush.msra.mxu0 0.0
        %1068 = vmatpush.msra.mxu0 0.0
        %1069 = vmatpush.msra.mxu0 0.0
        %1070 = vmatpush.msra.mxu0 %v1056
        %1071 = vmatpush.msra.mxu0 %v1045
        %1072 = vmatpush.msra.mxu0 %v1044
        %1073 = vmatpush.msra.mxu0 %v1043
        %1074 = vmatmul.f32.gmra.mxu0 %v1049
        %v1075 = vpop.f32.mrf.mxu0
        %v1076 = vadd.f32 0.0, %v1075
        %1077 = vmatmul.f32.gmra.mxu0 %v1052
        %v1078 = vpop.f32.mrf.mxu0
        %v1079 = vadd.f32 0.0, %v1078
        %1080 = vdwg.mxu0
        %v1082 = vsel %vm1047, %v223, 0
        %v1085 = vsel %vm1047, %v224, 0
        %1087 = vmatpush.msra.mxu0 0.0
        %1088 = vmatpush.msra.mxu0 0.0
        %1089 = vmatpush.msra.mxu0 0.0
        %1090 = vmatpush.msra.mxu0 0.0
        %1091 = vmatpush.msra.mxu0 0.0
        %1092 = vmatpush.msra.mxu0 0.0
        %1093 = vmatpush.msra.mxu0 0.0
        %1094 = vmatpush.msra.mxu0 0.0
        %1095 = vmatpush.msra.mxu0 0.0
        %1096 = vmatpush.msra.mxu0 0.0
        %1097 = vmatpush.msra.mxu0 0.0
        %1098 = vmatpush.msra.mxu0 0.0
        %1099 = vmatpush.msra.mxu0 %v1056
        %1100 = vmatpush.msra.mxu0 %v1045
        %1101 = vmatpush.msra.mxu0 %v1044
        %1102 = vmatpush.msra.mxu0 %v1043
        %1103 = vmatmul.f32.gmra.mxu0 %v1082
        %v1104 = vpop.f32.mrf.mxu0
        %v1105 = vadd.f32 0.0, %v1104
        %1106 = vmatmul.f32.gmra.mxu0 %v1085
        %v1107 = vpop.f32.mrf.mxu0
        %v1108 = vadd.f32 0.0, %v1107
        %1109 = vdwg.mxu0
        %v1110 = vmax.f32 %v1076, %v1105
        %v1111 = vmax.f32 %v1079, %v1108
        %s1112 = sadd.s32 %s226, 1
        %s1113 = smul.u32 %s1112, 16
        %s1114 = scalar_lea.vmem %s170, %s1113
        %1115 = vst.msk [vmem:[%s1114 + $0x1] sm:$0xff] %vm171, %v1110
        %vm1116 = vcmask 259072
        %1117 = vst.msk [vmem:[%s1114 + $0x9] sm:$0x3f] %vm1116, %v1111
      $region37: #{net_forward.4} parent=31 // loop_footer
        %s230 = sadd.s32 1, %s226
      $region38: #{net_forward.4} parent=31 // loop_footer_branch
        %225 = sbr.rel target = $region34
      $region39: #{net_forward.4} parent=31 // loop_exit
        _
      %p1118 = scmp.lt.s32.totalorder %s14, 1
      %s1119 = scalar_select %p1118, %s14, 1
      %s1120 = smul.addr %s1119, 32
      %s1121 = smul.addr %s1120, 8
      %s1122 = scalar_lea.vmem %s3, %s1121
      // Predicated region
      $region40: #{net_forward.4} parent=31 // pred_check
        %p1123 = pneg %p100
      $region41: #{net_forward.4} parent=31 // pred_check_branch
        %1125 = sbr.rel (%p1123) target = $region43
      $region42: #{net_forward.4} parent=31 // pred_region
        _
      $region43: #{net_forward.4} parent=31 // pred_fallthru
        _
    $region32: #{net_forward.4} parent=5 // pred_fallthru
      _
    %p1126 = scmp.le.s32.totalorder 2, %s9
    // Predicated region
    $region44: #{net_forward.4} parent=5 // pred_check
      %p1127 = pneg %p1126
    $region45: #{net_forward.4} parent=5 // pred_check_branch
      %1129 = sbr.rel (%p1127) target = $region47
    $region46: #{net_forward.4} parent=5 // pred_region
      %s1130 = ssub.s32 %s9, 2
      // Predicated region
      $region48: #{net_forward.4} parent=46 // pred_check
        %p1131 = pneg %p106
      $region49: #{net_forward.4} parent=46 // pred_check_branch
        %1133 = sbr.rel (%p1131) target = $region51
      $region50: #{net_forward.4} parent=46 // pred_region
        %p1134 = scmp.lt.s32.totalorder %s15, 1
        %s1135 = scalar_select %p1134, %s15, 1
        %s1136 = smul.addr %s1135, 32
        %s1137 = smul.addr %s1136, 8
        %s1138 = scalar_lea.vmem %s3, %s1137
      $region51: #{net_forward.4} parent=46 // pred_fallthru
        _
    $region47: #{net_forward.4} parent=5 // pred_fallthru
      _
  $region6: #{net_forward.4} parent=0 // loop_footer
    %s13 = sadd.s32 1, %s9
  $region7: #{net_forward.4} parent=0 // loop_footer_branch
    %8 = sbr.rel target = $region3
  $region8: #{net_forward.4} parent=0 // loop_exit
    _

// kernel: net_forward.6
$region0: #{net_forward.6}
  #allocation0 [shape = 'u32[]', space=smem, size = 0x4, offset = 0x4, fixed_abs, tag = 'smem constant byte address 0x4 - core index']
  #allocation1 [shape = 'u32[72,128]{1,0:T(1,128)}', space=vmem, size = 0x9000, scoped, tag = 'internal scratch']
  %s0 = inlined_call_operand.vmem [shape: f32[2,9,9,64], index: 0, kind: input, shape index: {}]
  %s1 = inlined_call_operand.vmem [shape: f32[576,64], index: 1, kind: input, shape index: {}]
  %s2 = inlined_call_operand.vmem [shape: f32[1,64], index: 2, kind: input, shape index: {}]
  %s3 = inlined_call_operand.vmem [shape: f32[2,3,3,64], index: 3, kind: output, shape index: {}]
  %s4 = sld [smem:[#allocation0]]
  $region52: #{net_forward.6} parent=0
    _
  %s6 = ssub.s32 1, %s4
  %s7 = scalar_select 0, %s6, %s4
  loop: start=0, step=1, limit=4
  $region2: #{net_forward.6} parent=0 // loop_pre_header
    _
  $region3: #{net_forward.6} parent=0 // loop_header
    %s9 = sphi 0, %s13
    %p10 = scmp.ge.s32.totalorder %s9, 4
    %s19 = sphi 0, %s21
    %s22 = sphi 0, %s19
    %s23 = sphi 0, %s22
    %s39 = sphi 0, %s23
    %s43 = sphi 0, %s43
    %s45 = sphi 0, %s43
    %s46 = sphi 0, %s45
    %s60 = sphi 0, %s46
    %s64 = sphi 0, %s64
    %s66 = sphi 0, %s64
    %s67 = sphi 0, %s66
    %s81 = sphi 0, %s67
    %s87 = sphi 0, %s89
    %s90 = sphi 0, %s87
    %s91 = sphi 0, %s90
    %s107 = sphi 0, %s91
  $region4: #{net_forward.6} parent=0 // loop_header_branch
    %12 = sbr.rel (%p10) target = $region8
  $region5: #{net_forward.6} parent=0 // loop_body
    %s14 = ssub.s32 %s9, 1
    %s15 = ssub.s32 %s9, 2
    %s16 = sadd.s32 %s9, 1
    %s17 = ssub.s32 %s9, %s16
    %p18 = scmp.eq.s32.totalorder %s17, 0
    %s20 = sadd.s32 %s19, 1
    %s21 = scalar_select %p18, %s19, %s20
    %p24 = pneg %p18
    %p25 = scmp.eq.s32.totalorder %s9, 1
    %p26 = por %p24, %p25
    %p27 = scmp.ne.s32.totalorder %s19, %s22
    %p28 = scmp.eq.s32.totalorder %s9, 0
    %p29 = por %p27, %p28
    %p30 = scmp.ne.s32.totalorder %s19, %s22
    %p31 = scmp.eq.s32.totalorder %s14, 1
    %p32 = por %p30, %p31
    %p33 = scmp.ne.s32.totalorder %s22, %s23
    %p34 = scmp.eq.s32.totalorder %s14, 0
    %p35 = por %p33, %p34
    %p36 = scmp.ne.s32.totalorder %s22, %s23
    %p37 = scmp.eq.s32.totalorder %s15, 1
    %p38 = por %p36, %p37
    %p40 = scmp.ne.s32.totalorder %s23, %s39
    %p41 = scmp.eq.s32.totalorder %s15, 0
    %p42 = por %p40, %p41
    %s44 = sadd.s32 %s43, 1
    %p47 = scmp.eq.s32.totalorder %s9, 1
    %p48 = scmp.ne.s32.totalorder %s43, %s45
    %p49 = scmp.eq.s32.totalorder %s9, 0
    %p50 = por %p48, %p49
    %p51 = scmp.ne.s32.totalorder %s43, %s45
    %p52 = scmp.eq.s32.totalorder %s14, 1
    %p53 = por %p51, %p52
    %p54 = scmp.ne.s32.totalorder %s45, %s46
    %p55 = scmp.eq.s32.totalorder %s14, 0
    %p56 = por %p54, %p55
    %p57 = scmp.ne.s32.totalorder %s45, %s46
    %p58 = scmp.eq.s32.totalorder %s15, 1
    %p59 = por %p57, %p58
    %p61 = scmp.ne.s32.totalorder %s46, %s60
    %p62 = scmp.eq.s32.totalorder %s15, 0
    %p63 = por %p61, %p62
    %s65 = sadd.s32 %s64, 1
    %p68 = scmp.eq.s32.totalorder %s9, 1
    %p69 = scmp.ne.s32.totalorder %s64, %s66
    %p70 = scmp.eq.s32.totalorder %s9, 0
    %p71 = por %p69, %p70
    %p72 = scmp.ne.s32.totalorder %s64, %s66
    %p73 = scmp.eq.s32.totalorder %s14, 1
    %p74 = por %p72, %p73
    %p75 = scmp.ne.s32.totalorder %s66, %s67
    %p76 = scmp.eq.s32.totalorder %s14, 0
    %p77 = por %p75, %p76
    %p78 = scmp.ne.s32.totalorder %s66, %s67
    %p79 = scmp.eq.s32.totalorder %s15, 1
    %p80 = por %p78, %p79
    %p82 = scmp.ne.s32.totalorder %s67, %s81
    %p83 = scmp.eq.s32.totalorder %s15, 0
    %p84 = por %p82, %p83
    %s85 = ssub.s32 %s9, %s16
    %p86 = scmp.eq.s32.totalorder %s85, 0
    %s88 = sadd.s32 %s87, 1
    %s89 = scalar_select %p86, %s87, %s88
    %p92 = pneg %p86
    %p93 = scmp.eq.s32.totalorder %s9, 1
    %p94 = por %p92, %p93
    %p95 = scmp.ne.s32.totalorder %s87, %s90
    %p96 = scmp.eq.s32.totalorder %s9, 0
    %p97 = por %p95, %p96
    %p98 = scmp.ne.s32.totalorder %s87, %s90
    %p99 = scmp.eq.s32.totalorder %s14, 1
    %p100 = por %p98, %p99
    %p101 = scmp.ne.s32.totalorder %s90, %s91
    %p102 = scmp.eq.s32.totalorder %s14, 0
    %p103 = por %p101, %p102
    %p104 = scmp.ne.s32.totalorder %s90, %s91
    %p105 = scmp.eq.s32.totalorder %s15, 1
    %p106 = por %p104, %p105
    %p108 = scmp.ne.s32.totalorder %s91, %s107
    %p109 = scmp.eq.s32.totalorder %s15, 0
    %p110 = por %p108, %p109
    %p111 = scmp.le.s32.totalorder 1, %s9
    %p112 = scmp.lt.s32.totalorder %s9, 3
    %p113 = pnand %p111, %p112
    %p114 = pneg %p113
    // Predicated region
    $region9: #{net_forward.6} parent=5 // pred_check
      _
    $region10: #{net_forward.6} parent=5 // pred_check_branch
      %116 = sbr.rel (%p113) target = $region12
    $region11: #{net_forward.6} parent=5 // pred_region
      %s117 = ssub.s32 %s9, 1
      // Predicated region
      $region13: #{net_forward.6} parent=11 // pred_check
        %p118 = pneg %p56
      $region14: #{net_forward.6} parent=11 // pred_check_branch
        %120 = sbr.rel (%p118) target = $region16
      $region15: #{net_forward.6} parent=11 // pred_region
        _
      $region16: #{net_forward.6} parent=11 // pred_fallthru
        _
      // Predicated region
      $region17: #{net_forward.6} parent=11 // pred_check
        %p121 = pneg %p77
      $region18: #{net_forward.6} parent=11 // pred_check_branch
        %123 = sbr.rel (%p121) target = $region20
      $region19: #{net_forward.6} parent=11 // pred_region
        _
      $region20: #{net_forward.6} parent=11 // pred_fallthru
        _
    $region12: #{net_forward.6} parent=5 // pred_fallthru
      _
    %p124 = scmp.lt.s32.totalorder %s9, 2
    // Predicated region
    $region21: #{net_forward.6} parent=5 // pred_check
      %p125 = pneg %p124
    $region22: #{net_forward.6} parent=5 // pred_check_branch
      %127 = sbr.rel (%p125) target = $region24
    $region23: #{net_forward.6} parent=5 // pred_region
      // Predicated region
      $region25: #{net_forward.6} parent=23 // pred_check
        %p128 = pneg %p29
      $region26: #{net_forward.6} parent=23 // pred_check_branch
        %130 = sbr.rel (%p128) target = $region28
      $region27: #{net_forward.6} parent=23 // pred_region
        %p131 = scmp.lt.s32.totalorder %s9, 1
        %s132 = scalar_select %p131, %s9, 1
        %s133 = smul.addr %s132, 18
        %s134 = smul.addr %s133, 8
        %s135 = scalar_lea.vmem %s0, %s134
      $region28: #{net_forward.6} parent=23 // pred_fallthru
        _
    $region24: #{net_forward.6} parent=5 // pred_fallthru
      _
    %p136 = scmp.le.s32.totalorder 1, %s9
    %p137 = scmp.lt.s32.totalorder %s9, 3
    %p138 = pnand %p136, %p137
    %p139 = pneg %p138
    // Predicated region
    $region29: #{net_forward.6} parent=5 // pred_check
      _
    $region30: #{net_forward.6} parent=5 // pred_check_branch
      %141 = sbr.rel (%p138) target = $region32
    $region31: #{net_forward.6} parent=5 // pred_region
      %s142 = ssub.s32 %s9, 1
      %p143 = scmp.lt.s32.totalorder %s14, 1
      %s144 = scalar_select %p143, %s14, 1
      %s145 = smul.addr %s144, 18
      %s146 = smul.addr %s145, 8
      %s147 = scalar_lea.vmem %s0, %s146
      %p148 = pneg %p35
      %p149 = pneg %p32
      %p150 = pneg %p56
      %p151 = pneg %p53
      %p152 = pneg %p77
      %p153 = pneg %p74
      %p154 = pneg %p103
      %p155 = pneg %p100
      %p156 = scmp.lt.s32.totalorder %s14, 1
      %s157 = scalar_select %p156, %s14, 1
      %s158 = smul.addr %s157, 3
      %s159 = smul.addr %s158, 4
      %s160 = scalar_lea.vmem %s3, %s159
      %p161 = scmp.lt.s32.totalorder %s14, 1
      %s162 = scalar_select %p161, %s14, 1
      %s163 = smul.addr %s162, 18
      %s164 = smul.addr %s163, 8
      %s165 = scalar_lea.vmem %s0, %s164
      %p166 = scmp.lt.s32.totalorder %s14, 1
      %s167 = scalar_select %p166, %s14, 1
      %s168 = smul.addr %s167, 3
      %s169 = smul.addr %s168, 4
      %s170 = scalar_lea.vmem %s3, %s169
      %v171 = vlaneseq
      %v172 = vshrl.u32 %v171, 7
      %v173 = vlaneseq
      %v174 = vand.u32 %v173, 127
      %v175 = vmul.u32 %v172, 2
      %vm176 = vcmp.eq.s32.totalorder %v174, %v175
      %v177 = vsel %vm176, 1, 0
      %v178 = vcvt.s32.f32 %v177
      %v179 = vadd.s32 %v175, 1
      %vm180 = vcmp.eq.s32.totalorder %v174, %v179
      %v181 = vsel %vm180, 1, 0
      %v182 = vcvt.s32.f32 %v181
      loop: start=0, step=1, limit=3
      $region33: #{net_forward.6} parent=31 // loop_pre_header
        _
      $region34: #{net_forward.6} parent=31 // loop_header
        %s184 = sphi 0, %s188
        %p185 = scmp.ge.s32.totalorder %s184, 3
      $region35: #{net_forward.6} parent=31 // loop_header_branch
        %187 = sbr.rel (%p185) target = $region39
      $region36: #{net_forward.6} parent=31 // loop_body
        %s189 = smul.u32 %s184, 2
        %s190 = smul.u32 %s189, 16
        %s191 = scalar_lea.vmem %s165, %s190
        %v192 = vld [vmem:[%s191] sm:$0x7f]
        %v193 = vld [vmem:[%s1] sm:$0xff]
        %v194 = vld [vmem:[%s1 + $0x8] sm:$0xff]
        %v195 = vld [vmem:[%s1 + $0x10] sm:$0xff]
        %v196 = vld [vmem:[%s1 + $0x18] sm:$0xff]
        %v197 = vld [vmem:[%s1 + $0x20] sm:$0xff]
        %v198 = vld [vmem:[%s1 + $0x28] sm:$0xff]
        %v199 = vld [vmem:[%s1 + $0x30] sm:$0xff]
        %v200 = vld [vmem:[%s1 + $0x38] sm:$0xff]
        %v201 = vld [vmem:[%s191 + $0x1] sm:$0x7f]
        %v202 = vld [vmem:[%s1 + $0x40] sm:$0xff]
        %v203 = vld [vmem:[%s1 + $0x48] sm:$0xff]
        %v204 = vld [vmem:[%s1 + $0x50] sm:$0xff]
        %v205 = vld [vmem:[%s1 + $0x58] sm:$0xff]
        %v206 = vld [vmem:[%s1 + $0x60] sm:$0xff]
        %v207 = vld [vmem:[%s1 + $0x68] sm:$0xff]
        %v208 = vld [vmem:[%s1 + $0x70] sm:$0xff]
        %v209 = vld [vmem:[%s1 + $0x78] sm:$0xff]
        %vm210 = vcmask 523264
        %v212 = vsel %vm210, %v201, 0
        %214 = vmatpush.msra.mxu0 0.0
        %215 = vmatpush.msra.mxu0 0.0
        %216 = vmatpush.msra.mxu0 0.0
        %217 = vmatpush.msra.mxu0 0.0
        %218 = vmatpush.msra.mxu0 0.0
        %219 = vmatpush.msra.mxu0 0.0
        %220 = vmatpush.msra.mxu0 0.0
        %221 = vmatpush.msra.mxu0 0.0
        %222 = vmatpush.msra.mxu0 %v209
        %223 = vmatpush.msra.mxu0 %v208
        %224 = vmatpush.msra.mxu0 %v207
        %225 = vmatpush.msra.mxu0 %v206
        %226 = vmatpush.msra.mxu0 %v205
        %227 = vmatpush.msra.mxu0 %v204
        %228 = vmatpush.msra.mxu0 %v203
        %229 = vmatpush.msra.mxu0 %v202
        %230 = vmatmul.f32.gmra.mxu0 %v212
        %v231 = vpop.f32.mrf.mxu0
        %v232 = vadd.f32 0.0, %v231
        %233 = vdwg.mxu0
        %v235 = vsel %vm210, %v192, 0
        %237 = vmatpush.msra.mxu0 0.0
        %238 = vmatpush.msra.mxu0 0.0
        %239 = vmatpush.msra.mxu0 0.0
        %240 = vmatpush.msra.mxu0 0.0
        %241 = vmatpush.msra.mxu0 0.0
        %242 = vmatpush.msra.mxu0 0.0
        %243 = vmatpush.msra.mxu0 0.0
        %244 = vmatpush.msra.mxu0 0.0
        %245 = vmatpush.msra.mxu0 %v200
        %246 = vmatpush.msra.mxu0 %v199
        %247 = vmatpush.msra.mxu0 %v198
        %248 = vmatpush.msra.mxu0 %v197
        %249 = vmatpush.msra.mxu0 %v196
        %250 = vmatpush.msra.mxu0 %v195
        %251 = vmatpush.msra.mxu0 %v194
        %252 = vmatpush.msra.mxu0 %v193
        %253 = vmatmul.f32.gmra.mxu0 %v235
        %v254 = vpop.f32.mrf.mxu0
        %v255 = vadd.f32 %v232, %v254
        %256 = vdwg.mxu0
        %v257 = vld [vmem:[%s191 + $0x2] sm:$0x7f]
        %v258 = vld [vmem:[%s1 + $0x80] sm:$0xff]
        %v259 = vld [vmem:[%s1 + $0x88] sm:$0xff]
        %v260 = vld [vmem:[%s1 + $0x90] sm:$0xff]
        %v261 = vld [vmem:[%s1 + $0x98] sm:$0xff]
        %v262 = vld [vmem:[%s1 + $0xa0] sm:$0xff]
        %v263 = vld [vmem:[%s1 + $0xa8] sm:$0xff]
        %v264 = vld [vmem:[%s1 + $0xb0] sm:$0xff]
        %v265 = vld [vmem:[%s1 + $0xb8] sm:$0xff]
        %v267 = vsel %vm210, %v257, 0
        %269 = vmatpush.msra.mxu0 0.0
        %270 = vmatpush.msra.mxu0 0.0
        %271 = vmatpush.msra.mxu0 0.0
        %272 = vmatpush.msra.mxu0 0.0
        %273 = vmatpush.msra.mxu0 0.0
        %274 = vmatpush.msra.mxu0 0.0
        %275 = vmatpush.msra.mxu0 0.0
        %276 = vmatpush.msra.mxu0 0.0
        %277 = vmatpush.msra.mxu0 %v265
        %278 = vmatpush.msra.mxu0 %v264
        %279 = vmatpush.msra.mxu0 %v263
        %280 = vmatpush.msra.mxu0 %v262
        %281 = vmatpush.msra.mxu0 %v261
        %282 = vmatpush.msra.mxu0 %v260
        %283 = vmatpush.msra.mxu0 %v259
        %284 = vmatpush.msra.mxu0 %v258
        %285 = vmatmul.f32.gmra.mxu0 %v267
        %v286 = vpop.f32.mrf.mxu0
        %v287 = vadd.f32 0.0, %v286
        %288 = vdwg.mxu0
        %v289 = vadd.f32 %v255, %v287
        %s290 = sadd.s32 %s189, 1
        %s291 = smul.u32 %s290, 16
        %s292 = scalar_lea.vmem %s165, %s291
        %v293 = vld [vmem:[%s292] sm:$0x7f]
        %v294 = vld [vmem:[%s1 + $0xc0] sm:$0xff]
        %v295 = vld [vmem:[%s1 + $0xc8] sm:$0xff]
        %v296 = vld [vmem:[%s1 + $0xd0] sm:$0xff]
        %v297 = vld [vmem:[%s1 + $0xd8] sm:$0xff]
        %v298 = vld [vmem:[%s1 + $0xe0] sm:$0xff]
        %v299 = vld [vmem:[%s1 + $0xe8] sm:$0xff]
        %v300 = vld [vmem:[%s1 + $0xf0] sm:$0xff]
        %v301 = vld [vmem:[%s1 + $0xf8] sm:$0xff]
        %v303 = vsel %vm210, %v293, 0
        %305 = vmatpush.msra.mxu0 0.0
        %306 = vmatpush.msra.mxu0 0.0
        %307 = vmatpush.msra.mxu0 0.0
        %308 = vmatpush.msra.mxu0 0.0
        %309 = vmatpush.msra.mxu0 0.0
        %310 = vmatpush.msra.mxu0 0.0
        %311 = vmatpush.msra.mxu0 0.0
        %312 = vmatpush.msra.mxu0 0.0
        %313 = vmatpush.msra.mxu0 %v301
        %314 = vmatpush.msra.mxu0 %v300
        %315 = vmatpush.msra.mxu0 %v299
        %316 = vmatpush.msra.mxu0 %v298
        %317 = vmatpush.msra.mxu0 %v297
        %318 = vmatpush.msra.mxu0 %v296
        %319 = vmatpush.msra.mxu0 %v295
        %320 = vmatpush.msra.mxu0 %v294
        %321 = vmatmul.f32.gmra.mxu0 %v303
        %v322 = vpop.f32.mrf.mxu0
        %v323 = vadd.f32 0.0, %v322
        %324 = vdwg.mxu0
        %v325 = vadd.f32 %v289, %v323
        %v326 = vld [vmem:[%s292 + $0x1] sm:$0x7f]
        %v327 = vld [vmem:[%s1 + $0x100] sm:$0xff]
        %v328 = vld [vmem:[%s1 + $0x108] sm:$0xff]
        %v329 = vld [vmem:[%s1 + $0x110] sm:$0xff]
        %v330 = vld [vmem:[%s1 + $0x118] sm:$0xff]
        %v331 = vld [vmem:[%s1 + $0x120] sm:$0xff]
        %v332 = vld [vmem:[%s1 + $0x128] sm:$0xff]
        %v333 = vld [vmem:[%s1 + $0x130] sm:$0xff]
        %v334 = vld [vmem:[%s1 + $0x138] sm:$0xff]
        %v336 = vsel %vm210, %v326, 0
        %338 = vmatpush.msra.mxu0 0.0
        %339 = vmatpush.msra.mxu0 0.0
        %340 = vmatpush.msra.mxu0 0.0
        %341 = vmatpush.msra.mxu0 0.0
        %342 = vmatpush.msra.mxu0 0.0
        %343 = vmatpush.msra.mxu0 0.0
        %344 = vmatpush.msra.mxu0 0.0
        %345 = vmatpush.msra.mxu0 0.0
        %346 = vmatpush.msra.mxu0 %v334
        %347 = vmatpush.msra.mxu0 %v333
        %348 = vmatpush.msra.mxu0 %v332
        %349 = vmatpush.msra.mxu0 %v331
        %350 = vmatpush.msra.mxu0 %v330
        %351 = vmatpush.msra.mxu0 %v329
        %352 = vmatpush.msra.mxu0 %v328
        %353 = vmatpush.msra.mxu0 %v327
        %354 = vmatmul.f32.gmra.mxu0 %v336
        %v355 = vpop.f32.mrf.mxu0
        %v356 = vadd.f32 0.0, %v355
        %357 = vdwg.mxu0
        %v358 = vadd.f32 %v325, %v356
        %v359 = vld [vmem:[%s292 + $0x2] sm:$0x7f]
        %v360 = vld [vmem:[%s1 + $0x140] sm:$0xff]
        %v361 = vld [vmem:[%s1 + $0x148] sm:$0xff]
        %v362 = vld [vmem:[%s1 + $0x150] sm:$0xff]
        %v363 = vld [vmem:[%s1 + $0x158] sm:$0xff]
        %v364 = vld [vmem:[%s1 + $0x160] sm:$0xff]
        %v365 = vld [vmem:[%s1 + $0x168] sm:$0xff]
        %v366 = vld [vmem:[%s1 + $0x170] sm:$0xff]
        %v367 = vld [vmem:[%s1 + $0x178] sm:$0xff]
        %v369 = vsel %vm210, %v359, 0
        %371 = vmatpush.msra.mxu0 0.0
        %372 = vmatpush.msra.mxu0 0.0
        %373 = vmatpush.msra.mxu0 0.0
        %374 = vmatpush.msra.mxu0 0.0
        %375 = vmatpush.msra.mxu0 0.0
        %376 = vmatpush.msra.mxu0 0.0
        %377 = vmatpush.msra.mxu0 0.0
        %378 = vmatpush.msra.mxu0 0.0
        %379 = vmatpush.msra.mxu0 %v367
        %380 = vmatpush.msra.mxu0 %v366
        %381 = vmatpush.msra.mxu0 %v365
        %382 = vmatpush.msra.mxu0 %v364
        %383 = vmatpush.msra.mxu0 %v363
        %384 = vmatpush.msra.mxu0 %v362
        %385 = vmatpush.msra.mxu0 %v361
        %386 = vmatpush.msra.mxu0 %v360
        %387 = vmatmul.f32.gmra.mxu0 %v369
        %v388 = vpop.f32.mrf.mxu0
        %v389 = vadd.f32 0.0, %v388
        %390 = vdwg.mxu0
        %v391 = vadd.f32 %v358, %v389
        %s392 = sadd.s32 %s189, 2
        %s393 = smul.u32 %s392, 16
        %s394 = scalar_lea.vmem %s165, %s393
        %v395 = vld [vmem:[%s394] sm:$0x7f]
        %v396 = vld [vmem:[%s1 + $0x180] sm:$0xff]
        %v397 = vld [vmem:[%s1 + $0x188] sm:$0xff]
        %v398 = vld [vmem:[%s1 + $0x190] sm:$0xff]
        %v399 = vld [vmem:[%s1 + $0x198] sm:$0xff]
        %v400 = vld [vmem:[%s1 + $0x1a0] sm:$0xff]
        %v401 = vld [vmem:[%s1 + $0x1a8] sm:$0xff]
        %v402 = vld [vmem:[%s1 + $0x1b0] sm:$0xff]
        %v403 = vld [vmem:[%s1 + $0x1b8] sm:$0xff]
        %v405 = vsel %vm210, %v395, 0
        %407 = vmatpush.msra.mxu0 0.0
        %408 = vmatpush.msra.mxu0 0.0
        %409 = vmatpush.msra.mxu0 0.0
        %410 = vmatpush.msra.mxu0 0.0
        %411 = vmatpush.msra.mxu0 0.0
        %412 = vmatpush.msra.mxu0 0.0
        %413 = vmatpush.msra.mxu0 0.0
        %414 = vmatpush.msra.mxu0 0.0
        %415 = vmatpush.msra.mxu0 %v403
        %416 = vmatpush.msra.mxu0 %v402
        %417 = vmatpush.msra.mxu0 %v401
        %418 = vmatpush.msra.mxu0 %v400
        %419 = vmatpush.msra.mxu0 %v399
        %420 = vmatpush.msra.mxu0 %v398
        %421 = vmatpush.msra.mxu0 %v397
        %422 = vmatpush.msra.mxu0 %v396
        %423 = vmatmul.f32.gmra.mxu0 %v405
        %v424 = vpop.f32.mrf.mxu0
        %v425 = vadd.f32 0.0, %v424
        %426 = vdwg.mxu0
        %v427 = vadd.f32 %v391, %v425
        %v428 = vld [vmem:[%s394 + $0x1] sm:$0x7f]
        %v429 = vld [vmem:[%s1 + $0x1c0] sm:$0xff]
        %v430 = vld [vmem:[%s1 + $0x1c8] sm:$0xff]
        %v431 = vld [vmem:[%s1 + $0x1d0] sm:$0xff]
        %v432 = vld [vmem:[%s1 + $0x1d8] sm:$0xff]
        %v433 = vld [vmem:[%s1 + $0x1e0] sm:$0xff]
        %v434 = vld [vmem:[%s1 + $0x1e8] sm:$0xff]
        %v435 = vld [vmem:[%s1 + $0x1f0] sm:$0xff]
        %v436 = vld [vmem:[%s1 + $0x1f8] sm:$0xff]
        %v438 = vsel %vm210, %v428, 0
        %440 = vmatpush.msra.mxu0 0.0
        %441 = vmatpush.msra.mxu0 0.0
        %442 = vmatpush.msra.mxu0 0.0
        %443 = vmatpush.msra.mxu0 0.0
        %444 = vmatpush.msra.mxu0 0.0
        %445 = vmatpush.msra.mxu0 0.0
        %446 = vmatpush.msra.mxu0 0.0
        %447 = vmatpush.msra.mxu0 0.0
        %448 = vmatpush.msra.mxu0 %v436
        %449 = vmatpush.msra.mxu0 %v435
        %450 = vmatpush.msra.mxu0 %v434
        %451 = vmatpush.msra.mxu0 %v433
        %452 = vmatpush.msra.mxu0 %v432
        %453 = vmatpush.msra.mxu0 %v431
        %454 = vmatpush.msra.mxu0 %v430
        %455 = vmatpush.msra.mxu0 %v429
        %456 = vmatmul.f32.gmra.mxu0 %v438
        %v457 = vpop.f32.mrf.mxu0
        %v458 = vadd.f32 0.0, %v457
        %459 = vdwg.mxu0
        %v460 = vadd.f32 %v427, %v458
        %v461 = vld [vmem:[%s394 + $0x2] sm:$0x7f]
        %v462 = vld [vmem:[%s1 + $0x200] sm:$0xff]
        %v463 = vld [vmem:[%s1 + $0x208] sm:$0xff]
        %v464 = vld [vmem:[%s1 + $0x210] sm:$0xff]
        %v465 = vld [vmem:[%s1 + $0x218] sm:$0xff]
        %v466 = vld [vmem:[%s1 + $0x220] sm:$0xff]
        %v467 = vld [vmem:[%s1 + $0x228] sm:$0xff]
        %v468 = vld [vmem:[%s1 + $0x230] sm:$0xff]
        %v469 = vld [vmem:[%s1 + $0x238] sm:$0xff]
        %v471 = vsel %vm210, %v461, 0
        %473 = vmatpush.msra.mxu0 0.0
        %474 = vmatpush.msra.mxu0 0.0
        %475 = vmatpush.msra.mxu0 0.0
        %476 = vmatpush.msra.mxu0 0.0
        %477 = vmatpush.msra.mxu0 0.0
        %478 = vmatpush.msra.mxu0 0.0
        %479 = vmatpush.msra.mxu0 0.0
        %480 = vmatpush.msra.mxu0 0.0
        %481 = vmatpush.msra.mxu0 %v469
        %482 = vmatpush.msra.mxu0 %v468
        %483 = vmatpush.msra.mxu0 %v467
        %484 = vmatpush.msra.mxu0 %v466
        %485 = vmatpush.msra.mxu0 %v465
        %486 = vmatpush.msra.mxu0 %v464
        %487 = vmatpush.msra.mxu0 %v463
        %488 = vmatpush.msra.mxu0 %v462
        %489 = vmatmul.f32.gmra.mxu0 %v471
        %v490 = vpop.f32.mrf.mxu0
        %v491 = vadd.f32 0.0, %v490
        %492 = vdwg.mxu0
        %v493 = vadd.f32 %v460, %v491
        %v494 = vld [vmem:[%s2] sm:$0x1]
        %v496 = vperm.slane %v494, 0
        %v498 = vadd.f32 %v493, %v496
        %v499 = vmax.f32 %v498, 0.0
        %500 = vmatpush.msra.mxu0 0.0
        %501 = vmatpush.msra.mxu0 0.0
        %502 = vmatpush.msra.mxu0 0.0
        %503 = vmatpush.msra.mxu0 0.0
        %504 = vmatpush.msra.mxu0 0.0
        %505 = vmatpush.msra.mxu0 0.0
        %506 = vmatpush.msra.mxu0 0.0
        %507 = vmatpush.msra.mxu0 0.0
        %508 = vmatpush.msra.mxu0 %v209
        %509 = vmatpush.msra.mxu0 %v208
        %510 = vmatpush.msra.mxu0 %v207
        %511 = vmatpush.msra.mxu0 %v206
        %512 = vmatpush.msra.mxu0 %v205
        %513 = vmatpush.msra.mxu0 %v204
        %514 = vmatpush.msra.mxu0 %v203
        %515 = vmatpush.msra.mxu0 %v202
        %516 = vmatmul.f32.gmra.mxu0 %v336
        %v517 = vpop.f32.mrf.mxu0
        %v518 = vadd.f32 0.0, %v517
        %519 = vdwg.mxu0
        %520 = vmatpush.msra.mxu0 0.0
        %521 = vmatpush.msra.mxu0 0.0
        %522 = vmatpush.msra.mxu0 0.0
        %523 = vmatpush.msra.mxu0 0.0
        %524 = vmatpush.msra.mxu0 0.0
        %525 = vmatpush.msra.mxu0 0.0
        %526 = vmatpush.msra.mxu0 0.0
        %527 = vmatpush.msra.mxu0 0.0
        %528 = vmatpush.msra.mxu0 %v200
        %529 = vmatpush.msra.mxu0 %v199
        %530 = vmatpush.msra.mxu0 %v198
        %531 = vmatpush.msra.mxu0 %v197
        %532 = vmatpush.msra.mxu0 %v196
        %533 = vmatpush.msra.mxu0 %v195
        %534 = vmatpush.msra.mxu0 %v194
        %535 = vmatpush.msra.mxu0 %v193
        %536 = vmatmul.f32.gmra.mxu0 %v303
        %v537 = vpop.f32.mrf.mxu0
        %v538 = vadd.f32 %v518, %v537
        %539 = vdwg.mxu0
        %540 = vmatpush.msra.mxu0 0.0
        %541 = vmatpush.msra.mxu0 0.0
        %542 = vmatpush.msra.mxu0 0.0
        %543 = vmatpush.msra.mxu0 0.0
        %544 = vmatpush.msra.mxu0 0.0
        %545 = vmatpush.msra.mxu0 0.0
        %546 = vmatpush.msra.mxu0 0.0
        %547 = vmatpush.msra.mxu0 0.0
        %548 = vmatpush.msra.mxu0 %v265
        %549 = vmatpush.msra.mxu0 %v264
        %550 = vmatpush.msra.mxu0 %v263
        %551 = vmatpush.msra.mxu0 %v262
        %552 = vmatpush.msra.mxu0 %v261
        %553 = vmatpush.msra.mxu0 %v260
        %554 = vmatpush.msra.mxu0 %v259
        %555 = vmatpush.msra.mxu0 %v258
        %556 = vmatmul.f32.gmra.mxu0 %v369
        %v557 = vpop.f32.mrf.mxu0
        %v558 = vadd.f32 0.0, %v557
        %559 = vdwg.mxu0
        %v560 = vadd.f32 %v538, %v558
        %561 = vmatpush.msra.mxu0 0.0
        %562 = vmatpush.msra.mxu0 0.0
        %563 = vmatpush.msra.mxu0 0.0
        %564 = vmatpush.msra.mxu0 0.0
        %565 = vmatpush.msra.mxu0 0.0
        %566 = vmatpush.msra.mxu0 0.0
        %567 = vmatpush.msra.mxu0 0.0
        %568 = vmatpush.msra.mxu0 0.0
        %569 = vmatpush.msra.mxu0 %v301
        %570 = vmatpush.msra.mxu0 %v300
        %571 = vmatpush.msra.mxu0 %v299
        %572 = vmatpush.msra.mxu0 %v298
        %573 = vmatpush.msra.mxu0 %v297
        %574 = vmatpush.msra.mxu0 %v296
        %575 = vmatpush.msra.mxu0 %v295
        %576 = vmatpush.msra.mxu0 %v294
        %577 = vmatmul.f32.gmra.mxu0 %v405
        %v578 = vpop.f32.mrf.mxu0
        %v579 = vadd.f32 0.0, %v578
        %580 = vdwg.mxu0
        %v581 = vadd.f32 %v560, %v579
        %582 = vmatpush.msra.mxu0 0.0
        %583 = vmatpush.msra.mxu0 0.0
        %584 = vmatpush.msra.mxu0 0.0
        %585 = vmatpush.msra.mxu0 0.0
        %586 = vmatpush.msra.mxu0 0.0
        %587 = vmatpush.msra.mxu0 0.0
        %588 = vmatpush.msra.mxu0 0.0
        %589 = vmatpush.msra.mxu0 0.0
        %590 = vmatpush.msra.mxu0 %v334
        %591 = vmatpush.msra.mxu0 %v333
        %592 = vmatpush.msra.mxu0 %v332
        %593 = vmatpush.msra.mxu0 %v331
        %594 = vmatpush.msra.mxu0 %v330
        %595 = vmatpush.msra.mxu0 %v329
        %596 = vmatpush.msra.mxu0 %v328
        %597 = vmatpush.msra.mxu0 %v327
        %598 = vmatmul.f32.gmra.mxu0 %v438
        %v599 = vpop.f32.mrf.mxu0
        %v600 = vadd.f32 0.0, %v599
        %601 = vdwg.mxu0
        %v602 = vadd.f32 %v581, %v600
        %603 = vmatpush.msra.mxu0 0.0
        %604 = vmatpush.msra.mxu0 0.0
        %605 = vmatpush.msra.mxu0 0.0
        %606 = vmatpush.msra.mxu0 0.0
        %607 = vmatpush.msra.mxu0 0.0
        %608 = vmatpush.msra.mxu0 0.0
        %609 = vmatpush.msra.mxu0 0.0
        %610 = vmatpush.msra.mxu0 0.0
        %611 = vmatpush.msra.mxu0 %v367
        %612 = vmatpush.msra.mxu0 %v366
        %613 = vmatpush.msra.mxu0 %v365
        %614 = vmatpush.msra.mxu0 %v364
        %615 = vmatpush.msra.mxu0 %v363
        %616 = vmatpush.msra.mxu0 %v362
        %617 = vmatpush.msra.mxu0 %v361
        %618 = vmatpush.msra.mxu0 %v360
        %619 = vmatmul.f32.gmra.mxu0 %v471
        %v620 = vpop.f32.mrf.mxu0
        %v621 = vadd.f32 0.0, %v620
        %622 = vdwg.mxu0
        %v623 = vadd.f32 %v602, %v621
        %s624 = sadd.s32 %s189, 3
        %s625 = smul.u32 %s624, 16
        %s626 = scalar_lea.vmem %s165, %s625
        %v627 = vld [vmem:[%s626] sm:$0x7f]
        %v629 = vsel %vm210, %v627, 0
        %631 = vmatpush.msra.mxu0 0.0
        %632 = vmatpush.msra.mxu0 0.0
        %633 = vmatpush.msra.mxu0 0.0
        %634 = vmatpush.msra.mxu0 0.0
        %635 = vmatpush.msra.mxu0 0.0
        %636 = vmatpush.msra.mxu0 0.0
        %637 = vmatpush.msra.mxu0 0.0
        %638 = vmatpush.msra.mxu0 0.0
        %639 = vmatpush.msra.mxu0 %v403
        %640 = vmatpush.msra.mxu0 %v402
        %641 = vmatpush.msra.mxu0 %v401
        %642 = vmatpush.msra.mxu0 %v400
        %643 = vmatpush.msra.mxu0 %v399
        %644 = vmatpush.msra.mxu0 %v398
        %645 = vmatpush.msra.mxu0 %v397
        %646 = vmatpush.msra.mxu0 %v396
        %647 = vmatmul.f32.gmra.mxu0 %v629
        %v648 = vpop.f32.mrf.mxu0
        %v649 = vadd.f32 0.0, %v648
        %650 = vdwg.mxu0
        %v651 = vadd.f32 %v623, %v649
        %v652 = vld [vmem:[%s626 + $0x1] sm:$0x7f]
        %v654 = vsel %vm210, %v652, 0
        %656 = vmatpush.msra.mxu0 0.0
        %657 = vmatpush.msra.mxu0 0.0
        %658 = vmatpush.msra.mxu0 0.0
        %659 = vmatpush.msra.mxu0 0.0
        %660 = vmatpush.msra.mxu0 0.0
        %661 = vmatpush.msra.mxu0 0.0
        %662 = vmatpush.msra.mxu0 0.0
        %663 = vmatpush.msra.mxu0 0.0
        %664 = vmatpush.msra.mxu0 %v436
        %665 = vmatpush.msra.mxu0 %v435
        %666 = vmatpush.msra.mxu0 %v434
        %667 = vmatpush.msra.mxu0 %v433
        %668 = vmatpush.msra.mxu0 %v432
        %669 = vmatpush.msra.mxu0 %v431
        %670 = vmatpush.msra.mxu0 %v430
        %671 = vmatpush.msra.mxu0 %v429
        %672 = vmatmul.f32.gmra.mxu0 %v654
        %v673 = vpop.f32.mrf.mxu0
        %v674 = vadd.f32 0.0, %v673
        %675 = vdwg.mxu0
        %v676 = vadd.f32 %v651, %v674
        %v677 = vld [vmem:[%s626 + $0x2] sm:$0x7f]
        %v679 = vsel %vm210, %v677, 0
        %681 = vmatpush.msra.mxu0 0.0
        %682 = vmatpush.msra.mxu0 0.0
        %683 = vmatpush.msra.mxu0 0.0
        %684 = vmatpush.msra.mxu0 0.0
        %685 = vmatpush.msra.mxu0 0.0
        %686 = vmatpush.msra.mxu0 0.0
        %687 = vmatpush.msra.mxu0 0.0
        %688 = vmatpush.msra.mxu0 0.0
        %689 = vmatpush.msra.mxu0 %v469
        %690 = vmatpush.msra.mxu0 %v468
        %691 = vmatpush.msra.mxu0 %v467
        %692 = vmatpush.msra.mxu0 %v466
        %693 = vmatpush.msra.mxu0 %v465
        %694 = vmatpush.msra.mxu0 %v464
        %695 = vmatpush.msra.mxu0 %v463
        %696 = vmatpush.msra.mxu0 %v462
        %697 = vmatmul.f32.gmra.mxu0 %v679
        %v698 = vpop.f32.mrf.mxu0
        %v699 = vadd.f32 0.0, %v698
        %700 = vdwg.mxu0
        %v701 = vadd.f32 %v676, %v699
        %v702 = vadd.f32 %v701, %v496
        %v703 = vmax.f32 %v702, 0.0
        %v704 = vmax.f32 %v499, %v703
        %vm705 = vcmask 56320
        %v707 = vsel %vm705, %v178, 0
        %vm709 = vcmask 1046528
        %v711 = vsel %vm709, %v704, 0
        %713 = vmatpush.msra.mxu0 0.0
        %714 = vmatpush.msra.mxu0 0.0
        %715 = vmatpush.msra.mxu0 0.0
        %716 = vmatpush.msra.mxu0 0.0
        %717 = vmatpush.msra.mxu0 0.0
        %718 = vmatpush.msra.mxu0 0.0
        %719 = vmatpush.msra.mxu0 0.0
        %720 = vmatpush.msra.mxu0 0.0
        %721 = vmatpush.msra.mxu0 0.0
        %722 = vmatpush.msra.mxu0 0.0
        %723 = vmatpush.msra.mxu0 0.0
        %724 = vmatpush.msra.mxu0 0.0
        %725 = vmatpush.msra.mxu0 0.0
        %726 = vmatpush.msra.mxu0 0.0
        %727 = vmatpush.msra.mxu0 0.0
        %728 = vmatpush.msra.mxu0 %v711
        %729 = vmatmul.f32.gmra.mxu0 %v707
        %v730 = vpop.f32.mrf.mxu0
        %v731 = vadd.f32 0.0, %v730
        %732 = vdwg.mxu0
        %v734 = vsel %vm705, %v182, 0
        %736 = vmatpush.msra.mxu0 0.0
        %737 = vmatpush.msra.mxu0 0.0
        %738 = vmatpush.msra.mxu0 0.0
        %739 = vmatpush.msra.mxu0 0.0
        %740 = vmatpush.msra.mxu0 0.0
        %741 = vmatpush.msra.mxu0 0.0
        %742 = vmatpush.msra.mxu0 0.0
        %743 = vmatpush.msra.mxu0 0.0
        %744 = vmatpush.msra.mxu0 0.0
        %745 = vmatpush.msra.mxu0 0.0
        %746 = vmatpush.msra.mxu0 0.0
        %747 = vmatpush.msra.mxu0 0.0
        %748 = vmatpush.msra.mxu0 0.0
        %749 = vmatpush.msra.mxu0 0.0
        %750 = vmatpush.msra.mxu0 0.0
        %751 = vmatpush.msra.mxu0 %v711
        %752 = vmatmul.f32.gmra.mxu0 %v734
        %v753 = vpop.f32.mrf.mxu0
        %v754 = vadd.f32 0.0, %v753
        %755 = vdwg.mxu0
        %v756 = vmax.f32 %v731, %v754
        %s757 = smul.u32 %s184, 4
        %s758 = scalar_lea.vmem %s170, %s757
        %vm759 = vcmask 518144
        %760 = vst.msk [vmem:[%s758] sm:$0x7] %vm759, %v756
      $region37: #{net_forward.6} parent=31 // loop_footer
        %s188 = sadd.s32 1, %s184
      $region38: #{net_forward.6} parent=31 // loop_footer_branch
        %183 = sbr.rel target = $region34
      $region39: #{net_forward.6} parent=31 // loop_exit
        _
      %p761 = scmp.lt.s32.totalorder %s14, 1
      %s762 = scalar_select %p761, %s14, 1
      %s763 = smul.addr %s762, 3
      %s764 = smul.addr %s763, 4
      %s765 = scalar_lea.vmem %s3, %s764
      // Predicated region
      $region40: #{net_forward.6} parent=31 // pred_check
        %p766 = pneg %p100
      $region41: #{net_forward.6} parent=31 // pred_check_branch
        %768 = sbr.rel (%p766) target = $region43
      $region42: #{net_forward.6} parent=31 // pred_region
        _
      $region43: #{net_forward.6} parent=31 // pred_fallthru
        _
    $region32: #{net_forward.6} parent=5 // pred_fallthru
      _
    %p769 = scmp.le.s32.totalorder 2, %s9
    // Predicated region
    $region44: #{net_forward.6} parent=5 // pred_check
      %p770 = pneg %p769
    $region45: #{net_forward.6} parent=5 // pred_check_branch
      %772 = sbr.rel (%p770) target = $region47
    $region46: #{net_forward.6} parent=5 // pred_region
      %s773 = ssub.s32 %s9, 2
      // Predicated region
      $region48: #{net_forward.6} parent=46 // pred_check
        %p774 = pneg %p106
      $region49: #{net_forward.6} parent=46 // pred_check_branch
        %776 = sbr.rel (%p774) target = $region51
      $region50: #{net_forward.6} parent=46 // pred_region
        %p777 = scmp.lt.s32.totalorder %s15, 1
        %s778 = scalar_select %p777, %s15, 1
        %s779 = smul.addr %s778, 3
        %s780 = smul.addr %s779, 4
        %s781 = scalar_lea.vmem %s3, %s780
      $region51: #{net_forward.6} parent=46 // pred_fallthru
        _
    $region47: #{net_forward.6} parent=5 // pred_fallthru
      _
  $region6: #{net_forward.6} parent=0 // loop_footer
    %s13 = sadd.s32 1, %s9
  $region7: #{net_forward.6} parent=0 // loop_footer_branch
    %8 = sbr.rel target = $region3
  $region8: #{net_forward.6} parent=0 // loop_exit
    _

// kernel: net_forward.7
$region0: #{net_forward.7}
  #allocation0 [shape = 'u32[]', space=smem, size = 0x4, offset = 0x4, fixed_abs, tag = 'smem constant byte address 0x4 - core index']
  #allocation1 [shape = 'u32[72,128]{1,0:T(1,128)}', space=vmem, size = 0x9000, scoped, tag = 'internal scratch']
  %s0 = inlined_call_operand.vmem [shape: f32[2,576], index: 0, kind: input, shape index: {}]
  %s1 = inlined_call_operand.vmem [shape: f32[576,128], index: 1, kind: input, shape index: {}]
  %s2 = inlined_call_operand.vmem [shape: f32[1,128], index: 2, kind: input, shape index: {}]
  %s3 = inlined_call_operand.vmem [shape: f32[128,128], index: 3, kind: input, shape index: {}]
  %s4 = inlined_call_operand.vmem [shape: f32[1,128], index: 4, kind: input, shape index: {}]
  %s5 = inlined_call_operand.hbm [shape: f32[2,128], index: 5, kind: output, shape index: {}]
  %s6 = sld [smem:[#allocation0]]
  $region30: #{net_forward.7} parent=0
    _
  %s8 = ssub.s32 1, %s6
  %s9 = scalar_select 0, %s8, %s6
  $region1: #{net_forward.7} parent=0
    #allocation2 [shape = 'u8[1024]{0}', space=vmem, size = 0x400, scoped, tag = 'output window, operand 0, single buffered']
    #allocation3 [shape = 's32[1]{0}', space=sflag, size = 0x4, scoped, tag = 'scoped memory for net_forward.7']
    %10 = vsyncpa [#allocation3], 0
    // Predicated region
    $region2: #{net_forward.7} parent=1 // pred_check
      _
    $region3: #{net_forward.7} parent=1 // pred_check_branch
      %12 = sbr.rel (0) target = $region5
    $region4: #{net_forward.7} parent=1 // pred_region
      _
    $region5: #{net_forward.7} parent=1 // pred_fallthru
      _
    // Predicated region
    $region6: #{net_forward.7} parent=1 // pred_check
      _
    $region7: #{net_forward.7} parent=1 // pred_check_branch
      %14 = sbr.rel (0) target = $region9
    $region8: #{net_forward.7} parent=1 // pred_region
      _
    $region9: #{net_forward.7} parent=1 // pred_fallthru
      _
    // Predicated region
    $region10: #{net_forward.7} parent=1 // pred_check
      _
    $region11: #{net_forward.7} parent=1 // pred_check_branch
      %16 = sbr.rel (0) target = $region13
    $region12: #{net_forward.7} parent=1 // pred_region
      _
    $region13: #{net_forward.7} parent=1 // pred_fallthru
      _
    // Predicated region
    $region14: #{net_forward.7} parent=1 // pred_check
      _
    $region15: #{net_forward.7} parent=1 // pred_check_branch
      %18 = sbr.rel (0) target = $region17
    $region16: #{net_forward.7} parent=1 // pred_region
      _
    $region17: #{net_forward.7} parent=1 // pred_fallthru
      _
    // Predicated region
    $region18: #{net_forward.7} parent=1 // pred_check
      _
    $region19: #{net_forward.7} parent=1 // pred_check_branch
      %20 = sbr.rel (0) target = $region21
    $region20: #{net_forward.7} parent=1 // pred_region
      _
    $region21: #{net_forward.7} parent=1 // pred_fallthru
      _
    %v21 = vld [vmem:[%s0] sm:$0xff]
    %v22 = vld [vmem:[%s0 + $0x8] sm:$0x3]
    %v23 = vld [vmem:[%s1] sm:$0xff]
    %v24 = vld [vmem:[%s1 + $0x8] sm:$0xff]
    %v25 = vld [vmem:[%s1 + $0x10] sm:$0xff]
    %v26 = vld [vmem:[%s1 + $0x18] sm:$0xff]
    %v27 = vld [vmem:[%s1 + $0x20] sm:$0xff]
    %v28 = vld [vmem:[%s1 + $0x28] sm:$0xff]
    %v29 = vld [vmem:[%s1 + $0x30] sm:$0xff]
    %v30 = vld [vmem:[%s1 + $0x38] sm:$0xff]
    %v31 = vld [vmem:[%s1 + $0x40] sm:$0xff]
    %v32 = vld [vmem:[%s1 + $0x48] sm:$0xff]
    %v33 = vld [vmem:[%s1 + $0x50] sm:$0xff]
    %v34 = vld [vmem:[%s1 + $0x58] sm:$0xff]
    %v35 = vld [vmem:[%s1 + $0x60] sm:$0xff]
    %v36 = vld [vmem:[%s1 + $0x68] sm:$0xff]
    %v37 = vld [vmem:[%s1 + $0x70] sm:$0xff]
    %v38 = vld [vmem:[%s1 + $0x78] sm:$0xff]
    %v39 = vld [vmem:[%s1 + $0x80] sm:$0xff]
    %v40 = vld [vmem:[%s1 + $0x88] sm:$0xff]
    %v41 = vld [vmem:[%s1 + $0x90] sm:$0xff]
    %v42 = vld [vmem:[%s1 + $0x98] sm:$0xff]
    %v43 = vld [vmem:[%s1 + $0xa0] sm:$0xff]
    %v44 = vld [vmem:[%s1 + $0xa8] sm:$0xff]
    %v45 = vld [vmem:[%s1 + $0xb0] sm:$0xff]
    %v46 = vld [vmem:[%s1 + $0xb8] sm:$0xff]
    %v47 = vld [vmem:[%s1 + $0xc0] sm:$0xff]
    %v48 = vld [vmem:[%s1 + $0xc8] sm:$0xff]
    %v49 = vld [vmem:[%s1 + $0xd0] sm:$0xff]
    %v50 = vld [vmem:[%s1 + $0xd8] sm:$0xff]
    %v51 = vld [vmem:[%s1 + $0xe0] sm:$0xff]
    %v52 = vld [vmem:[%s1 + $0xe8] sm:$0xff]
    %v53 = vld [vmem:[%s1 + $0xf0] sm:$0xff]
    %v54 = vld [vmem:[%s1 + $0xf8] sm:$0xff]
    %v55 = vld [vmem:[%s1 + $0x100] sm:$0xff]
    %v56 = vld [vmem:[%s1 + $0x108] sm:$0xff]
    %v57 = vld [vmem:[%s1 + $0x110] sm:$0xff]
    %v58 = vld [vmem:[%s1 + $0x118] sm:$0xff]
    %v59 = vld [vmem:[%s1 + $0x120] sm:$0xff]
    %v60 = vld [vmem:[%s1 + $0x128] sm:$0xff]
    %v61 = vld [vmem:[%s1 + $0x130] sm:$0xff]
    %v62 = vld [vmem:[%s1 + $0x138] sm:$0xff]
    %v63 = vld [vmem:[%s1 + $0x140] sm:$0xff]
    %v64 = vld [vmem:[%s1 + $0x148] sm:$0xff]
    %v65 = vld [vmem:[%s1 + $0x150] sm:$0xff]
    %v66 = vld [vmem:[%s1 + $0x158] sm:$0xff]
    %v67 = vld [vmem:[%s1 + $0x160] sm:$0xff]
    %v68 = vld [vmem:[%s1 + $0x168] sm:$0xff]
    %v69 = vld [vmem:[%s1 + $0x170] sm:$0xff]
    %v70 = vld [vmem:[%s1 + $0x178] sm:$0xff]
    %v71 = vld [vmem:[%s1 + $0x180] sm:$0xff]
    %v72 = vld [vmem:[%s1 + $0x188] sm:$0xff]
    %v73 = vld [vmem:[%s1 + $0x190] sm:$0xff]
    %v74 = vld [vmem:[%s1 + $0x198] sm:$0xff]
    %v75 = vld [vmem:[%s1 + $0x1a0] sm:$0xff]
    %v76 = vld [vmem:[%s1 + $0x1a8] sm:$0xff]
    %v77 = vld [vmem:[%s1 + $0x1b0] sm:$0xff]
    %v78 = vld [vmem:[%s1 + $0x1b8] sm:$0xff]
    %v79 = vld [vmem:[%s1 + $0x1c0] sm:$0xff]
    %v80 = vld [vmem:[%s1 + $0x1c8] sm:$0xff]
    %v81 = vld [vmem:[%s1 + $0x1d0] sm:$0xff]
    %v82 = vld [vmem:[%s1 + $0x1d8] sm:$0xff]
    %v83 = vld [vmem:[%s1 + $0x1e0] sm:$0xff]
    %v84 = vld [vmem:[%s1 + $0x1e8] sm:$0xff]
    %v85 = vld [vmem:[%s1 + $0x1f0] sm:$0xff]
    %v86 = vld [vmem:[%s1 + $0x1f8] sm:$0xff]
    %v87 = vld [vmem:[%s1 + $0x200] sm:$0xff]
    %v88 = vld [vmem:[%s1 + $0x208] sm:$0xff]
    %v89 = vld [vmem:[%s1 + $0x210] sm:$0xff]
    %v90 = vld [vmem:[%s1 + $0x218] sm:$0xff]
    %v91 = vld [vmem:[%s1 + $0x220] sm:$0xff]
    %v92 = vld [vmem:[%s1 + $0x228] sm:$0xff]
    %v93 = vld [vmem:[%s1 + $0x230] sm:$0xff]
    %v94 = vld [vmem:[%s1 + $0x238] sm:$0xff]
    %v95 = vld [vmem:[%s2] sm:$0x1]
    %v97 = vperm.slane %v95, 0
    %101 = vst [vmem:[#allocation1] ss:$4 sm:$0xff] %v21
    %s102 = scalar_lea.vmem [#allocation1], 32
    %103 = vst [vmem:[%s102] ss:$4 sm:$0xff] %v22
    %v104 = vld.sshfl [vmem:[#allocation1] sm:$0xff pattern:$0x73625140]
    %v105 = vld.sshfl [vmem:[#allocation1 + $0x8] sm:$0xff pattern:$0x73625140]
    %v106 = vld.sshfl [vmem:[#allocation1 + $0x10] sm:$0xff pattern:$0x73625140]
    %v107 = vld.sshfl [vmem:[#allocation1 + $0x18] sm:$0xff pattern:$0x73625140]
    %v108 = vld.sshfl [vmem:[#allocation1 + $0x20] sm:$0xff pattern:$0x73625140]
    %vm113 = vcmask 523264
    %v114 = vsel %vm113, %v108, 0
    %116 = vmatpush.msra.mxu0 %v38
    %117 = vmatpush.msra.mxu0 %v37
    %118 = vmatpush.msra.mxu0 %v36
    %119 = vmatpush.msra.mxu0 %v35
    %120 = vmatpush.msra.mxu0 %v34
    %121 = vmatpush.msra.mxu0 %v33
    %122 = vmatpush.msra.mxu0 %v32
    %123 = vmatpush.msra.mxu0 %v31
    %124 = vmatpush.msra.mxu0 %v30
    %125 = vmatpush.msra.mxu0 %v29
    %126 = vmatpush.msra.mxu0 %v28
    %127 = vmatpush.msra.mxu0 %v27
    %128 = vmatpush.msra.mxu0 %v26
    %129 = vmatpush.msra.mxu0 %v25
    %130 = vmatpush.msra.mxu0 %v24
    %131 = vmatpush.msra.mxu0 %v23
    %132 = vmatmul.f32.gmra.mxu0 %v104
    %v133 = vpop.f32.mrf.mxu0
    %v134 = vadd.f32 %v97, %v133
    %135 = vdwg.mxu0
    %136 = vmatpush.msra.mxu0 %v54
    %137 = vmatpush.msra.mxu0 %v53
    %138 = vmatpush.msra.mxu0 %v52
    %139 = vmatpush.msra.mxu0 %v51
    %140 = vmatpush.msra.mxu0 %v50
    %141 = vmatpush.msra.mxu0 %v49
    %142 = vmatpush.msra.mxu0 %v48
    %143 = vmatpush.msra.mxu0 %v47
    %144 = vmatpush.msra.mxu0 %v46
    %145 = vmatpush.msra.mxu0 %v45
    %146 = vmatpush.msra.mxu0 %v44
    %147 = vmatpush.msra.mxu0 %v43
    %148 = vmatpush.msra.mxu0 %v42
    %149 = vmatpush.msra.mxu0 %v41
    %150 = vmatpush.msra.mxu0 %v40
    %151 = vmatpush.msra.mxu0 %v39
    %152 = vmatmul.f32.gmra.mxu0 %v105
    %v153 = vpop.f32.mrf.mxu0
    %v154 = vadd.f32 %v134, %v153
    %155 = vdwg.mxu0
    %156 = vmatpush.msra.mxu0 %v70
    %157 = vmatpush.msra.mxu0 %v69
    %158 = vmatpush.msra.mxu0 %v68
    %159 = vmatpush.msra.mxu0 %v67
    %160 = vmatpush.msra.mxu0 %v66
    %161 = vmatpush.msra.mxu0 %v65
    %162 = vmatpush.msra.mxu0 %v64
    %163 = vmatpush.msra.mxu0 %v63
    %164 = vmatpush.msra.mxu0 %v62
    %165 = vmatpush.msra.mxu0 %v61
    %166 = vmatpush.msra.mxu0 %v60
    %167 = vmatpush.msra.mxu0 %v59
    %168 = vmatpush.msra.mxu0 %v58
    %169 = vmatpush.msra.mxu0 %v57
    %170 = vmatpush.msra.mxu0 %v56
    %171 = vmatpush.msra.mxu0 %v55
    %172 = vmatmul.f32.gmra.mxu0 %v106
    %v173 = vpop.f32.mrf.mxu0
    %v174 = vadd.f32 %v154, %v173
    %175 = vdwg.mxu0
    %176 = vmatpush.msra.mxu0 %v86
    %177 = vmatpush.msra.mxu0 %v85
    %178 = vmatpush.msra.mxu0 %v84
    %179 = vmatpush.msra.mxu0 %v83
    %180 = vmatpush.msra.mxu0 %v82
    %181 = vmatpush.msra.mxu0 %v81
    %182 = vmatpush.msra.mxu0 %v80
    %183 = vmatpush.msra.mxu0 %v79
    %184 = vmatpush.msra.mxu0 %v78
    %185 = vmatpush.msra.mxu0 %v77
    %186 = vmatpush.msra.mxu0 %v76
    %187 = vmatpush.msra.mxu0 %v75
    %188 = vmatpush.msra.mxu0 %v74
    %189 = vmatpush.msra.mxu0 %v73
    %190 = vmatpush.msra.mxu0 %v72
    %191 = vmatpush.msra.mxu0 %v71
    %192 = vmatmul.f32.gmra.mxu0 %v107
    %v193 = vpop.f32.mrf.mxu0
    %v194 = vadd.f32 %v174, %v193
    %195 = vdwg.mxu0
    %196 = vmatpush.msra.mxu0 0.0
    %197 = vmatpush.msra.mxu0 0.0
    %198 = vmatpush.msra.mxu0 0.0
    %199 = vmatpush.msra.mxu0 0.0
    %200 = vmatpush.msra.mxu0 0.0
    %201 = vmatpush.msra.mxu0 0.0
    %202 = vmatpush.msra.mxu0 0.0
    %203 = vmatpush.msra.mxu0 0.0
    %204 = vmatpush.msra.mxu0 %v94
    %205 = vmatpush.msra.mxu0 %v93
    %206 = vmatpush.msra.mxu0 %v92
    %207 = vmatpush.msra.mxu0 %v91
    %208 = vmatpush.msra.mxu0 %v90
    %209 = vmatpush.msra.mxu0 %v89
    %210 = vmatpush.msra.mxu0 %v88
    %211 = vmatpush.msra.mxu0 %v87
    %212 = vmatmul.f32.gmra.mxu0 %v114
    %v213 = vpop.f32.mrf.mxu0
    %v214 = vadd.f32 %v194, %v213
    %215 = vdwg.mxu0
    %v216 = vmax.f32 %v214, 0.0
    %v217 = vld [vmem:[%s3] sm:$0xff]
    %v218 = vld [vmem:[%s3 + $0x8] sm:$0xff]
    %v219 = vld [vmem:[%s3 + $0x10] sm:$0xff]
    %v220 = vld [vmem:[%s3 + $0x18] sm:$0xff]
    %v221 = vld [vmem:[%s3 + $0x20] sm:$0xff]
    %v222 = vld [vmem:[%s3 + $0x28] sm:$0xff]
    %v223 = vld [vmem:[%s3 + $0x30] sm:$0xff]
    %v224 = vld [vmem:[%s3 + $0x38] sm:$0xff]
    %v225 = vld [vmem:[%s3 + $0x40] sm:$0xff]
    %v226 = vld [vmem:[%s3 + $0x48] sm:$0xff]
    %v227 = vld [vmem:[%s3 + $0x50] sm:$0xff]
    %v228 = vld [vmem:[%s3 + $0x58] sm:$0xff]
    %v229 = vld [vmem:[%s3 + $0x60] sm:$0xff]
    %v230 = vld [vmem:[%s3 + $0x68] sm:$0xff]
    %v231 = vld [vmem:[%s3 + $0x70] sm:$0xff]
    %v232 = vld [vmem:[%s3 + $0x78] sm:$0xff]
    %v233 = vld [vmem:[%s4] sm:$0x1]
    %v235 = vperm.slane %v233, 0
    %237 = vmatpush.msra.mxu0 %v232
    %238 = vmatpush.msra.mxu0 %v231
    %239 = vmatpush.msra.mxu0 %v230
    %240 = vmatpush.msra.mxu0 %v229
    %241 = vmatpush.msra.mxu0 %v228
    %242 = vmatpush.msra.mxu0 %v227
    %243 = vmatpush.msra.mxu0 %v226
    %244 = vmatpush.msra.mxu0 %v225
    %245 = vmatpush.msra.mxu0 %v224
    %246 = vmatpush.msra.mxu0 %v223
    %247 = vmatpush.msra.mxu0 %v222
    %248 = vmatpush.msra.mxu0 %v221
    %249 = vmatpush.msra.mxu0 %v220
    %250 = vmatpush.msra.mxu0 %v219
    %251 = vmatpush.msra.mxu0 %v218
    %252 = vmatpush.msra.mxu0 %v217
    %253 = vmatmul.f32.gmra.mxu0 %v216
    %v254 = vpop.f32.mrf.mxu0
    %v255 = vadd.f32 %v235, %v254
    %256 = vdwg.mxu0
    %257 = vst [vmem:[#allocation2] sm:$0x3] %v255
    // Predicated region
    $region22: #{net_forward.7} parent=1 // pred_check
      _
    $region23: #{net_forward.7} parent=1 // pred_check_branch
      %259 = sbr.rel (0) target = $region25
    $region24: #{net_forward.7} parent=1 // pred_region
      %261 = vsyncadd [#allocation3], 0
      %s263 = sshll.u32 [#allocation2], 4
      %s264 = int_to_ptr.vmem [resolvable:$true] %s263
      %s265 = sshll.u32 %s5, 4
      %s266 = int_to_ptr.hbm [resolvable:$true] %s265
      %268 = dma.vmem_to_hbm [thread:$0]  %s264, 32, %s266, [#allocation3]
    $region25: #{net_forward.7} parent=1 // pred_fallthru
      _
    // Predicated region
    $region26: #{net_forward.7} parent=1 // pred_check
      _
    $region27: #{net_forward.7} parent=1 // pred_check_branch
      %270 = sbr.rel (0) target = $region29
    $region28: #{net_forward.7} parent=1 // pred_region
      %272 = dma.done [#allocation3], 32
    $region29: #{net_forward.7} parent=1 // pred_fallthru
      _
    %273 = vsyncpa [#allocation3], 1

</llo_original>
